<compile_context>
chip_gen: v5e
topology: v5e:2x2
jax: 0.10.0
libtpu: 0.0.40
codegen_flags: <defaults>
</compile_context>

<pallas_src>
import jax
import jax.numpy as jnp
from jax.experimental import pallas as pl
from jax.experimental.pallas import tpu as pltpu

BN_EPS = 1e-5       # PyTorch BatchNorm1d default eps
L2_EPS = 1e-12      # PyTorch F.normalize default eps


def mlp_kernel(x_ref, w1_ref, w2_ref, bn_ref, o_ref):
    H = w1_ref.shape[1]   # 512
    E = w2_ref.shape[1]   # 128

    # Static, lane-aligned views into the packed BN-parameter slab.
    g1 = bn_ref[:, 0:H]                    # gamma1 [1, H]
    be1 = bn_ref[:, H:2 * H]               # beta1  [1, H]
    g2 = bn_ref[:, 2 * H:2 * H + E]        # gamma2 [1, E]
    be2 = bn_ref[:, 2 * H + E:2 * H + 2 * E]  # beta2 [1, E]

    # ---- fc1: x @ W1^T (bias omitted: cancelled exactly by batch-stat BN) ----
    x = x_ref[...].astype(jnp.bfloat16)                     # [N, 2048] bf16
    h = jnp.dot(x, w1_ref[...], preferred_element_type=jnp.float32)  # [N, H] f32

    # ---- bn1 (training-mode batch statistics, biased variance), folded FMA ----
    mu1 = jnp.mean(h, axis=0, keepdims=True)
    d1 = h - mu1
    var1 = jnp.mean(d1 * d1, axis=0, keepdims=True)
    scale1 = g1 * jax.lax.rsqrt(var1 + BN_EPS)              # [1, H]
    shift1 = be1 - mu1 * scale1                             # [1, H]
    h = h * scale1 + shift1

    # ---- ReLU ----
    h = jnp.maximum(h, 0.0)

    # ---- fc2: h @ W2^T (no bias) ----
    z = jnp.dot(h.astype(jnp.bfloat16), w2_ref[...],
                preferred_element_type=jnp.float32)         # [N, E] f32

    # ---- bn2, folded FMA ----
    mu2 = jnp.mean(z, axis=0, keepdims=True)
    d2 = z - mu2
    var2 = jnp.mean(d2 * d2, axis=0, keepdims=True)
    scale2 = g2 * jax.lax.rsqrt(var2 + BN_EPS)              # [1, E]
    shift2 = be2 - mu2 * scale2                             # [1, E]
    z = z * scale2 + shift2

    # ---- L2 normalize dim=1: z / max(||z||, eps) == z * rsqrt(max(||z||^2, eps^2)) ----
    nrm2 = jnp.sum(z * z, axis=1, keepdims=True)
    inv = jax.lax.rsqrt(jnp.maximum(nrm2, L2_EPS * L2_EPS))
    o_ref[...] = z * inv


def prepare_params(w1, w2, gamma1, beta1, gamma2, beta2):
    """Call ONCE (outside the hot loop).  Returns persistent kernel params:
       w1_t bf16 [2048,512], w2_t bf16 [512,128], packed BN slab f32 [1,1280].
       The fc1 bias is intentionally not needed (cancelled by batch-stat BN)."""
    w1_t = jnp.asarray(w1).T.astype(jnp.bfloat16)           # [2048, 512]
    w2_t = jnp.asarray(w2).T.astype(jnp.bfloat16)           # [512, 128]
    bn_slab = jnp.concatenate(
        [jnp.reshape(gamma1, (1, -1)), jnp.reshape(beta1, (1, -1)),
         jnp.reshape(gamma2, (1, -1)), jnp.reshape(beta2, (1, -1))],
        axis=1).astype(jnp.float32)                          # [1, 2H+2E]
    return w1_t, w2_t, bn_slab


@jax.jit
def mlp_forward(x, w1_t_bf16, w2_t_bf16, bn_slab):
    """x: [N, 2048] float. Weights must already be bf16 (see prepare_params);
       no per-call casts happen here.  For very large batches, cast x to bf16
       in the producer to halve its HBM->VMEM bytes."""
    N = x.shape[0]
    E = w2_t_bf16.shape[1]

    vmem = pl.BlockSpec(memory_space=pltpu.MemorySpace.VMEM)

    return pl.pallas_call(
        mlp_kernel,
        out_shape=jax.ShapeDtypeStruct((N, E), jnp.float32),
        in_specs=[vmem, vmem, vmem, vmem],   # x, W1^T, W2^T, packed BN params
        out_specs=vmem,
    )(x, w1_t_bf16, w2_t_bf16, bn_slab)


if __name__ == "__main__":
    key = jax.random.PRNGKey(0)
    k_x, k_w1, k_b1, k_w2 = jax.random.split(key, 4)

    N, D_IN, HID, EMB = 8, 2048, 512, 128

    # Deterministic parameter init (PyTorch-like uniform scaling).
    bound1 = 1.0 / (D_IN ** 0.5)
    w1 = jax.random.uniform(k_w1, (HID, D_IN), jnp.float32, -bound1, bound1)
    b1 = jax.random.uniform(k_b1, (1, HID), jnp.float32, -bound1, bound1)
    bound2 = 1.0 / (HID ** 0.5)
    w2 = jax.random.uniform(k_w2, (EMB, HID), jnp.float32, -bound2, bound2)

    gamma1 = jnp.ones((HID,), jnp.float32)
    beta1 = jnp.zeros((HID,), jnp.float32)
    gamma2 = jnp.ones((EMB,), jnp.float32)
    beta2 = jnp.zeros((EMB,), jnp.float32)

    x = jax.random.normal(k_x, (N, D_IN), jnp.float32)

    # One-time parameter prep (bf16 weights + packed BN slab, kept alive).
    w1_t_bf, w2_t_bf, bn_slab = prepare_params(w1, w2, gamma1, beta1, gamma2, beta2)
    w1_t_bf, w2_t_bf, bn_slab = jax.block_until_ready((w1_t_bf, w2_t_bf, bn_slab))

    out = mlp_forward(x, w1_t_bf, w2_t_bf, bn_slab)
    out = jax.block_until_ready(out)

    # Pure-f32 JAX reference (includes the fc1 bias, which the batch-stat BN
    # cancels — verifying the bias-drop is numerically exact).  Loose tolerance
    # reflects the intentional bf16 matmuls (autocast-like).
    def ref(x):
        h = x @ w1.T + b1
        mu, var = h.mean(0, keepdims=True), h.var(0, keepdims=True)
        h = (h - mu) / jnp.sqrt(var + BN_EPS) * gamma1 + beta1
        h = jnp.maximum(h, 0.0)
        z = h @ w2.T
        mu, var = z.mean(0, keepdims=True), z.var(0, keepdims=True)
        z = (z - mu) / jnp.sqrt(var + BN_EPS) * gamma2 + beta2
        return z / jnp.maximum(jnp.linalg.norm(z, axis=1, keepdims=True), L2_EPS)

    r = ref(x)
    assert out.shape == (N, EMB)
    assert bool(jnp.all(jnp.isfinite(out)))
    assert jnp.allclose(out, r, atol=2e-2, rtol=2e-2), float(jnp.max(jnp.abs(out - r)))
    print("KERNEL_OK")
</pallas_src>

<mosaic_0001>
module attributes {stable_mosaic.version = 11 : i64} {
  func.func @mlp_kernel(%arg0: memref<8x2048xf32, #tpu.memory_space<vmem>>, %arg1: memref<2048x512xbf16, #tpu.memory_space<vmem>>, %arg2: memref<512x128xbf16, #tpu.memory_space<vmem>>, %arg3: memref<1x1280xf32, #tpu.memory_space<vmem>>, %arg4: memref<8x128xf32, #tpu.memory_space<vmem>>) attributes {dimension_semantics = [], scalar_prefetch = 0 : i64, scratch_operands = 0 : i64, tpu.core_type = #tpu.core_type<tc>} {
    %c0 = arith.constant 0 : index
    %c0_0 = arith.constant 0 : index
    %0 = vector.load %arg3[%c0, %c0_0] : memref<1x1280xf32, #tpu.memory_space<vmem>>, vector<1x512xf32>
    %c0_1 = arith.constant 0 : index
    %c512 = arith.constant 512 : index
    %1 = vector.load %arg3[%c0_1, %c512] : memref<1x1280xf32, #tpu.memory_space<vmem>>, vector<1x512xf32>
    %c0_2 = arith.constant 0 : index
    %c1024 = arith.constant 1024 : index
    %2 = vector.load %arg3[%c0_2, %c1024] : memref<1x1280xf32, #tpu.memory_space<vmem>>, vector<1x128xf32>
    %c0_3 = arith.constant 0 : index
    %c1152 = arith.constant 1152 : index
    %3 = vector.load %arg3[%c0_3, %c1152] : memref<1x1280xf32, #tpu.memory_space<vmem>>, vector<1x128xf32>
    %c0_4 = arith.constant 0 : index
    %c0_5 = arith.constant 0 : index
    %4 = vector.load %arg0[%c0_4, %c0_5] : memref<8x2048xf32, #tpu.memory_space<vmem>>, vector<8x2048xf32>
    %5 = arith.truncf %4 : vector<8x2048xf32> to vector<8x2048xbf16>
    %c0_6 = arith.constant 0 : index
    %c0_7 = arith.constant 0 : index
    %6 = vector.load %arg1[%c0_6, %c0_7] : memref<2048x512xbf16, #tpu.memory_space<vmem>>, vector<2048x512xbf16>
    %cst = arith.constant dense<0.000000e+00> : vector<8x512xf32>
    %7 = tpu.matmul %5, %6, %cst {dimension_numbers = #tpu.dot_dimension_numbers<[1], [0], [0], [1], [0, 0, 1, 1], [], []>} : vector<8x2048xbf16>, vector<2048x512xbf16>, vector<8x512xf32> -> vector<8x512xf32>
    %cst_8 = arith.constant dense<0.000000e+00> : vector<512xf32>
    %8 = vector.multi_reduction <add>, %7, %cst_8 [0] : vector<8x512xf32> to vector<512xf32>
    %9 = vector.shape_cast %8 : vector<512xf32> to vector<1x512xf32>
    %cst_9 = arith.constant 8.000000e+00 : f32
    %10 = vector.broadcast %cst_9 : f32 to vector<1x512xf32>
    %11 = arith.divf %9, %10 : vector<1x512xf32>
    %12 = vector.broadcast %11 : vector<1x512xf32> to vector<8x512xf32>
    %13 = arith.subf %7, %12 : vector<8x512xf32>
    %14 = arith.mulf %13, %13 : vector<8x512xf32>
    %cst_10 = arith.constant dense<0.000000e+00> : vector<512xf32>
    %15 = vector.multi_reduction <add>, %14, %cst_10 [0] : vector<8x512xf32> to vector<512xf32>
    %16 = vector.shape_cast %15 : vector<512xf32> to vector<1x512xf32>
    %cst_11 = arith.constant 8.000000e+00 : f32
    %17 = vector.broadcast %cst_11 : f32 to vector<1x512xf32>
    %18 = arith.divf %16, %17 : vector<1x512xf32>
    %cst_12 = arith.constant 9.99999974E-6 : f32
    %19 = vector.broadcast %cst_12 : f32 to vector<1x512xf32>
    %20 = arith.addf %18, %19 : vector<1x512xf32>
    %21 = math.rsqrt %20 : vector<1x512xf32>
    %22 = arith.mulf %0, %21 : vector<1x512xf32>
    %23 = arith.mulf %11, %22 : vector<1x512xf32>
    %24 = arith.subf %1, %23 : vector<1x512xf32>
    %25 = vector.broadcast %22 : vector<1x512xf32> to vector<8x512xf32>
    %26 = arith.mulf %7, %25 : vector<8x512xf32>
    %27 = vector.broadcast %24 : vector<1x512xf32> to vector<8x512xf32>
    %28 = arith.addf %26, %27 : vector<8x512xf32>
    %cst_13 = arith.constant 0.000000e+00 : f32
    %29 = vector.broadcast %cst_13 : f32 to vector<8x512xf32>
    %30 = arith.maximumf %28, %29 : vector<8x512xf32>
    %31 = arith.truncf %30 : vector<8x512xf32> to vector<8x512xbf16>
    %c0_14 = arith.constant 0 : index
    %c0_15 = arith.constant 0 : index
    %32 = vector.load %arg2[%c0_14, %c0_15] : memref<512x128xbf16, #tpu.memory_space<vmem>>, vector<512x128xbf16>
    %cst_16 = arith.constant dense<0.000000e+00> : vector<8x128xf32>
    %33 = tpu.matmul %31, %32, %cst_16 {dimension_numbers = #tpu.dot_dimension_numbers<[1], [0], [0], [1], [0, 0, 1, 1], [], []>} : vector<8x512xbf16>, vector<512x128xbf16>, vector<8x128xf32> -> vector<8x128xf32>
    %cst_17 = arith.constant dense<0.000000e+00> : vector<128xf32>
    %34 = vector.multi_reduction <add>, %33, %cst_17 [0] : vector<8x128xf32> to vector<128xf32>
    %35 = vector.shape_cast %34 : vector<128xf32> to vector<1x128xf32>
    %cst_18 = arith.constant 8.000000e+00 : f32
    %36 = vector.broadcast %cst_18 : f32 to vector<1x128xf32>
    %37 = arith.divf %35, %36 : vector<1x128xf32>
    %38 = vector.broadcast %37 : vector<1x128xf32> to vector<8x128xf32>
    %39 = arith.subf %33, %38 : vector<8x128xf32>
    %40 = arith.mulf %39, %39 : vector<8x128xf32>
    %cst_19 = arith.constant dense<0.000000e+00> : vector<128xf32>
    %41 = vector.multi_reduction <add>, %40, %cst_19 [0] : vector<8x128xf32> to vector<128xf32>
    %42 = vector.shape_cast %41 : vector<128xf32> to vector<1x128xf32>
    %cst_20 = arith.constant 8.000000e+00 : f32
    %43 = vector.broadcast %cst_20 : f32 to vector<1x128xf32>
    %44 = arith.divf %42, %43 : vector<1x128xf32>
    %cst_21 = arith.constant 9.99999974E-6 : f32
    %45 = vector.broadcast %cst_21 : f32 to vector<1x128xf32>
    %46 = arith.addf %44, %45 : vector<1x128xf32>
    %47 = math.rsqrt %46 : vector<1x128xf32>
    %48 = arith.mulf %2, %47 : vector<1x128xf32>
    %49 = arith.mulf %37, %48 : vector<1x128xf32>
    %50 = arith.subf %3, %49 : vector<1x128xf32>
    %51 = vector.broadcast %48 : vector<1x128xf32> to vector<8x128xf32>
    %52 = arith.mulf %33, %51 : vector<8x128xf32>
    %53 = vector.broadcast %50 : vector<1x128xf32> to vector<8x128xf32>
    %54 = arith.addf %52, %53 : vector<8x128xf32>
    %55 = arith.mulf %54, %54 : vector<8x128xf32>
    %cst_22 = arith.constant dense<0.000000e+00> : vector<8xf32>
    %56 = vector.multi_reduction <add>, %55, %cst_22 [1] : vector<8x128xf32> to vector<8xf32>
    %57 = vector.shape_cast %56 : vector<8xf32> to vector<8x1xf32>
    %cst_23 = arith.constant 1.000000e-24 : f32
    %58 = vector.broadcast %cst_23 : f32 to vector<8x1xf32>
    %59 = arith.maximumf %57, %58 : vector<8x1xf32>
    %60 = math.rsqrt %59 : vector<8x1xf32>
    %61 = vector.broadcast %60 : vector<8x1xf32> to vector<8x128xf32>
    %62 = arith.mulf %54, %61 : vector<8x128xf32>
    %c0_24 = arith.constant 0 : index
    %c0_25 = arith.constant 0 : index
    %63 = vector.load %arg4[%c0_24, %c0_25] : memref<8x128xf32, #tpu.memory_space<vmem>>, vector<8x128xf32>
    tpu.vector_store %arg4[%c0_24, %c0_25], %62 {strides = array<i32>} : memref<8x128xf32, #tpu.memory_space<vmem>>, vector<8x128xf32>,
    return
  }
}

</mosaic_0001>

<llo_original>
// kernel: mlp_forward.1
$region0: #{mlp_forward.1}
  #allocation0 [shape = 'u32[]', space=smem, size = 0x4, offset = 0x4, fixed_abs, tag = 'smem constant byte address 0x4 - core index']
  #allocation1 [shape = 'u32[72,128]{1,0:T(1,128)}', space=vmem, size = 0x9000, scoped, tag = 'internal scratch']
  %s0 = inlined_call_operand.hbm [shape: f32[8,2048], index: 0, kind: input, shape index: {}]
  %s1 = inlined_call_operand.hbm [shape: bf16[2048,512], index: 1, kind: input, shape index: {}]
  %s2 = inlined_call_operand.hbm [shape: bf16[512,128], index: 2, kind: input, shape index: {}]
  %s3 = inlined_call_operand.hbm [shape: f32[1,1280], index: 3, kind: input, shape index: {}]
  %s4 = inlined_call_operand.hbm [shape: f32[8,128], index: 4, kind: output, shape index: {}]
  %s5 = sld [smem:[#allocation0]]
  $region42: #{mlp_forward.1} parent=0
    _
  %s7 = ssub.s32 1, %s5
  %s8 = scalar_select 0, %s7, %s5
  $region1: #{mlp_forward.1} parent=0
    #allocation2 [shape = 'u8[65536]{0}', space=vmem, size = 0x10000, scoped, tag = 'input window, operand 0, single buffered']
    #allocation3 [shape = 's32[1]{0}', space=sflag, size = 0x4, scoped, tag = 'scoped memory for mlp_forward.1']
    #allocation4 [shape = 's32[1]{0}', space=sflag, size = 0x4, scoped, tag = 'scoped memory for mlp_forward.1']
    #allocation5 [shape = 'u8[2097152]{0}', space=vmem, size = 0x200000, scoped, tag = 'input window, operand 1, single buffered']
    #allocation6 [shape = 's32[1]{0}', space=sflag, size = 0x4, scoped, tag = 'scoped memory for mlp_forward.1']
    #allocation7 [shape = 'u8[131072]{0}', space=vmem, size = 0x20000, scoped, tag = 'input window, operand 2, single buffered']
    #allocation8 [shape = 'u8[5120]{0}', space=vmem, size = 0x1400, scoped, tag = 'input window, operand 3, single buffered']
    #allocation9 [shape = 's32[1]{0}', space=sflag, size = 0x4, scoped, tag = 'scoped memory for mlp_forward.1']
    #allocation10 [shape = 'u8[4096]{0}', space=vmem, size = 0x1000, scoped, tag = 'output window, operand 0, single buffered']
    %9 = vsyncpa [#allocation3], 0
    %10 = vsyncpa [#allocation6], 0
    %11 = vsyncpa [#allocation9], 0
    %12 = vsyncpa [#allocation4], 0
    // Predicated region
    $region2: #{mlp_forward.1} parent=1 // pred_check
      _
    $region3: #{mlp_forward.1} parent=1 // pred_check_branch
      %14 = sbr.rel (0) target = $region5
    $region4: #{mlp_forward.1} parent=1 // pred_region
      %16 = vsyncadd [#allocation3], 0
      %s18 = sshll.u32 %s0, 4
      %s19 = int_to_ptr.hbm [resolvable:$true] %s18
      %s20 = sshll.u32 [#allocation2], 4
      %s21 = int_to_ptr.vmem [resolvable:$true] %s20
      %23 = dma.hbm_to_vmem [thread:$0]  %s19, 2048, %s21, [#allocation3]
    $region5: #{mlp_forward.1} parent=1 // pred_fallthru
      _
    // Predicated region
    $region6: #{mlp_forward.1} parent=1 // pred_check
      _
    $region7: #{mlp_forward.1} parent=1 // pred_check_branch
      %25 = sbr.rel (0) target = $region9
    $region8: #{mlp_forward.1} parent=1 // pred_region
      %27 = vsyncadd [#allocation6], 0
      %s28 = sshll.u32 %s1, 4
      %s29 = int_to_ptr.hbm [resolvable:$true] %s28
      %s30 = sshll.u32 [#allocation5], 4
      %s31 = int_to_ptr.vmem [resolvable:$true] %s30
      %36 = dma.hbm_to_vmem [thread:$0]  %s29, 65536, %s31, [#allocation6], 256, 256, 16
    $region9: #{mlp_forward.1} parent=1 // pred_fallthru
      _
    // Predicated region
    $region10: #{mlp_forward.1} parent=1 // pred_check
      _
    $region11: #{mlp_forward.1} parent=1 // pred_check_branch
      %38 = sbr.rel (0) target = $region13
    $region12: #{mlp_forward.1} parent=1 // pred_region
      %40 = vsyncadd [#allocation6], 0
      %s41 = sshll.u32 %s2, 4
      %s42 = int_to_ptr.hbm [resolvable:$true] %s41
      %s43 = sshll.u32 [#allocation7], 4
      %s44 = int_to_ptr.vmem [resolvable:$true] %s43
      %49 = dma.hbm_to_vmem [thread:$0]  %s42, 4096, %s44, [#allocation6], 64, 64, 4
    $region13: #{mlp_forward.1} parent=1 // pred_fallthru
      _
    // Predicated region
    $region14: #{mlp_forward.1} parent=1 // pred_check
      _
    $region15: #{mlp_forward.1} parent=1 // pred_check_branch
      %51 = sbr.rel (0) target = $region17
    $region16: #{mlp_forward.1} parent=1 // pred_region
      %53 = vsyncadd [#allocation9], 0
      %s55 = sshll.u32 %s3, 4
      %s56 = int_to_ptr.hbm [resolvable:$true] %s55
      %s57 = sshll.u32 [#allocation8], 4
      %s58 = int_to_ptr.vmem [resolvable:$true] %s57
      %60 = dma.hbm_to_vmem [thread:$0]  %s56, 160, %s58, [#allocation9]
    $region17: #{mlp_forward.1} parent=1 // pred_fallthru
      _
    // Predicated region
    $region18: #{mlp_forward.1} parent=1 // pred_check
      _
    $region19: #{mlp_forward.1} parent=1 // pred_check_branch
      %62 = sbr.rel (0) target = $region21
    $region20: #{mlp_forward.1} parent=1 // pred_region
      %64 = dma.done [#allocation3], 2048
    $region21: #{mlp_forward.1} parent=1 // pred_fallthru
      _
    // Predicated region
    $region22: #{mlp_forward.1} parent=1 // pred_check
      _
    $region23: #{mlp_forward.1} parent=1 // pred_check_branch
      %66 = sbr.rel (0) target = $region25
    $region24: #{mlp_forward.1} parent=1 // pred_region
      %68 = dma.done [#allocation6], 65536
    $region25: #{mlp_forward.1} parent=1 // pred_fallthru
      _
    // Predicated region
    $region26: #{mlp_forward.1} parent=1 // pred_check
      _
    $region27: #{mlp_forward.1} parent=1 // pred_check_branch
      %70 = sbr.rel (0) target = $region29
    $region28: #{mlp_forward.1} parent=1 // pred_region
      %72 = dma.done [#allocation6], 4096
    $region29: #{mlp_forward.1} parent=1 // pred_fallthru
      _
    // Predicated region
    $region30: #{mlp_forward.1} parent=1 // pred_check
      _
    $region31: #{mlp_forward.1} parent=1 // pred_check_branch
      %74 = sbr.rel (0) target = $region33
    $region32: #{mlp_forward.1} parent=1 // pred_region
      %76 = dma.done [#allocation9], 160
    $region33: #{mlp_forward.1} parent=1 // pred_fallthru
      _
    %v77 = vld [vmem:[#allocation8] sm:$0xf]
    %v78 = vld [vmem:[#allocation8 + $0x4] sm:$0xf]
    %v79 = vld [vmem:[#allocation8 + $0x8] sm:$0x1]
    %v80 = vld [vmem:[#allocation8 + $0x9] sm:$0x1]
    %v81 = vld [vmem:[#allocation2] sm:$0xff]
    %v82 = vld [vmem:[#allocation2 + $0x8] sm:$0xff]
    %v83 = vld [vmem:[#allocation2 + $0x10] sm:$0xff]
    %v84 = vld [vmem:[#allocation2 + $0x18] sm:$0xff]
    %v85 = vld [vmem:[#allocation2 + $0x20] sm:$0xff]
    %v86 = vld [vmem:[#allocation2 + $0x28] sm:$0xff]
    %v87 = vld [vmem:[#allocation2 + $0x30] sm:$0xff]
    %v88 = vld [vmem:[#allocation2 + $0x38] sm:$0xff]
    %v89 = vld [vmem:[#allocation2 + $0x40] sm:$0xff]
    %v90 = vld [vmem:[#allocation2 + $0x48] sm:$0xff]
    %v91 = vld [vmem:[#allocation2 + $0x50] sm:$0xff]
    %v92 = vld [vmem:[#allocation2 + $0x58] sm:$0xff]
    %v93 = vld [vmem:[#allocation2 + $0x60] sm:$0xff]
    %v94 = vld [vmem:[#allocation2 + $0x68] sm:$0xff]
    %v95 = vld [vmem:[#allocation2 + $0x70] sm:$0xff]
    %v96 = vld [vmem:[#allocation2 + $0x78] sm:$0xff]
    %v97 = vpack.c.bf16 %v81, %v81
    %v98 = vpack.c.bf16 %v82, %v82
    %v99 = vpack.c.bf16 %v83, %v83
    %v100 = vpack.c.bf16 %v84, %v84
    %v101 = vpack.c.bf16 %v85, %v85
    %v102 = vpack.c.bf16 %v86, %v86
    %v103 = vpack.c.bf16 %v87, %v87
    %v104 = vpack.c.bf16 %v88, %v88
    %v105 = vpack.c.bf16 %v89, %v89
    %v106 = vpack.c.bf16 %v90, %v90
    %v107 = vpack.c.bf16 %v91, %v91
    %v108 = vpack.c.bf16 %v92, %v92
    %v109 = vpack.c.bf16 %v93, %v93
    %v110 = vpack.c.bf16 %v94, %v94
    %v111 = vpack.c.bf16 %v95, %v95
    %v112 = vpack.c.bf16 %v96, %v96
    %v113 = vld [vmem:[#allocation5] sm:$0xff]
    %v114 = vld [vmem:[#allocation5 + $0x8] sm:$0xff]
    %v115 = vld [vmem:[#allocation5 + $0x10] sm:$0xff]
    %v116 = vld [vmem:[#allocation5 + $0x18] sm:$0xff]
    %v117 = vld [vmem:[#allocation5 + $0x20] sm:$0xff]
    %v118 = vld [vmem:[#allocation5 + $0x28] sm:$0xff]
    %v119 = vld [vmem:[#allocation5 + $0x30] sm:$0xff]
    %v120 = vld [vmem:[#allocation5 + $0x38] sm:$0xff]
    %v121 = vld [vmem:[#allocation5 + $0x40] sm:$0xff]
    %v122 = vld [vmem:[#allocation5 + $0x48] sm:$0xff]
    %v123 = vld [vmem:[#allocation5 + $0x50] sm:$0xff]
    %v124 = vld [vmem:[#allocation5 + $0x58] sm:$0xff]
    %v125 = vld [vmem:[#allocation5 + $0x60] sm:$0xff]
    %v126 = vld [vmem:[#allocation5 + $0x68] sm:$0xff]
    %v127 = vld [vmem:[#allocation5 + $0x70] sm:$0xff]
    %v128 = vld [vmem:[#allocation5 + $0x78] sm:$0xff]
    %v129 = vld [vmem:[#allocation5 + $0x80] sm:$0xff]
    %v130 = vld [vmem:[#allocation5 + $0x88] sm:$0xff]
    %v131 = vld [vmem:[#allocation5 + $0x90] sm:$0xff]
    %v132 = vld [vmem:[#allocation5 + $0x98] sm:$0xff]
    %v133 = vld [vmem:[#allocation5 + $0xa0] sm:$0xff]
    %v134 = vld [vmem:[#allocation5 + $0xa8] sm:$0xff]
    %v135 = vld [vmem:[#allocation5 + $0xb0] sm:$0xff]
    %v136 = vld [vmem:[#allocation5 + $0xb8] sm:$0xff]
    %v137 = vld [vmem:[#allocation5 + $0xc0] sm:$0xff]
    %v138 = vld [vmem:[#allocation5 + $0xc8] sm:$0xff]
    %v139 = vld [vmem:[#allocation5 + $0xd0] sm:$0xff]
    %v140 = vld [vmem:[#allocation5 + $0xd8] sm:$0xff]
    %v141 = vld [vmem:[#allocation5 + $0xe0] sm:$0xff]
    %v142 = vld [vmem:[#allocation5 + $0xe8] sm:$0xff]
    %v143 = vld [vmem:[#allocation5 + $0xf0] sm:$0xff]
    %v144 = vld [vmem:[#allocation5 + $0xf8] sm:$0xff]
    %v145 = vld [vmem:[#allocation5 + $0x100] sm:$0xff]
    %v146 = vld [vmem:[#allocation5 + $0x108] sm:$0xff]
    %v147 = vld [vmem:[#allocation5 + $0x110] sm:$0xff]
    %v148 = vld [vmem:[#allocation5 + $0x118] sm:$0xff]
    %v149 = vld [vmem:[#allocation5 + $0x120] sm:$0xff]
    %v150 = vld [vmem:[#allocation5 + $0x128] sm:$0xff]
    %v151 = vld [vmem:[#allocation5 + $0x130] sm:$0xff]
    %v152 = vld [vmem:[#allocation5 + $0x138] sm:$0xff]
    %v153 = vld [vmem:[#allocation5 + $0x140] sm:$0xff]
    %v154 = vld [vmem:[#allocation5 + $0x148] sm:$0xff]
    %v155 = vld [vmem:[#allocation5 + $0x150] sm:$0xff]
    %v156 = vld [vmem:[#allocation5 + $0x158] sm:$0xff]
    %v157 = vld [vmem:[#allocation5 + $0x160] sm:$0xff]
    %v158 = vld [vmem:[#allocation5 + $0x168] sm:$0xff]
    %v159 = vld [vmem:[#allocation5 + $0x170] sm:$0xff]
    %v160 = vld [vmem:[#allocation5 + $0x178] sm:$0xff]
    %v161 = vld [vmem:[#allocation5 + $0x180] sm:$0xff]
    %v162 = vld [vmem:[#allocation5 + $0x188] sm:$0xff]
    %v163 = vld [vmem:[#allocation5 + $0x190] sm:$0xff]
    %v164 = vld [vmem:[#allocation5 + $0x198] sm:$0xff]
    %v165 = vld [vmem:[#allocation5 + $0x1a0] sm:$0xff]
    %v166 = vld [vmem:[#allocation5 + $0x1a8] sm:$0xff]
    %v167 = vld [vmem:[#allocation5 + $0x1b0] sm:$0xff]
    %v168 = vld [vmem:[#allocation5 + $0x1b8] sm:$0xff]
    %v169 = vld [vmem:[#allocation5 + $0x1c0] sm:$0xff]
    %v170 = vld [vmem:[#allocation5 + $0x1c8] sm:$0xff]
    %v171 = vld [vmem:[#allocation5 + $0x1d0] sm:$0xff]
    %v172 = vld [vmem:[#allocation5 + $0x1d8] sm:$0xff]
    %v173 = vld [vmem:[#allocation5 + $0x1e0] sm:$0xff]
    %v174 = vld [vmem:[#allocation5 + $0x1e8] sm:$0xff]
    %v175 = vld [vmem:[#allocation5 + $0x1f0] sm:$0xff]
    %v176 = vld [vmem:[#allocation5 + $0x1f8] sm:$0xff]
    %v177 = vld [vmem:[#allocation5 + $0x200] sm:$0xff]
    %v178 = vld [vmem:[#allocation5 + $0x208] sm:$0xff]
    %v179 = vld [vmem:[#allocation5 + $0x210] sm:$0xff]
    %v180 = vld [vmem:[#allocation5 + $0x218] sm:$0xff]
    %v181 = vld [vmem:[#allocation5 + $0x220] sm:$0xff]
    %v182 = vld [vmem:[#allocation5 + $0x228] sm:$0xff]
    %v183 = vld [vmem:[#allocation5 + $0x230] sm:$0xff]
    %v184 = vld [vmem:[#allocation5 + $0x238] sm:$0xff]
    %v185 = vld [vmem:[#allocation5 + $0x240] sm:$0xff]
    %v186 = vld [vmem:[#allocation5 + $0x248] sm:$0xff]
    %v187 = vld [vmem:[#allocation5 + $0x250] sm:$0xff]
    %v188 = vld [vmem:[#allocation5 + $0x258] sm:$0xff]
    %v189 = vld [vmem:[#allocation5 + $0x260] sm:$0xff]
    %v190 = vld [vmem:[#allocation5 + $0x268] sm:$0xff]
    %v191 = vld [vmem:[#allocation5 + $0x270] sm:$0xff]
    %v192 = vld [vmem:[#allocation5 + $0x278] sm:$0xff]
    %v193 = vld [vmem:[#allocation5 + $0x280] sm:$0xff]
    %v194 = vld [vmem:[#allocation5 + $0x288] sm:$0xff]
    %v195 = vld [vmem:[#allocation5 + $0x290] sm:$0xff]
    %v196 = vld [vmem:[#allocation5 + $0x298] sm:$0xff]
    %v197 = vld [vmem:[#allocation5 + $0x2a0] sm:$0xff]
    %v198 = vld [vmem:[#allocation5 + $0x2a8] sm:$0xff]
    %v199 = vld [vmem:[#allocation5 + $0x2b0] sm:$0xff]
    %v200 = vld [vmem:[#allocation5 + $0x2b8] sm:$0xff]
    %v201 = vld [vmem:[#allocation5 + $0x2c0] sm:$0xff]
    %v202 = vld [vmem:[#allocation5 + $0x2c8] sm:$0xff]
    %v203 = vld [vmem:[#allocation5 + $0x2d0] sm:$0xff]
    %v204 = vld [vmem:[#allocation5 + $0x2d8] sm:$0xff]
    %v205 = vld [vmem:[#allocation5 + $0x2e0] sm:$0xff]
    %v206 = vld [vmem:[#allocation5 + $0x2e8] sm:$0xff]
    %v207 = vld [vmem:[#allocation5 + $0x2f0] sm:$0xff]
    %v208 = vld [vmem:[#allocation5 + $0x2f8] sm:$0xff]
    %v209 = vld [vmem:[#allocation5 + $0x300] sm:$0xff]
    %v210 = vld [vmem:[#allocation5 + $0x308] sm:$0xff]
    %v211 = vld [vmem:[#allocation5 + $0x310] sm:$0xff]
    %v212 = vld [vmem:[#allocation5 + $0x318] sm:$0xff]
    %v213 = vld [vmem:[#allocation5 + $0x320] sm:$0xff]
    %v214 = vld [vmem:[#allocation5 + $0x328] sm:$0xff]
    %v215 = vld [vmem:[#allocation5 + $0x330] sm:$0xff]
    %v216 = vld [vmem:[#allocation5 + $0x338] sm:$0xff]
    %v217 = vld [vmem:[#allocation5 + $0x340] sm:$0xff]
    %v218 = vld [vmem:[#allocation5 + $0x348] sm:$0xff]
    %v219 = vld [vmem:[#allocation5 + $0x350] sm:$0xff]
    %v220 = vld [vmem:[#allocation5 + $0x358] sm:$0xff]
    %v221 = vld [vmem:[#allocation5 + $0x360] sm:$0xff]
    %v222 = vld [vmem:[#allocation5 + $0x368] sm:$0xff]
    %v223 = vld [vmem:[#allocation5 + $0x370] sm:$0xff]
    %v224 = vld [vmem:[#allocation5 + $0x378] sm:$0xff]
    %v225 = vld [vmem:[#allocation5 + $0x380] sm:$0xff]
    %v226 = vld [vmem:[#allocation5 + $0x388] sm:$0xff]
    %v227 = vld [vmem:[#allocation5 + $0x390] sm:$0xff]
    %v228 = vld [vmem:[#allocation5 + $0x398] sm:$0xff]
    %v229 = vld [vmem:[#allocation5 + $0x3a0] sm:$0xff]
    %v230 = vld [vmem:[#allocation5 + $0x3a8] sm:$0xff]
    %v231 = vld [vmem:[#allocation5 + $0x3b0] sm:$0xff]
    %v232 = vld [vmem:[#allocation5 + $0x3b8] sm:$0xff]
    %v233 = vld [vmem:[#allocation5 + $0x3c0] sm:$0xff]
    %v234 = vld [vmem:[#allocation5 + $0x3c8] sm:$0xff]
    %v235 = vld [vmem:[#allocation5 + $0x3d0] sm:$0xff]
    %v236 = vld [vmem:[#allocation5 + $0x3d8] sm:$0xff]
    %v237 = vld [vmem:[#allocation5 + $0x3e0] sm:$0xff]
    %v238 = vld [vmem:[#allocation5 + $0x3e8] sm:$0xff]
    %v239 = vld [vmem:[#allocation5 + $0x3f0] sm:$0xff]
    %v240 = vld [vmem:[#allocation5 + $0x3f8] sm:$0xff]
    %v241 = vld [vmem:[#allocation5 + $0x400] sm:$0xff]
    %v242 = vld [vmem:[#allocation5 + $0x408] sm:$0xff]
    %v243 = vld [vmem:[#allocation5 + $0x410] sm:$0xff]
    %v244 = vld [vmem:[#allocation5 + $0x418] sm:$0xff]
    %v245 = vld [vmem:[#allocation5 + $0x420] sm:$0xff]
    %v246 = vld [vmem:[#allocation5 + $0x428] sm:$0xff]
    %v247 = vld [vmem:[#allocation5 + $0x430] sm:$0xff]
    %v248 = vld [vmem:[#allocation5 + $0x438] sm:$0xff]
    %v249 = vld [vmem:[#allocation5 + $0x440] sm:$0xff]
    %v250 = vld [vmem:[#allocation5 + $0x448] sm:$0xff]
    %v251 = vld [vmem:[#allocation5 + $0x450] sm:$0xff]
    %v252 = vld [vmem:[#allocation5 + $0x458] sm:$0xff]
    %v253 = vld [vmem:[#allocation5 + $0x460] sm:$0xff]
    %v254 = vld [vmem:[#allocation5 + $0x468] sm:$0xff]
    %v255 = vld [vmem:[#allocation5 + $0x470] sm:$0xff]
    %v256 = vld [vmem:[#allocation5 + $0x478] sm:$0xff]
    %v257 = vld [vmem:[#allocation5 + $0x480] sm:$0xff]
    %v258 = vld [vmem:[#allocation5 + $0x488] sm:$0xff]
    %v259 = vld [vmem:[#allocation5 + $0x490] sm:$0xff]
    %v260 = vld [vmem:[#allocation5 + $0x498] sm:$0xff]
    %v261 = vld [vmem:[#allocation5 + $0x4a0] sm:$0xff]
    %v262 = vld [vmem:[#allocation5 + $0x4a8] sm:$0xff]
    %v263 = vld [vmem:[#allocation5 + $0x4b0] sm:$0xff]
    %v264 = vld [vmem:[#allocation5 + $0x4b8] sm:$0xff]
    %v265 = vld [vmem:[#allocation5 + $0x4c0] sm:$0xff]
    %v266 = vld [vmem:[#allocation5 + $0x4c8] sm:$0xff]
    %v267 = vld [vmem:[#allocation5 + $0x4d0] sm:$0xff]
    %v268 = vld [vmem:[#allocation5 + $0x4d8] sm:$0xff]
    %v269 = vld [vmem:[#allocation5 + $0x4e0] sm:$0xff]
    %v270 = vld [vmem:[#allocation5 + $0x4e8] sm:$0xff]
    %v271 = vld [vmem:[#allocation5 + $0x4f0] sm:$0xff]
    %v272 = vld [vmem:[#allocation5 + $0x4f8] sm:$0xff]
    %v273 = vld [vmem:[#allocation5 + $0x500] sm:$0xff]
    %v274 = vld [vmem:[#allocation5 + $0x508] sm:$0xff]
    %v275 = vld [vmem:[#allocation5 + $0x510] sm:$0xff]
    %v276 = vld [vmem:[#allocation5 + $0x518] sm:$0xff]
    %v277 = vld [vmem:[#allocation5 + $0x520] sm:$0xff]
    %v278 = vld [vmem:[#allocation5 + $0x528] sm:$0xff]
    %v279 = vld [vmem:[#allocation5 + $0x530] sm:$0xff]
    %v280 = vld [vmem:[#allocation5 + $0x538] sm:$0xff]
    %v281 = vld [vmem:[#allocation5 + $0x540] sm:$0xff]
    %v282 = vld [vmem:[#allocation5 + $0x548] sm:$0xff]
    %v283 = vld [vmem:[#allocation5 + $0x550] sm:$0xff]
    %v284 = vld [vmem:[#allocation5 + $0x558] sm:$0xff]
    %v285 = vld [vmem:[#allocation5 + $0x560] sm:$0xff]
    %v286 = vld [vmem:[#allocation5 + $0x568] sm:$0xff]
    %v287 = vld [vmem:[#allocation5 + $0x570] sm:$0xff]
    %v288 = vld [vmem:[#allocation5 + $0x578] sm:$0xff]
    %v289 = vld [vmem:[#allocation5 + $0x580] sm:$0xff]
    %v290 = vld [vmem:[#allocation5 + $0x588] sm:$0xff]
    %v291 = vld [vmem:[#allocation5 + $0x590] sm:$0xff]
    %v292 = vld [vmem:[#allocation5 + $0x598] sm:$0xff]
    %v293 = vld [vmem:[#allocation5 + $0x5a0] sm:$0xff]
    %v294 = vld [vmem:[#allocation5 + $0x5a8] sm:$0xff]
    %v295 = vld [vmem:[#allocation5 + $0x5b0] sm:$0xff]
    %v296 = vld [vmem:[#allocation5 + $0x5b8] sm:$0xff]
    %v297 = vld [vmem:[#allocation5 + $0x5c0] sm:$0xff]
    %v298 = vld [vmem:[#allocation5 + $0x5c8] sm:$0xff]
    %v299 = vld [vmem:[#allocation5 + $0x5d0] sm:$0xff]
    %v300 = vld [vmem:[#allocation5 + $0x5d8] sm:$0xff]
    %v301 = vld [vmem:[#allocation5 + $0x5e0] sm:$0xff]
    %v302 = vld [vmem:[#allocation5 + $0x5e8] sm:$0xff]
    %v303 = vld [vmem:[#allocation5 + $0x5f0] sm:$0xff]
    %v304 = vld [vmem:[#allocation5 + $0x5f8] sm:$0xff]
    %v305 = vld [vmem:[#allocation5 + $0x600] sm:$0xff]
    %v306 = vld [vmem:[#allocation5 + $0x608] sm:$0xff]
    %v307 = vld [vmem:[#allocation5 + $0x610] sm:$0xff]
    %v308 = vld [vmem:[#allocation5 + $0x618] sm:$0xff]
    %v309 = vld [vmem:[#allocation5 + $0x620] sm:$0xff]
    %v310 = vld [vmem:[#allocation5 + $0x628] sm:$0xff]
    %v311 = vld [vmem:[#allocation5 + $0x630] sm:$0xff]
    %v312 = vld [vmem:[#allocation5 + $0x638] sm:$0xff]
    %v313 = vld [vmem:[#allocation5 + $0x640] sm:$0xff]
    %v314 = vld [vmem:[#allocation5 + $0x648] sm:$0xff]
    %v315 = vld [vmem:[#allocation5 + $0x650] sm:$0xff]
    %v316 = vld [vmem:[#allocation5 + $0x658] sm:$0xff]
    %v317 = vld [vmem:[#allocation5 + $0x660] sm:$0xff]
    %v318 = vld [vmem:[#allocation5 + $0x668] sm:$0xff]
    %v319 = vld [vmem:[#allocation5 + $0x670] sm:$0xff]
    %v320 = vld [vmem:[#allocation5 + $0x678] sm:$0xff]
    %v321 = vld [vmem:[#allocation5 + $0x680] sm:$0xff]
    %v322 = vld [vmem:[#allocation5 + $0x688] sm:$0xff]
    %v323 = vld [vmem:[#allocation5 + $0x690] sm:$0xff]
    %v324 = vld [vmem:[#allocation5 + $0x698] sm:$0xff]
    %v325 = vld [vmem:[#allocation5 + $0x6a0] sm:$0xff]
    %v326 = vld [vmem:[#allocation5 + $0x6a8] sm:$0xff]
    %v327 = vld [vmem:[#allocation5 + $0x6b0] sm:$0xff]
    %v328 = vld [vmem:[#allocation5 + $0x6b8] sm:$0xff]
    %v329 = vld [vmem:[#allocation5 + $0x6c0] sm:$0xff]
    %v330 = vld [vmem:[#allocation5 + $0x6c8] sm:$0xff]
    %v331 = vld [vmem:[#allocation5 + $0x6d0] sm:$0xff]
    %v332 = vld [vmem:[#allocation5 + $0x6d8] sm:$0xff]
    %v333 = vld [vmem:[#allocation5 + $0x6e0] sm:$0xff]
    %v334 = vld [vmem:[#allocation5 + $0x6e8] sm:$0xff]
    %v335 = vld [vmem:[#allocation5 + $0x6f0] sm:$0xff]
    %v336 = vld [vmem:[#allocation5 + $0x6f8] sm:$0xff]
    %v337 = vld [vmem:[#allocation5 + $0x700] sm:$0xff]
    %v338 = vld [vmem:[#allocation5 + $0x708] sm:$0xff]
    %v339 = vld [vmem:[#allocation5 + $0x710] sm:$0xff]
    %v340 = vld [vmem:[#allocation5 + $0x718] sm:$0xff]
    %v341 = vld [vmem:[#allocation5 + $0x720] sm:$0xff]
    %v342 = vld [vmem:[#allocation5 + $0x728] sm:$0xff]
    %v343 = vld [vmem:[#allocation5 + $0x730] sm:$0xff]
    %v344 = vld [vmem:[#allocation5 + $0x738] sm:$0xff]
    %v345 = vld [vmem:[#allocation5 + $0x740] sm:$0xff]
    %v346 = vld [vmem:[#allocation5 + $0x748] sm:$0xff]
    %v347 = vld [vmem:[#allocation5 + $0x750] sm:$0xff]
    %v348 = vld [vmem:[#allocation5 + $0x758] sm:$0xff]
    %v349 = vld [vmem:[#allocation5 + $0x760] sm:$0xff]
    %v350 = vld [vmem:[#allocation5 + $0x768] sm:$0xff]
    %v351 = vld [vmem:[#allocation5 + $0x770] sm:$0xff]
    %v352 = vld [vmem:[#allocation5 + $0x778] sm:$0xff]
    %v353 = vld [vmem:[#allocation5 + $0x780] sm:$0xff]
    %v354 = vld [vmem:[#allocation5 + $0x788] sm:$0xff]
    %v355 = vld [vmem:[#allocation5 + $0x790] sm:$0xff]
    %v356 = vld [vmem:[#allocation5 + $0x798] sm:$0xff]
    %v357 = vld [vmem:[#allocation5 + $0x7a0] sm:$0xff]
    %v358 = vld [vmem:[#allocation5 + $0x7a8] sm:$0xff]
    %v359 = vld [vmem:[#allocation5 + $0x7b0] sm:$0xff]
    %v360 = vld [vmem:[#allocation5 + $0x7b8] sm:$0xff]
    %v361 = vld [vmem:[#allocation5 + $0x7c0] sm:$0xff]
    %v362 = vld [vmem:[#allocation5 + $0x7c8] sm:$0xff]
    %v363 = vld [vmem:[#allocation5 + $0x7d0] sm:$0xff]
    %v364 = vld [vmem:[#allocation5 + $0x7d8] sm:$0xff]
    %v365 = vld [vmem:[#allocation5 + $0x7e0] sm:$0xff]
    %v366 = vld [vmem:[#allocation5 + $0x7e8] sm:$0xff]
    %v367 = vld [vmem:[#allocation5 + $0x7f0] sm:$0xff]
    %v368 = vld [vmem:[#allocation5 + $0x7f8] sm:$0xff]
    %v369 = vld [vmem:[#allocation5 + $0x800] sm:$0xff]
    %v370 = vld [vmem:[#allocation5 + $0x808] sm:$0xff]
    %v371 = vld [vmem:[#allocation5 + $0x810] sm:$0xff]
    %v372 = vld [vmem:[#allocation5 + $0x818] sm:$0xff]
    %v373 = vld [vmem:[#allocation5 + $0x820] sm:$0xff]
    %v374 = vld [vmem:[#allocation5 + $0x828] sm:$0xff]
    %v375 = vld [vmem:[#allocation5 + $0x830] sm:$0xff]
    %v376 = vld [vmem:[#allocation5 + $0x838] sm:$0xff]
    %v377 = vld [vmem:[#allocation5 + $0x840] sm:$0xff]
    %v378 = vld [vmem:[#allocation5 + $0x848] sm:$0xff]
    %v379 = vld [vmem:[#allocation5 + $0x850] sm:$0xff]
    %v380 = vld [vmem:[#allocation5 + $0x858] sm:$0xff]
    %v381 = vld [vmem:[#allocation5 + $0x860] sm:$0xff]
    %v382 = vld [vmem:[#allocation5 + $0x868] sm:$0xff]
    %v383 = vld [vmem:[#allocation5 + $0x870] sm:$0xff]
    %v384 = vld [vmem:[#allocation5 + $0x878] sm:$0xff]
    %v385 = vld [vmem:[#allocation5 + $0x880] sm:$0xff]
    %v386 = vld [vmem:[#allocation5 + $0x888] sm:$0xff]
    %v387 = vld [vmem:[#allocation5 + $0x890] sm:$0xff]
    %v388 = vld [vmem:[#allocation5 + $0x898] sm:$0xff]
    %v389 = vld [vmem:[#allocation5 + $0x8a0] sm:$0xff]
    %v390 = vld [vmem:[#allocation5 + $0x8a8] sm:$0xff]
    %v391 = vld [vmem:[#allocation5 + $0x8b0] sm:$0xff]
    %v392 = vld [vmem:[#allocation5 + $0x8b8] sm:$0xff]
    %v393 = vld [vmem:[#allocation5 + $0x8c0] sm:$0xff]
    %v394 = vld [vmem:[#allocation5 + $0x8c8] sm:$0xff]
    %v395 = vld [vmem:[#allocation5 + $0x8d0] sm:$0xff]
    %v396 = vld [vmem:[#allocation5 + $0x8d8] sm:$0xff]
    %v397 = vld [vmem:[#allocation5 + $0x8e0] sm:$0xff]
    %v398 = vld [vmem:[#allocation5 + $0x8e8] sm:$0xff]
    %v399 = vld [vmem:[#allocation5 + $0x8f0] sm:$0xff]
    %v400 = vld [vmem:[#allocation5 + $0x8f8] sm:$0xff]
    %v401 = vld [vmem:[#allocation5 + $0x900] sm:$0xff]
    %v402 = vld [vmem:[#allocation5 + $0x908] sm:$0xff]
    %v403 = vld [vmem:[#allocation5 + $0x910] sm:$0xff]
    %v404 = vld [vmem:[#allocation5 + $0x918] sm:$0xff]
    %v405 = vld [vmem:[#allocation5 + $0x920] sm:$0xff]
    %v406 = vld [vmem:[#allocation5 + $0x928] sm:$0xff]
    %v407 = vld [vmem:[#allocation5 + $0x930] sm:$0xff]
    %v408 = vld [vmem:[#allocation5 + $0x938] sm:$0xff]
    %v409 = vld [vmem:[#allocation5 + $0x940] sm:$0xff]
    %v410 = vld [vmem:[#allocation5 + $0x948] sm:$0xff]
    %v411 = vld [vmem:[#allocation5 + $0x950] sm:$0xff]
    %v412 = vld [vmem:[#allocation5 + $0x958] sm:$0xff]
    %v413 = vld [vmem:[#allocation5 + $0x960] sm:$0xff]
    %v414 = vld [vmem:[#allocation5 + $0x968] sm:$0xff]
    %v415 = vld [vmem:[#allocation5 + $0x970] sm:$0xff]
    %v416 = vld [vmem:[#allocation5 + $0x978] sm:$0xff]
    %v417 = vld [vmem:[#allocation5 + $0x980] sm:$0xff]
    %v418 = vld [vmem:[#allocation5 + $0x988] sm:$0xff]
    %v419 = vld [vmem:[#allocation5 + $0x990] sm:$0xff]
    %v420 = vld [vmem:[#allocation5 + $0x998] sm:$0xff]
    %v421 = vld [vmem:[#allocation5 + $0x9a0] sm:$0xff]
    %v422 = vld [vmem:[#allocation5 + $0x9a8] sm:$0xff]
    %v423 = vld [vmem:[#allocation5 + $0x9b0] sm:$0xff]
    %v424 = vld [vmem:[#allocation5 + $0x9b8] sm:$0xff]
    %v425 = vld [vmem:[#allocation5 + $0x9c0] sm:$0xff]
    %v426 = vld [vmem:[#allocation5 + $0x9c8] sm:$0xff]
    %v427 = vld [vmem:[#allocation5 + $0x9d0] sm:$0xff]
    %v428 = vld [vmem:[#allocation5 + $0x9d8] sm:$0xff]
    %v429 = vld [vmem:[#allocation5 + $0x9e0] sm:$0xff]
    %v430 = vld [vmem:[#allocation5 + $0x9e8] sm:$0xff]
    %v431 = vld [vmem:[#allocation5 + $0x9f0] sm:$0xff]
    %v432 = vld [vmem:[#allocation5 + $0x9f8] sm:$0xff]
    %v433 = vld [vmem:[#allocation5 + $0xa00] sm:$0xff]
    %v434 = vld [vmem:[#allocation5 + $0xa08] sm:$0xff]
    %v435 = vld [vmem:[#allocation5 + $0xa10] sm:$0xff]
    %v436 = vld [vmem:[#allocation5 + $0xa18] sm:$0xff]
    %v437 = vld [vmem:[#allocation5 + $0xa20] sm:$0xff]
    %v438 = vld [vmem:[#allocation5 + $0xa28] sm:$0xff]
    %v439 = vld [vmem:[#allocation5 + $0xa30] sm:$0xff]
    %v440 = vld [vmem:[#allocation5 + $0xa38] sm:$0xff]
    %v441 = vld [vmem:[#allocation5 + $0xa40] sm:$0xff]
    %v442 = vld [vmem:[#allocation5 + $0xa48] sm:$0xff]
    %v443 = vld [vmem:[#allocation5 + $0xa50] sm:$0xff]
    %v444 = vld [vmem:[#allocation5 + $0xa58] sm:$0xff]
    %v445 = vld [vmem:[#allocation5 + $0xa60] sm:$0xff]
    %v446 = vld [vmem:[#allocation5 + $0xa68] sm:$0xff]
    %v447 = vld [vmem:[#allocation5 + $0xa70] sm:$0xff]
    %v448 = vld [vmem:[#allocation5 + $0xa78] sm:$0xff]
    %v449 = vld [vmem:[#allocation5 + $0xa80] sm:$0xff]
    %v450 = vld [vmem:[#allocation5 + $0xa88] sm:$0xff]
    %v451 = vld [vmem:[#allocation5 + $0xa90] sm:$0xff]
    %v452 = vld [vmem:[#allocation5 + $0xa98] sm:$0xff]
    %v453 = vld [vmem:[#allocation5 + $0xaa0] sm:$0xff]
    %v454 = vld [vmem:[#allocation5 + $0xaa8] sm:$0xff]
    %v455 = vld [vmem:[#allocation5 + $0xab0] sm:$0xff]
    %v456 = vld [vmem:[#allocation5 + $0xab8] sm:$0xff]
    %v457 = vld [vmem:[#allocation5 + $0xac0] sm:$0xff]
    %v458 = vld [vmem:[#allocation5 + $0xac8] sm:$0xff]
    %v459 = vld [vmem:[#allocation5 + $0xad0] sm:$0xff]
    %v460 = vld [vmem:[#allocation5 + $0xad8] sm:$0xff]
    %v461 = vld [vmem:[#allocation5 + $0xae0] sm:$0xff]
    %v462 = vld [vmem:[#allocation5 + $0xae8] sm:$0xff]
    %v463 = vld [vmem:[#allocation5 + $0xaf0] sm:$0xff]
    %v464 = vld [vmem:[#allocation5 + $0xaf8] sm:$0xff]
    %v465 = vld [vmem:[#allocation5 + $0xb00] sm:$0xff]
    %v466 = vld [vmem:[#allocation5 + $0xb08] sm:$0xff]
    %v467 = vld [vmem:[#allocation5 + $0xb10] sm:$0xff]
    %v468 = vld [vmem:[#allocation5 + $0xb18] sm:$0xff]
    %v469 = vld [vmem:[#allocation5 + $0xb20] sm:$0xff]
    %v470 = vld [vmem:[#allocation5 + $0xb28] sm:$0xff]
    %v471 = vld [vmem:[#allocation5 + $0xb30] sm:$0xff]
    %v472 = vld [vmem:[#allocation5 + $0xb38] sm:$0xff]
    %v473 = vld [vmem:[#allocation5 + $0xb40] sm:$0xff]
    %v474 = vld [vmem:[#allocation5 + $0xb48] sm:$0xff]
    %v475 = vld [vmem:[#allocation5 + $0xb50] sm:$0xff]
    %v476 = vld [vmem:[#allocation5 + $0xb58] sm:$0xff]
    %v477 = vld [vmem:[#allocation5 + $0xb60] sm:$0xff]
    %v478 = vld [vmem:[#allocation5 + $0xb68] sm:$0xff]
    %v479 = vld [vmem:[#allocation5 + $0xb70] sm:$0xff]
    %v480 = vld [vmem:[#allocation5 + $0xb78] sm:$0xff]
    %v481 = vld [vmem:[#allocation5 + $0xb80] sm:$0xff]
    %v482 = vld [vmem:[#allocation5 + $0xb88] sm:$0xff]
    %v483 = vld [vmem:[#allocation5 + $0xb90] sm:$0xff]
    %v484 = vld [vmem:[#allocation5 + $0xb98] sm:$0xff]
    %v485 = vld [vmem:[#allocation5 + $0xba0] sm:$0xff]
    %v486 = vld [vmem:[#allocation5 + $0xba8] sm:$0xff]
    %v487 = vld [vmem:[#allocation5 + $0xbb0] sm:$0xff]
    %v488 = vld [vmem:[#allocation5 + $0xbb8] sm:$0xff]
    %v489 = vld [vmem:[#allocation5 + $0xbc0] sm:$0xff]
    %v490 = vld [vmem:[#allocation5 + $0xbc8] sm:$0xff]
    %v491 = vld [vmem:[#allocation5 + $0xbd0] sm:$0xff]
    %v492 = vld [vmem:[#allocation5 + $0xbd8] sm:$0xff]
    %v493 = vld [vmem:[#allocation5 + $0xbe0] sm:$0xff]
    %v494 = vld [vmem:[#allocation5 + $0xbe8] sm:$0xff]
    %v495 = vld [vmem:[#allocation5 + $0xbf0] sm:$0xff]
    %v496 = vld [vmem:[#allocation5 + $0xbf8] sm:$0xff]
    %v497 = vld [vmem:[#allocation5 + $0xc00] sm:$0xff]
    %v498 = vld [vmem:[#allocation5 + $0xc08] sm:$0xff]
    %v499 = vld [vmem:[#allocation5 + $0xc10] sm:$0xff]
    %v500 = vld [vmem:[#allocation5 + $0xc18] sm:$0xff]
    %v501 = vld [vmem:[#allocation5 + $0xc20] sm:$0xff]
    %v502 = vld [vmem:[#allocation5 + $0xc28] sm:$0xff]
    %v503 = vld [vmem:[#allocation5 + $0xc30] sm:$0xff]
    %v504 = vld [vmem:[#allocation5 + $0xc38] sm:$0xff]
    %v505 = vld [vmem:[#allocation5 + $0xc40] sm:$0xff]
    %v506 = vld [vmem:[#allocation5 + $0xc48] sm:$0xff]
    %v507 = vld [vmem:[#allocation5 + $0xc50] sm:$0xff]
    %v508 = vld [vmem:[#allocation5 + $0xc58] sm:$0xff]
    %v509 = vld [vmem:[#allocation5 + $0xc60] sm:$0xff]
    %v510 = vld [vmem:[#allocation5 + $0xc68] sm:$0xff]
    %v511 = vld [vmem:[#allocation5 + $0xc70] sm:$0xff]
    %v512 = vld [vmem:[#allocation5 + $0xc78] sm:$0xff]
    %v513 = vld [vmem:[#allocation5 + $0xc80] sm:$0xff]
    %v514 = vld [vmem:[#allocation5 + $0xc88] sm:$0xff]
    %v515 = vld [vmem:[#allocation5 + $0xc90] sm:$0xff]
    %v516 = vld [vmem:[#allocation5 + $0xc98] sm:$0xff]
    %v517 = vld [vmem:[#allocation5 + $0xca0] sm:$0xff]
    %v518 = vld [vmem:[#allocation5 + $0xca8] sm:$0xff]
    %v519 = vld [vmem:[#allocation5 + $0xcb0] sm:$0xff]
    %v520 = vld [vmem:[#allocation5 + $0xcb8] sm:$0xff]
    %v521 = vld [vmem:[#allocation5 + $0xcc0] sm:$0xff]
    %v522 = vld [vmem:[#allocation5 + $0xcc8] sm:$0xff]
    %v523 = vld [vmem:[#allocation5 + $0xcd0] sm:$0xff]
    %v524 = vld [vmem:[#allocation5 + $0xcd8] sm:$0xff]
    %v525 = vld [vmem:[#allocation5 + $0xce0] sm:$0xff]
    %v526 = vld [vmem:[#allocation5 + $0xce8] sm:$0xff]
    %v527 = vld [vmem:[#allocation5 + $0xcf0] sm:$0xff]
    %v528 = vld [vmem:[#allocation5 + $0xcf8] sm:$0xff]
    %v529 = vld [vmem:[#allocation5 + $0xd00] sm:$0xff]
    %v530 = vld [vmem:[#allocation5 + $0xd08] sm:$0xff]
    %v531 = vld [vmem:[#allocation5 + $0xd10] sm:$0xff]
    %v532 = vld [vmem:[#allocation5 + $0xd18] sm:$0xff]
    %v533 = vld [vmem:[#allocation5 + $0xd20] sm:$0xff]
    %v534 = vld [vmem:[#allocation5 + $0xd28] sm:$0xff]
    %v535 = vld [vmem:[#allocation5 + $0xd30] sm:$0xff]
    %v536 = vld [vmem:[#allocation5 + $0xd38] sm:$0xff]
    %v537 = vld [vmem:[#allocation5 + $0xd40] sm:$0xff]
    %v538 = vld [vmem:[#allocation5 + $0xd48] sm:$0xff]
    %v539 = vld [vmem:[#allocation5 + $0xd50] sm:$0xff]
    %v540 = vld [vmem:[#allocation5 + $0xd58] sm:$0xff]
    %v541 = vld [vmem:[#allocation5 + $0xd60] sm:$0xff]
    %v542 = vld [vmem:[#allocation5 + $0xd68] sm:$0xff]
    %v543 = vld [vmem:[#allocation5 + $0xd70] sm:$0xff]
    %v544 = vld [vmem:[#allocation5 + $0xd78] sm:$0xff]
    %v545 = vld [vmem:[#allocation5 + $0xd80] sm:$0xff]
    %v546 = vld [vmem:[#allocation5 + $0xd88] sm:$0xff]
    %v547 = vld [vmem:[#allocation5 + $0xd90] sm:$0xff]
    %v548 = vld [vmem:[#allocation5 + $0xd98] sm:$0xff]
    %v549 = vld [vmem:[#allocation5 + $0xda0] sm:$0xff]
    %v550 = vld [vmem:[#allocation5 + $0xda8] sm:$0xff]
    %v551 = vld [vmem:[#allocation5 + $0xdb0] sm:$0xff]
    %v552 = vld [vmem:[#allocation5 + $0xdb8] sm:$0xff]
    %v553 = vld [vmem:[#allocation5 + $0xdc0] sm:$0xff]
    %v554 = vld [vmem:[#allocation5 + $0xdc8] sm:$0xff]
    %v555 = vld [vmem:[#allocation5 + $0xdd0] sm:$0xff]
    %v556 = vld [vmem:[#allocation5 + $0xdd8] sm:$0xff]
    %v557 = vld [vmem:[#allocation5 + $0xde0] sm:$0xff]
    %v558 = vld [vmem:[#allocation5 + $0xde8] sm:$0xff]
    %v559 = vld [vmem:[#allocation5 + $0xdf0] sm:$0xff]
    %v560 = vld [vmem:[#allocation5 + $0xdf8] sm:$0xff]
    %v561 = vld [vmem:[#allocation5 + $0xe00] sm:$0xff]
    %v562 = vld [vmem:[#allocation5 + $0xe08] sm:$0xff]
    %v563 = vld [vmem:[#allocation5 + $0xe10] sm:$0xff]
    %v564 = vld [vmem:[#allocation5 + $0xe18] sm:$0xff]
    %v565 = vld [vmem:[#allocation5 + $0xe20] sm:$0xff]
    %v566 = vld [vmem:[#allocation5 + $0xe28] sm:$0xff]
    %v567 = vld [vmem:[#allocation5 + $0xe30] sm:$0xff]
    %v568 = vld [vmem:[#allocation5 + $0xe38] sm:$0xff]
    %v569 = vld [vmem:[#allocation5 + $0xe40] sm:$0xff]
    %v570 = vld [vmem:[#allocation5 + $0xe48] sm:$0xff]
    %v571 = vld [vmem:[#allocation5 + $0xe50] sm:$0xff]
    %v572 = vld [vmem:[#allocation5 + $0xe58] sm:$0xff]
    %v573 = vld [vmem:[#allocation5 + $0xe60] sm:$0xff]
    %v574 = vld [vmem:[#allocation5 + $0xe68] sm:$0xff]
    %v575 = vld [vmem:[#allocation5 + $0xe70] sm:$0xff]
    %v576 = vld [vmem:[#allocation5 + $0xe78] sm:$0xff]
    %v577 = vld [vmem:[#allocation5 + $0xe80] sm:$0xff]
    %v578 = vld [vmem:[#allocation5 + $0xe88] sm:$0xff]
    %v579 = vld [vmem:[#allocation5 + $0xe90] sm:$0xff]
    %v580 = vld [vmem:[#allocation5 + $0xe98] sm:$0xff]
    %v581 = vld [vmem:[#allocation5 + $0xea0] sm:$0xff]
    %v582 = vld [vmem:[#allocation5 + $0xea8] sm:$0xff]
    %v583 = vld [vmem:[#allocation5 + $0xeb0] sm:$0xff]
    %v584 = vld [vmem:[#allocation5 + $0xeb8] sm:$0xff]
    %v585 = vld [vmem:[#allocation5 + $0xec0] sm:$0xff]
    %v586 = vld [vmem:[#allocation5 + $0xec8] sm:$0xff]
    %v587 = vld [vmem:[#allocation5 + $0xed0] sm:$0xff]
    %v588 = vld [vmem:[#allocation5 + $0xed8] sm:$0xff]
    %v589 = vld [vmem:[#allocation5 + $0xee0] sm:$0xff]
    %v590 = vld [vmem:[#allocation5 + $0xee8] sm:$0xff]
    %v591 = vld [vmem:[#allocation5 + $0xef0] sm:$0xff]
    %v592 = vld [vmem:[#allocation5 + $0xef8] sm:$0xff]
    %v593 = vld [vmem:[#allocation5 + $0xf00] sm:$0xff]
    %v594 = vld [vmem:[#allocation5 + $0xf08] sm:$0xff]
    %v595 = vld [vmem:[#allocation5 + $0xf10] sm:$0xff]
    %v596 = vld [vmem:[#allocation5 + $0xf18] sm:$0xff]
    %v597 = vld [vmem:[#allocation5 + $0xf20] sm:$0xff]
    %v598 = vld [vmem:[#allocation5 + $0xf28] sm:$0xff]
    %v599 = vld [vmem:[#allocation5 + $0xf30] sm:$0xff]
    %v600 = vld [vmem:[#allocation5 + $0xf38] sm:$0xff]
    %v601 = vld [vmem:[#allocation5 + $0xf40] sm:$0xff]
    %v602 = vld [vmem:[#allocation5 + $0xf48] sm:$0xff]
    %v603 = vld [vmem:[#allocation5 + $0xf50] sm:$0xff]
    %v604 = vld [vmem:[#allocation5 + $0xf58] sm:$0xff]
    %v605 = vld [vmem:[#allocation5 + $0xf60] sm:$0xff]
    %v606 = vld [vmem:[#allocation5 + $0xf68] sm:$0xff]
    %v607 = vld [vmem:[#allocation5 + $0xf70] sm:$0xff]
    %v608 = vld [vmem:[#allocation5 + $0xf78] sm:$0xff]
    %v609 = vld [vmem:[#allocation5 + $0xf80] sm:$0xff]
    %v610 = vld [vmem:[#allocation5 + $0xf88] sm:$0xff]
    %v611 = vld [vmem:[#allocation5 + $0xf90] sm:$0xff]
    %v612 = vld [vmem:[#allocation5 + $0xf98] sm:$0xff]
    %v613 = vld [vmem:[#allocation5 + $0xfa0] sm:$0xff]
    %v614 = vld [vmem:[#allocation5 + $0xfa8] sm:$0xff]
    %v615 = vld [vmem:[#allocation5 + $0xfb0] sm:$0xff]
    %v616 = vld [vmem:[#allocation5 + $0xfb8] sm:$0xff]
    %v617 = vld [vmem:[#allocation5 + $0xfc0] sm:$0xff]
    %v618 = vld [vmem:[#allocation5 + $0xfc8] sm:$0xff]
    %v619 = vld [vmem:[#allocation5 + $0xfd0] sm:$0xff]
    %v620 = vld [vmem:[#allocation5 + $0xfd8] sm:$0xff]
    %v621 = vld [vmem:[#allocation5 + $0xfe0] sm:$0xff]
    %v622 = vld [vmem:[#allocation5 + $0xfe8] sm:$0xff]
    %v623 = vld [vmem:[#allocation5 + $0xff0] sm:$0xff]
    %v624 = vld [vmem:[#allocation5 + $0xff8] sm:$0xff]
    %v1137 = vunpack.c.l.b16 %v113
    %v1138 = vunpack.c.h.b16 %v113
    %v1139 = vunpack.c.l.b16 %v114
    %v1140 = vunpack.c.h.b16 %v114
    %v1141 = vunpack.c.l.b16 %v115
    %v1142 = vunpack.c.h.b16 %v115
    %v1143 = vunpack.c.l.b16 %v116
    %v1144 = vunpack.c.h.b16 %v116
    %v1145 = vunpack.c.l.b16 %v117
    %v1146 = vunpack.c.h.b16 %v117
    %v1147 = vunpack.c.l.b16 %v118
    %v1148 = vunpack.c.h.b16 %v118
    %v1149 = vunpack.c.l.b16 %v119
    %v1150 = vunpack.c.h.b16 %v119
    %v1151 = vunpack.c.l.b16 %v120
    %v1152 = vunpack.c.h.b16 %v120
    %v1153 = vunpack.c.l.b16 %v121
    %v1154 = vunpack.c.h.b16 %v121
    %v1155 = vunpack.c.l.b16 %v122
    %v1156 = vunpack.c.h.b16 %v122
    %v1157 = vunpack.c.l.b16 %v123
    %v1158 = vunpack.c.h.b16 %v123
    %v1159 = vunpack.c.l.b16 %v124
    %v1160 = vunpack.c.h.b16 %v124
    %v1161 = vunpack.c.l.b16 %v125
    %v1162 = vunpack.c.h.b16 %v125
    %v1163 = vunpack.c.l.b16 %v126
    %v1164 = vunpack.c.h.b16 %v126
    %v1165 = vunpack.c.l.b16 %v127
    %v1166 = vunpack.c.h.b16 %v127
    %v1167 = vunpack.c.l.b16 %v128
    %v1168 = vunpack.c.h.b16 %v128
    %v1169 = vunpack.c.l.b16 %v129
    %v1170 = vunpack.c.h.b16 %v129
    %v1171 = vunpack.c.l.b16 %v130
    %v1172 = vunpack.c.h.b16 %v130
    %v1173 = vunpack.c.l.b16 %v131
    %v1174 = vunpack.c.h.b16 %v131
    %v1175 = vunpack.c.l.b16 %v132
    %v1176 = vunpack.c.h.b16 %v132
    %v1177 = vunpack.c.l.b16 %v133
    %v1178 = vunpack.c.h.b16 %v133
    %v1179 = vunpack.c.l.b16 %v134
    %v1180 = vunpack.c.h.b16 %v134
    %v1181 = vunpack.c.l.b16 %v135
    %v1182 = vunpack.c.h.b16 %v135
    %v1183 = vunpack.c.l.b16 %v136
    %v1184 = vunpack.c.h.b16 %v136
    %v1185 = vunpack.c.l.b16 %v137
    %v1186 = vunpack.c.h.b16 %v137
    %v1187 = vunpack.c.l.b16 %v138
    %v1188 = vunpack.c.h.b16 %v138
    %v1189 = vunpack.c.l.b16 %v139
    %v1190 = vunpack.c.h.b16 %v139
    %v1191 = vunpack.c.l.b16 %v140
    %v1192 = vunpack.c.h.b16 %v140
    %v1193 = vunpack.c.l.b16 %v141
    %v1194 = vunpack.c.h.b16 %v141
    %v1195 = vunpack.c.l.b16 %v142
    %v1196 = vunpack.c.h.b16 %v142
    %v1197 = vunpack.c.l.b16 %v143
    %v1198 = vunpack.c.h.b16 %v143
    %v1199 = vunpack.c.l.b16 %v144
    %v1200 = vunpack.c.h.b16 %v144
    %v1201 = vunpack.c.l.b16 %v145
    %v1202 = vunpack.c.h.b16 %v145
    %v1203 = vunpack.c.l.b16 %v146
    %v1204 = vunpack.c.h.b16 %v146
    %v1205 = vunpack.c.l.b16 %v147
    %v1206 = vunpack.c.h.b16 %v147
    %v1207 = vunpack.c.l.b16 %v148
    %v1208 = vunpack.c.h.b16 %v148
    %v1209 = vunpack.c.l.b16 %v149
    %v1210 = vunpack.c.h.b16 %v149
    %v1211 = vunpack.c.l.b16 %v150
    %v1212 = vunpack.c.h.b16 %v150
    %v1213 = vunpack.c.l.b16 %v151
    %v1214 = vunpack.c.h.b16 %v151
    %v1215 = vunpack.c.l.b16 %v152
    %v1216 = vunpack.c.h.b16 %v152
    %v1217 = vunpack.c.l.b16 %v153
    %v1218 = vunpack.c.h.b16 %v153
    %v1219 = vunpack.c.l.b16 %v154
    %v1220 = vunpack.c.h.b16 %v154
    %v1221 = vunpack.c.l.b16 %v155
    %v1222 = vunpack.c.h.b16 %v155
    %v1223 = vunpack.c.l.b16 %v156
    %v1224 = vunpack.c.h.b16 %v156
    %v1225 = vunpack.c.l.b16 %v157
    %v1226 = vunpack.c.h.b16 %v157
    %v1227 = vunpack.c.l.b16 %v158
    %v1228 = vunpack.c.h.b16 %v158
    %v1229 = vunpack.c.l.b16 %v159
    %v1230 = vunpack.c.h.b16 %v159
    %v1231 = vunpack.c.l.b16 %v160
    %v1232 = vunpack.c.h.b16 %v160
    %v1233 = vunpack.c.l.b16 %v161
    %v1234 = vunpack.c.h.b16 %v161
    %v1235 = vunpack.c.l.b16 %v162
    %v1236 = vunpack.c.h.b16 %v162
    %v1237 = vunpack.c.l.b16 %v163
    %v1238 = vunpack.c.h.b16 %v163
    %v1239 = vunpack.c.l.b16 %v164
    %v1240 = vunpack.c.h.b16 %v164
    %v1241 = vunpack.c.l.b16 %v165
    %v1242 = vunpack.c.h.b16 %v165
    %v1243 = vunpack.c.l.b16 %v166
    %v1244 = vunpack.c.h.b16 %v166
    %v1245 = vunpack.c.l.b16 %v167
    %v1246 = vunpack.c.h.b16 %v167
    %v1247 = vunpack.c.l.b16 %v168
    %v1248 = vunpack.c.h.b16 %v168
    %v1249 = vunpack.c.l.b16 %v169
    %v1250 = vunpack.c.h.b16 %v169
    %v1251 = vunpack.c.l.b16 %v170
    %v1252 = vunpack.c.h.b16 %v170
    %v1253 = vunpack.c.l.b16 %v171
    %v1254 = vunpack.c.h.b16 %v171
    %v1255 = vunpack.c.l.b16 %v172
    %v1256 = vunpack.c.h.b16 %v172
    %v1257 = vunpack.c.l.b16 %v173
    %v1258 = vunpack.c.h.b16 %v173
    %v1259 = vunpack.c.l.b16 %v174
    %v1260 = vunpack.c.h.b16 %v174
    %v1261 = vunpack.c.l.b16 %v175
    %v1262 = vunpack.c.h.b16 %v175
    %v1263 = vunpack.c.l.b16 %v176
    %v1264 = vunpack.c.h.b16 %v176
    %v1265 = vunpack.c.l.b16 %v177
    %v1266 = vunpack.c.h.b16 %v177
    %v1267 = vunpack.c.l.b16 %v178
    %v1268 = vunpack.c.h.b16 %v178
    %v1269 = vunpack.c.l.b16 %v179
    %v1270 = vunpack.c.h.b16 %v179
    %v1271 = vunpack.c.l.b16 %v180
    %v1272 = vunpack.c.h.b16 %v180
    %v1273 = vunpack.c.l.b16 %v181
    %v1274 = vunpack.c.h.b16 %v181
    %v1275 = vunpack.c.l.b16 %v182
    %v1276 = vunpack.c.h.b16 %v182
    %v1277 = vunpack.c.l.b16 %v183
    %v1278 = vunpack.c.h.b16 %v183
    %v1279 = vunpack.c.l.b16 %v184
    %v1280 = vunpack.c.h.b16 %v184
    %v1281 = vunpack.c.l.b16 %v185
    %v1282 = vunpack.c.h.b16 %v185
    %v1283 = vunpack.c.l.b16 %v186
    %v1284 = vunpack.c.h.b16 %v186
    %v1285 = vunpack.c.l.b16 %v187
    %v1286 = vunpack.c.h.b16 %v187
    %v1287 = vunpack.c.l.b16 %v188
    %v1288 = vunpack.c.h.b16 %v188
    %v1289 = vunpack.c.l.b16 %v189
    %v1290 = vunpack.c.h.b16 %v189
    %v1291 = vunpack.c.l.b16 %v190
    %v1292 = vunpack.c.h.b16 %v190
    %v1293 = vunpack.c.l.b16 %v191
    %v1294 = vunpack.c.h.b16 %v191
    %v1295 = vunpack.c.l.b16 %v192
    %v1296 = vunpack.c.h.b16 %v192
    %v1297 = vunpack.c.l.b16 %v193
    %v1298 = vunpack.c.h.b16 %v193
    %v1299 = vunpack.c.l.b16 %v194
    %v1300 = vunpack.c.h.b16 %v194
    %v1301 = vunpack.c.l.b16 %v195
    %v1302 = vunpack.c.h.b16 %v195
    %v1303 = vunpack.c.l.b16 %v196
    %v1304 = vunpack.c.h.b16 %v196
    %v1305 = vunpack.c.l.b16 %v197
    %v1306 = vunpack.c.h.b16 %v197
    %v1307 = vunpack.c.l.b16 %v198
    %v1308 = vunpack.c.h.b16 %v198
    %v1309 = vunpack.c.l.b16 %v199
    %v1310 = vunpack.c.h.b16 %v199
    %v1311 = vunpack.c.l.b16 %v200
    %v1312 = vunpack.c.h.b16 %v200
    %v1313 = vunpack.c.l.b16 %v201
    %v1314 = vunpack.c.h.b16 %v201
    %v1315 = vunpack.c.l.b16 %v202
    %v1316 = vunpack.c.h.b16 %v202
    %v1317 = vunpack.c.l.b16 %v203
    %v1318 = vunpack.c.h.b16 %v203
    %v1319 = vunpack.c.l.b16 %v204
    %v1320 = vunpack.c.h.b16 %v204
    %v1321 = vunpack.c.l.b16 %v205
    %v1322 = vunpack.c.h.b16 %v205
    %v1323 = vunpack.c.l.b16 %v206
    %v1324 = vunpack.c.h.b16 %v206
    %v1325 = vunpack.c.l.b16 %v207
    %v1326 = vunpack.c.h.b16 %v207
    %v1327 = vunpack.c.l.b16 %v208
    %v1328 = vunpack.c.h.b16 %v208
    %v1329 = vunpack.c.l.b16 %v209
    %v1330 = vunpack.c.h.b16 %v209
    %v1331 = vunpack.c.l.b16 %v210
    %v1332 = vunpack.c.h.b16 %v210
    %v1333 = vunpack.c.l.b16 %v211
    %v1334 = vunpack.c.h.b16 %v211
    %v1335 = vunpack.c.l.b16 %v212
    %v1336 = vunpack.c.h.b16 %v212
    %v1337 = vunpack.c.l.b16 %v213
    %v1338 = vunpack.c.h.b16 %v213
    %v1339 = vunpack.c.l.b16 %v214
    %v1340 = vunpack.c.h.b16 %v214
    %v1341 = vunpack.c.l.b16 %v215
    %v1342 = vunpack.c.h.b16 %v215
    %v1343 = vunpack.c.l.b16 %v216
    %v1344 = vunpack.c.h.b16 %v216
    %v1345 = vunpack.c.l.b16 %v217
    %v1346 = vunpack.c.h.b16 %v217
    %v1347 = vunpack.c.l.b16 %v218
    %v1348 = vunpack.c.h.b16 %v218
    %v1349 = vunpack.c.l.b16 %v219
    %v1350 = vunpack.c.h.b16 %v219
    %v1351 = vunpack.c.l.b16 %v220
    %v1352 = vunpack.c.h.b16 %v220
    %v1353 = vunpack.c.l.b16 %v221
    %v1354 = vunpack.c.h.b16 %v221
    %v1355 = vunpack.c.l.b16 %v222
    %v1356 = vunpack.c.h.b16 %v222
    %v1357 = vunpack.c.l.b16 %v223
    %v1358 = vunpack.c.h.b16 %v223
    %v1359 = vunpack.c.l.b16 %v224
    %v1360 = vunpack.c.h.b16 %v224
    %v1361 = vunpack.c.l.b16 %v225
    %v1362 = vunpack.c.h.b16 %v225
    %v1363 = vunpack.c.l.b16 %v226
    %v1364 = vunpack.c.h.b16 %v226
    %v1365 = vunpack.c.l.b16 %v227
    %v1366 = vunpack.c.h.b16 %v227
    %v1367 = vunpack.c.l.b16 %v228
    %v1368 = vunpack.c.h.b16 %v228
    %v1369 = vunpack.c.l.b16 %v229
    %v1370 = vunpack.c.h.b16 %v229
    %v1371 = vunpack.c.l.b16 %v230
    %v1372 = vunpack.c.h.b16 %v230
    %v1373 = vunpack.c.l.b16 %v231
    %v1374 = vunpack.c.h.b16 %v231
    %v1375 = vunpack.c.l.b16 %v232
    %v1376 = vunpack.c.h.b16 %v232
    %v1377 = vunpack.c.l.b16 %v233
    %v1378 = vunpack.c.h.b16 %v233
    %v1379 = vunpack.c.l.b16 %v234
    %v1380 = vunpack.c.h.b16 %v234
    %v1381 = vunpack.c.l.b16 %v235
    %v1382 = vunpack.c.h.b16 %v235
    %v1383 = vunpack.c.l.b16 %v236
    %v1384 = vunpack.c.h.b16 %v236
    %v1385 = vunpack.c.l.b16 %v237
    %v1386 = vunpack.c.h.b16 %v237
    %v1387 = vunpack.c.l.b16 %v238
    %v1388 = vunpack.c.h.b16 %v238
    %v1389 = vunpack.c.l.b16 %v239
    %v1390 = vunpack.c.h.b16 %v239
    %v1391 = vunpack.c.l.b16 %v240
    %v1392 = vunpack.c.h.b16 %v240
    %v1393 = vunpack.c.l.b16 %v241
    %v1394 = vunpack.c.h.b16 %v241
    %v1395 = vunpack.c.l.b16 %v242
    %v1396 = vunpack.c.h.b16 %v242
    %v1397 = vunpack.c.l.b16 %v243
    %v1398 = vunpack.c.h.b16 %v243
    %v1399 = vunpack.c.l.b16 %v244
    %v1400 = vunpack.c.h.b16 %v244
    %v1401 = vunpack.c.l.b16 %v245
    %v1402 = vunpack.c.h.b16 %v245
    %v1403 = vunpack.c.l.b16 %v246
    %v1404 = vunpack.c.h.b16 %v246
    %v1405 = vunpack.c.l.b16 %v247
    %v1406 = vunpack.c.h.b16 %v247
    %v1407 = vunpack.c.l.b16 %v248
    %v1408 = vunpack.c.h.b16 %v248
    %v1409 = vunpack.c.l.b16 %v249
    %v1410 = vunpack.c.h.b16 %v249
    %v1411 = vunpack.c.l.b16 %v250
    %v1412 = vunpack.c.h.b16 %v250
    %v1413 = vunpack.c.l.b16 %v251
    %v1414 = vunpack.c.h.b16 %v251
    %v1415 = vunpack.c.l.b16 %v252
    %v1416 = vunpack.c.h.b16 %v252
    %v1417 = vunpack.c.l.b16 %v253
    %v1418 = vunpack.c.h.b16 %v253
    %v1419 = vunpack.c.l.b16 %v254
    %v1420 = vunpack.c.h.b16 %v254
    %v1421 = vunpack.c.l.b16 %v255
    %v1422 = vunpack.c.h.b16 %v255
    %v1423 = vunpack.c.l.b16 %v256
    %v1424 = vunpack.c.h.b16 %v256
    %v1425 = vunpack.c.l.b16 %v257
    %v1426 = vunpack.c.h.b16 %v257
    %v1427 = vunpack.c.l.b16 %v258
    %v1428 = vunpack.c.h.b16 %v258
    %v1429 = vunpack.c.l.b16 %v259
    %v1430 = vunpack.c.h.b16 %v259
    %v1431 = vunpack.c.l.b16 %v260
    %v1432 = vunpack.c.h.b16 %v260
    %v1433 = vunpack.c.l.b16 %v261
    %v1434 = vunpack.c.h.b16 %v261
    %v1435 = vunpack.c.l.b16 %v262
    %v1436 = vunpack.c.h.b16 %v262
    %v1437 = vunpack.c.l.b16 %v263
    %v1438 = vunpack.c.h.b16 %v263
    %v1439 = vunpack.c.l.b16 %v264
    %v1440 = vunpack.c.h.b16 %v264
    %v1441 = vunpack.c.l.b16 %v265
    %v1442 = vunpack.c.h.b16 %v265
    %v1443 = vunpack.c.l.b16 %v266
    %v1444 = vunpack.c.h.b16 %v266
    %v1445 = vunpack.c.l.b16 %v267
    %v1446 = vunpack.c.h.b16 %v267
    %v1447 = vunpack.c.l.b16 %v268
    %v1448 = vunpack.c.h.b16 %v268
    %v1449 = vunpack.c.l.b16 %v269
    %v1450 = vunpack.c.h.b16 %v269
    %v1451 = vunpack.c.l.b16 %v270
    %v1452 = vunpack.c.h.b16 %v270
    %v1453 = vunpack.c.l.b16 %v271
    %v1454 = vunpack.c.h.b16 %v271
    %v1455 = vunpack.c.l.b16 %v272
    %v1456 = vunpack.c.h.b16 %v272
    %v1457 = vunpack.c.l.b16 %v273
    %v1458 = vunpack.c.h.b16 %v273
    %v1459 = vunpack.c.l.b16 %v274
    %v1460 = vunpack.c.h.b16 %v274
    %v1461 = vunpack.c.l.b16 %v275
    %v1462 = vunpack.c.h.b16 %v275
    %v1463 = vunpack.c.l.b16 %v276
    %v1464 = vunpack.c.h.b16 %v276
    %v1465 = vunpack.c.l.b16 %v277
    %v1466 = vunpack.c.h.b16 %v277
    %v1467 = vunpack.c.l.b16 %v278
    %v1468 = vunpack.c.h.b16 %v278
    %v1469 = vunpack.c.l.b16 %v279
    %v1470 = vunpack.c.h.b16 %v279
    %v1471 = vunpack.c.l.b16 %v280
    %v1472 = vunpack.c.h.b16 %v280
    %v1473 = vunpack.c.l.b16 %v281
    %v1474 = vunpack.c.h.b16 %v281
    %v1475 = vunpack.c.l.b16 %v282
    %v1476 = vunpack.c.h.b16 %v282
    %v1477 = vunpack.c.l.b16 %v283
    %v1478 = vunpack.c.h.b16 %v283
    %v1479 = vunpack.c.l.b16 %v284
    %v1480 = vunpack.c.h.b16 %v284
    %v1481 = vunpack.c.l.b16 %v285
    %v1482 = vunpack.c.h.b16 %v285
    %v1483 = vunpack.c.l.b16 %v286
    %v1484 = vunpack.c.h.b16 %v286
    %v1485 = vunpack.c.l.b16 %v287
    %v1486 = vunpack.c.h.b16 %v287
    %v1487 = vunpack.c.l.b16 %v288
    %v1488 = vunpack.c.h.b16 %v288
    %v1489 = vunpack.c.l.b16 %v289
    %v1490 = vunpack.c.h.b16 %v289
    %v1491 = vunpack.c.l.b16 %v290
    %v1492 = vunpack.c.h.b16 %v290
    %v1493 = vunpack.c.l.b16 %v291
    %v1494 = vunpack.c.h.b16 %v291
    %v1495 = vunpack.c.l.b16 %v292
    %v1496 = vunpack.c.h.b16 %v292
    %v1497 = vunpack.c.l.b16 %v293
    %v1498 = vunpack.c.h.b16 %v293
    %v1499 = vunpack.c.l.b16 %v294
    %v1500 = vunpack.c.h.b16 %v294
    %v1501 = vunpack.c.l.b16 %v295
    %v1502 = vunpack.c.h.b16 %v295
    %v1503 = vunpack.c.l.b16 %v296
    %v1504 = vunpack.c.h.b16 %v296
    %v1505 = vunpack.c.l.b16 %v297
    %v1506 = vunpack.c.h.b16 %v297
    %v1507 = vunpack.c.l.b16 %v298
    %v1508 = vunpack.c.h.b16 %v298
    %v1509 = vunpack.c.l.b16 %v299
    %v1510 = vunpack.c.h.b16 %v299
    %v1511 = vunpack.c.l.b16 %v300
    %v1512 = vunpack.c.h.b16 %v300
    %v1513 = vunpack.c.l.b16 %v301
    %v1514 = vunpack.c.h.b16 %v301
    %v1515 = vunpack.c.l.b16 %v302
    %v1516 = vunpack.c.h.b16 %v302
    %v1517 = vunpack.c.l.b16 %v303
    %v1518 = vunpack.c.h.b16 %v303
    %v1519 = vunpack.c.l.b16 %v304
    %v1520 = vunpack.c.h.b16 %v304
    %v1521 = vunpack.c.l.b16 %v305
    %v1522 = vunpack.c.h.b16 %v305
    %v1523 = vunpack.c.l.b16 %v306
    %v1524 = vunpack.c.h.b16 %v306
    %v1525 = vunpack.c.l.b16 %v307
    %v1526 = vunpack.c.h.b16 %v307
    %v1527 = vunpack.c.l.b16 %v308
    %v1528 = vunpack.c.h.b16 %v308
    %v1529 = vunpack.c.l.b16 %v309
    %v1530 = vunpack.c.h.b16 %v309
    %v1531 = vunpack.c.l.b16 %v310
    %v1532 = vunpack.c.h.b16 %v310
    %v1533 = vunpack.c.l.b16 %v311
    %v1534 = vunpack.c.h.b16 %v311
    %v1535 = vunpack.c.l.b16 %v312
    %v1536 = vunpack.c.h.b16 %v312
    %v1537 = vunpack.c.l.b16 %v313
    %v1538 = vunpack.c.h.b16 %v313
    %v1539 = vunpack.c.l.b16 %v314
    %v1540 = vunpack.c.h.b16 %v314
    %v1541 = vunpack.c.l.b16 %v315
    %v1542 = vunpack.c.h.b16 %v315
    %v1543 = vunpack.c.l.b16 %v316
    %v1544 = vunpack.c.h.b16 %v316
    %v1545 = vunpack.c.l.b16 %v317
    %v1546 = vunpack.c.h.b16 %v317
    %v1547 = vunpack.c.l.b16 %v318
    %v1548 = vunpack.c.h.b16 %v318
    %v1549 = vunpack.c.l.b16 %v319
    %v1550 = vunpack.c.h.b16 %v319
    %v1551 = vunpack.c.l.b16 %v320
    %v1552 = vunpack.c.h.b16 %v320
    %v1553 = vunpack.c.l.b16 %v321
    %v1554 = vunpack.c.h.b16 %v321
    %v1555 = vunpack.c.l.b16 %v322
    %v1556 = vunpack.c.h.b16 %v322
    %v1557 = vunpack.c.l.b16 %v323
    %v1558 = vunpack.c.h.b16 %v323
    %v1559 = vunpack.c.l.b16 %v324
    %v1560 = vunpack.c.h.b16 %v324
    %v1561 = vunpack.c.l.b16 %v325
    %v1562 = vunpack.c.h.b16 %v325
    %v1563 = vunpack.c.l.b16 %v326
    %v1564 = vunpack.c.h.b16 %v326
    %v1565 = vunpack.c.l.b16 %v327
    %v1566 = vunpack.c.h.b16 %v327
    %v1567 = vunpack.c.l.b16 %v328
    %v1568 = vunpack.c.h.b16 %v328
    %v1569 = vunpack.c.l.b16 %v329
    %v1570 = vunpack.c.h.b16 %v329
    %v1571 = vunpack.c.l.b16 %v330
    %v1572 = vunpack.c.h.b16 %v330
    %v1573 = vunpack.c.l.b16 %v331
    %v1574 = vunpack.c.h.b16 %v331
    %v1575 = vunpack.c.l.b16 %v332
    %v1576 = vunpack.c.h.b16 %v332
    %v1577 = vunpack.c.l.b16 %v333
    %v1578 = vunpack.c.h.b16 %v333
    %v1579 = vunpack.c.l.b16 %v334
    %v1580 = vunpack.c.h.b16 %v334
    %v1581 = vunpack.c.l.b16 %v335
    %v1582 = vunpack.c.h.b16 %v335
    %v1583 = vunpack.c.l.b16 %v336
    %v1584 = vunpack.c.h.b16 %v336
    %v1585 = vunpack.c.l.b16 %v337
    %v1586 = vunpack.c.h.b16 %v337
    %v1587 = vunpack.c.l.b16 %v338
    %v1588 = vunpack.c.h.b16 %v338
    %v1589 = vunpack.c.l.b16 %v339
    %v1590 = vunpack.c.h.b16 %v339
    %v1591 = vunpack.c.l.b16 %v340
    %v1592 = vunpack.c.h.b16 %v340
    %v1593 = vunpack.c.l.b16 %v341
    %v1594 = vunpack.c.h.b16 %v341
    %v1595 = vunpack.c.l.b16 %v342
    %v1596 = vunpack.c.h.b16 %v342
    %v1597 = vunpack.c.l.b16 %v343
    %v1598 = vunpack.c.h.b16 %v343
    %v1599 = vunpack.c.l.b16 %v344
    %v1600 = vunpack.c.h.b16 %v344
    %v1601 = vunpack.c.l.b16 %v345
    %v1602 = vunpack.c.h.b16 %v345
    %v1603 = vunpack.c.l.b16 %v346
    %v1604 = vunpack.c.h.b16 %v346
    %v1605 = vunpack.c.l.b16 %v347
    %v1606 = vunpack.c.h.b16 %v347
    %v1607 = vunpack.c.l.b16 %v348
    %v1608 = vunpack.c.h.b16 %v348
    %v1609 = vunpack.c.l.b16 %v349
    %v1610 = vunpack.c.h.b16 %v349
    %v1611 = vunpack.c.l.b16 %v350
    %v1612 = vunpack.c.h.b16 %v350
    %v1613 = vunpack.c.l.b16 %v351
    %v1614 = vunpack.c.h.b16 %v351
    %v1615 = vunpack.c.l.b16 %v352
    %v1616 = vunpack.c.h.b16 %v352
    %v1617 = vunpack.c.l.b16 %v353
    %v1618 = vunpack.c.h.b16 %v353
    %v1619 = vunpack.c.l.b16 %v354
    %v1620 = vunpack.c.h.b16 %v354
    %v1621 = vunpack.c.l.b16 %v355
    %v1622 = vunpack.c.h.b16 %v355
    %v1623 = vunpack.c.l.b16 %v356
    %v1624 = vunpack.c.h.b16 %v356
    %v1625 = vunpack.c.l.b16 %v357
    %v1626 = vunpack.c.h.b16 %v357
    %v1627 = vunpack.c.l.b16 %v358
    %v1628 = vunpack.c.h.b16 %v358
    %v1629 = vunpack.c.l.b16 %v359
    %v1630 = vunpack.c.h.b16 %v359
    %v1631 = vunpack.c.l.b16 %v360
    %v1632 = vunpack.c.h.b16 %v360
    %v1633 = vunpack.c.l.b16 %v361
    %v1634 = vunpack.c.h.b16 %v361
    %v1635 = vunpack.c.l.b16 %v362
    %v1636 = vunpack.c.h.b16 %v362
    %v1637 = vunpack.c.l.b16 %v363
    %v1638 = vunpack.c.h.b16 %v363
    %v1639 = vunpack.c.l.b16 %v364
    %v1640 = vunpack.c.h.b16 %v364
    %v1641 = vunpack.c.l.b16 %v365
    %v1642 = vunpack.c.h.b16 %v365
    %v1643 = vunpack.c.l.b16 %v366
    %v1644 = vunpack.c.h.b16 %v366
    %v1645 = vunpack.c.l.b16 %v367
    %v1646 = vunpack.c.h.b16 %v367
    %v1647 = vunpack.c.l.b16 %v368
    %v1648 = vunpack.c.h.b16 %v368
    %v1649 = vunpack.c.l.b16 %v369
    %v1650 = vunpack.c.h.b16 %v369
    %v1651 = vunpack.c.l.b16 %v370
    %v1652 = vunpack.c.h.b16 %v370
    %v1653 = vunpack.c.l.b16 %v371
    %v1654 = vunpack.c.h.b16 %v371
    %v1655 = vunpack.c.l.b16 %v372
    %v1656 = vunpack.c.h.b16 %v372
    %v1657 = vunpack.c.l.b16 %v373
    %v1658 = vunpack.c.h.b16 %v373
    %v1659 = vunpack.c.l.b16 %v374
    %v1660 = vunpack.c.h.b16 %v374
    %v1661 = vunpack.c.l.b16 %v375
    %v1662 = vunpack.c.h.b16 %v375
    %v1663 = vunpack.c.l.b16 %v376
    %v1664 = vunpack.c.h.b16 %v376
    %v1665 = vunpack.c.l.b16 %v377
    %v1666 = vunpack.c.h.b16 %v377
    %v1667 = vunpack.c.l.b16 %v378
    %v1668 = vunpack.c.h.b16 %v378
    %v1669 = vunpack.c.l.b16 %v379
    %v1670 = vunpack.c.h.b16 %v379
    %v1671 = vunpack.c.l.b16 %v380
    %v1672 = vunpack.c.h.b16 %v380
    %v1673 = vunpack.c.l.b16 %v381
    %v1674 = vunpack.c.h.b16 %v381
    %v1675 = vunpack.c.l.b16 %v382
    %v1676 = vunpack.c.h.b16 %v382
    %v1677 = vunpack.c.l.b16 %v383
    %v1678 = vunpack.c.h.b16 %v383
    %v1679 = vunpack.c.l.b16 %v384
    %v1680 = vunpack.c.h.b16 %v384
    %v1681 = vunpack.c.l.b16 %v385
    %v1682 = vunpack.c.h.b16 %v385
    %v1683 = vunpack.c.l.b16 %v386
    %v1684 = vunpack.c.h.b16 %v386
    %v1685 = vunpack.c.l.b16 %v387
    %v1686 = vunpack.c.h.b16 %v387
    %v1687 = vunpack.c.l.b16 %v388
    %v1688 = vunpack.c.h.b16 %v388
    %v1689 = vunpack.c.l.b16 %v389
    %v1690 = vunpack.c.h.b16 %v389
    %v1691 = vunpack.c.l.b16 %v390
    %v1692 = vunpack.c.h.b16 %v390
    %v1693 = vunpack.c.l.b16 %v391
    %v1694 = vunpack.c.h.b16 %v391
    %v1695 = vunpack.c.l.b16 %v392
    %v1696 = vunpack.c.h.b16 %v392
    %v1697 = vunpack.c.l.b16 %v393
    %v1698 = vunpack.c.h.b16 %v393
    %v1699 = vunpack.c.l.b16 %v394
    %v1700 = vunpack.c.h.b16 %v394
    %v1701 = vunpack.c.l.b16 %v395
    %v1702 = vunpack.c.h.b16 %v395
    %v1703 = vunpack.c.l.b16 %v396
    %v1704 = vunpack.c.h.b16 %v396
    %v1705 = vunpack.c.l.b16 %v397
    %v1706 = vunpack.c.h.b16 %v397
    %v1707 = vunpack.c.l.b16 %v398
    %v1708 = vunpack.c.h.b16 %v398
    %v1709 = vunpack.c.l.b16 %v399
    %v1710 = vunpack.c.h.b16 %v399
    %v1711 = vunpack.c.l.b16 %v400
    %v1712 = vunpack.c.h.b16 %v400
    %v1713 = vunpack.c.l.b16 %v401
    %v1714 = vunpack.c.h.b16 %v401
    %v1715 = vunpack.c.l.b16 %v402
    %v1716 = vunpack.c.h.b16 %v402
    %v1717 = vunpack.c.l.b16 %v403
    %v1718 = vunpack.c.h.b16 %v403
    %v1719 = vunpack.c.l.b16 %v404
    %v1720 = vunpack.c.h.b16 %v404
    %v1721 = vunpack.c.l.b16 %v405
    %v1722 = vunpack.c.h.b16 %v405
    %v1723 = vunpack.c.l.b16 %v406
    %v1724 = vunpack.c.h.b16 %v406
    %v1725 = vunpack.c.l.b16 %v407
    %v1726 = vunpack.c.h.b16 %v407
    %v1727 = vunpack.c.l.b16 %v408
    %v1728 = vunpack.c.h.b16 %v408
    %v1729 = vunpack.c.l.b16 %v409
    %v1730 = vunpack.c.h.b16 %v409
    %v1731 = vunpack.c.l.b16 %v410
    %v1732 = vunpack.c.h.b16 %v410
    %v1733 = vunpack.c.l.b16 %v411
    %v1734 = vunpack.c.h.b16 %v411
    %v1735 = vunpack.c.l.b16 %v412
    %v1736 = vunpack.c.h.b16 %v412
    %v1737 = vunpack.c.l.b16 %v413
    %v1738 = vunpack.c.h.b16 %v413
    %v1739 = vunpack.c.l.b16 %v414
    %v1740 = vunpack.c.h.b16 %v414
    %v1741 = vunpack.c.l.b16 %v415
    %v1742 = vunpack.c.h.b16 %v415
    %v1743 = vunpack.c.l.b16 %v416
    %v1744 = vunpack.c.h.b16 %v416
    %v1745 = vunpack.c.l.b16 %v417
    %v1746 = vunpack.c.h.b16 %v417
    %v1747 = vunpack.c.l.b16 %v418
    %v1748 = vunpack.c.h.b16 %v418
    %v1749 = vunpack.c.l.b16 %v419
    %v1750 = vunpack.c.h.b16 %v419
    %v1751 = vunpack.c.l.b16 %v420
    %v1752 = vunpack.c.h.b16 %v420
    %v1753 = vunpack.c.l.b16 %v421
    %v1754 = vunpack.c.h.b16 %v421
    %v1755 = vunpack.c.l.b16 %v422
    %v1756 = vunpack.c.h.b16 %v422
    %v1757 = vunpack.c.l.b16 %v423
    %v1758 = vunpack.c.h.b16 %v423
    %v1759 = vunpack.c.l.b16 %v424
    %v1760 = vunpack.c.h.b16 %v424
    %v1761 = vunpack.c.l.b16 %v425
    %v1762 = vunpack.c.h.b16 %v425
    %v1763 = vunpack.c.l.b16 %v426
    %v1764 = vunpack.c.h.b16 %v426
    %v1765 = vunpack.c.l.b16 %v427
    %v1766 = vunpack.c.h.b16 %v427
    %v1767 = vunpack.c.l.b16 %v428
    %v1768 = vunpack.c.h.b16 %v428
    %v1769 = vunpack.c.l.b16 %v429
    %v1770 = vunpack.c.h.b16 %v429
    %v1771 = vunpack.c.l.b16 %v430
    %v1772 = vunpack.c.h.b16 %v430
    %v1773 = vunpack.c.l.b16 %v431
    %v1774 = vunpack.c.h.b16 %v431
    %v1775 = vunpack.c.l.b16 %v432
    %v1776 = vunpack.c.h.b16 %v432
    %v1777 = vunpack.c.l.b16 %v433
    %v1778 = vunpack.c.h.b16 %v433
    %v1779 = vunpack.c.l.b16 %v434
    %v1780 = vunpack.c.h.b16 %v434
    %v1781 = vunpack.c.l.b16 %v435
    %v1782 = vunpack.c.h.b16 %v435
    %v1783 = vunpack.c.l.b16 %v436
    %v1784 = vunpack.c.h.b16 %v436
    %v1785 = vunpack.c.l.b16 %v437
    %v1786 = vunpack.c.h.b16 %v437
    %v1787 = vunpack.c.l.b16 %v438
    %v1788 = vunpack.c.h.b16 %v438
    %v1789 = vunpack.c.l.b16 %v439
    %v1790 = vunpack.c.h.b16 %v439
    %v1791 = vunpack.c.l.b16 %v440
    %v1792 = vunpack.c.h.b16 %v440
    %v1793 = vunpack.c.l.b16 %v441
    %v1794 = vunpack.c.h.b16 %v441
    %v1795 = vunpack.c.l.b16 %v442
    %v1796 = vunpack.c.h.b16 %v442
    %v1797 = vunpack.c.l.b16 %v443
    %v1798 = vunpack.c.h.b16 %v443
    %v1799 = vunpack.c.l.b16 %v444
    %v1800 = vunpack.c.h.b16 %v444
    %v1801 = vunpack.c.l.b16 %v445
    %v1802 = vunpack.c.h.b16 %v445
    %v1803 = vunpack.c.l.b16 %v446
    %v1804 = vunpack.c.h.b16 %v446
    %v1805 = vunpack.c.l.b16 %v447
    %v1806 = vunpack.c.h.b16 %v447
    %v1807 = vunpack.c.l.b16 %v448
    %v1808 = vunpack.c.h.b16 %v448
    %v1809 = vunpack.c.l.b16 %v449
    %v1810 = vunpack.c.h.b16 %v449
    %v1811 = vunpack.c.l.b16 %v450
    %v1812 = vunpack.c.h.b16 %v450
    %v1813 = vunpack.c.l.b16 %v451
    %v1814 = vunpack.c.h.b16 %v451
    %v1815 = vunpack.c.l.b16 %v452
    %v1816 = vunpack.c.h.b16 %v452
    %v1817 = vunpack.c.l.b16 %v453
    %v1818 = vunpack.c.h.b16 %v453
    %v1819 = vunpack.c.l.b16 %v454
    %v1820 = vunpack.c.h.b16 %v454
    %v1821 = vunpack.c.l.b16 %v455
    %v1822 = vunpack.c.h.b16 %v455
    %v1823 = vunpack.c.l.b16 %v456
    %v1824 = vunpack.c.h.b16 %v456
    %v1825 = vunpack.c.l.b16 %v457
    %v1826 = vunpack.c.h.b16 %v457
    %v1827 = vunpack.c.l.b16 %v458
    %v1828 = vunpack.c.h.b16 %v458
    %v1829 = vunpack.c.l.b16 %v459
    %v1830 = vunpack.c.h.b16 %v459
    %v1831 = vunpack.c.l.b16 %v460
    %v1832 = vunpack.c.h.b16 %v460
    %v1833 = vunpack.c.l.b16 %v461
    %v1834 = vunpack.c.h.b16 %v461
    %v1835 = vunpack.c.l.b16 %v462
    %v1836 = vunpack.c.h.b16 %v462
    %v1837 = vunpack.c.l.b16 %v463
    %v1838 = vunpack.c.h.b16 %v463
    %v1839 = vunpack.c.l.b16 %v464
    %v1840 = vunpack.c.h.b16 %v464
    %v1841 = vunpack.c.l.b16 %v465
    %v1842 = vunpack.c.h.b16 %v465
    %v1843 = vunpack.c.l.b16 %v466
    %v1844 = vunpack.c.h.b16 %v466
    %v1845 = vunpack.c.l.b16 %v467
    %v1846 = vunpack.c.h.b16 %v467
    %v1847 = vunpack.c.l.b16 %v468
    %v1848 = vunpack.c.h.b16 %v468
    %v1849 = vunpack.c.l.b16 %v469
    %v1850 = vunpack.c.h.b16 %v469
    %v1851 = vunpack.c.l.b16 %v470
    %v1852 = vunpack.c.h.b16 %v470
    %v1853 = vunpack.c.l.b16 %v471
    %v1854 = vunpack.c.h.b16 %v471
    %v1855 = vunpack.c.l.b16 %v472
    %v1856 = vunpack.c.h.b16 %v472
    %v1857 = vunpack.c.l.b16 %v473
    %v1858 = vunpack.c.h.b16 %v473
    %v1859 = vunpack.c.l.b16 %v474
    %v1860 = vunpack.c.h.b16 %v474
    %v1861 = vunpack.c.l.b16 %v475
    %v1862 = vunpack.c.h.b16 %v475
    %v1863 = vunpack.c.l.b16 %v476
    %v1864 = vunpack.c.h.b16 %v476
    %v1865 = vunpack.c.l.b16 %v477
    %v1866 = vunpack.c.h.b16 %v477
    %v1867 = vunpack.c.l.b16 %v478
    %v1868 = vunpack.c.h.b16 %v478
    %v1869 = vunpack.c.l.b16 %v479
    %v1870 = vunpack.c.h.b16 %v479
    %v1871 = vunpack.c.l.b16 %v480
    %v1872 = vunpack.c.h.b16 %v480
    %v1873 = vunpack.c.l.b16 %v481
    %v1874 = vunpack.c.h.b16 %v481
    %v1875 = vunpack.c.l.b16 %v482
    %v1876 = vunpack.c.h.b16 %v482
    %v1877 = vunpack.c.l.b16 %v483
    %v1878 = vunpack.c.h.b16 %v483
    %v1879 = vunpack.c.l.b16 %v484
    %v1880 = vunpack.c.h.b16 %v484
    %v1881 = vunpack.c.l.b16 %v485
    %v1882 = vunpack.c.h.b16 %v485
    %v1883 = vunpack.c.l.b16 %v486
    %v1884 = vunpack.c.h.b16 %v486
    %v1885 = vunpack.c.l.b16 %v487
    %v1886 = vunpack.c.h.b16 %v487
    %v1887 = vunpack.c.l.b16 %v488
    %v1888 = vunpack.c.h.b16 %v488
    %v1889 = vunpack.c.l.b16 %v489
    %v1890 = vunpack.c.h.b16 %v489
    %v1891 = vunpack.c.l.b16 %v490
    %v1892 = vunpack.c.h.b16 %v490
    %v1893 = vunpack.c.l.b16 %v491
    %v1894 = vunpack.c.h.b16 %v491
    %v1895 = vunpack.c.l.b16 %v492
    %v1896 = vunpack.c.h.b16 %v492
    %v1897 = vunpack.c.l.b16 %v493
    %v1898 = vunpack.c.h.b16 %v493
    %v1899 = vunpack.c.l.b16 %v494
    %v1900 = vunpack.c.h.b16 %v494
    %v1901 = vunpack.c.l.b16 %v495
    %v1902 = vunpack.c.h.b16 %v495
    %v1903 = vunpack.c.l.b16 %v496
    %v1904 = vunpack.c.h.b16 %v496
    %v1905 = vunpack.c.l.b16 %v497
    %v1906 = vunpack.c.h.b16 %v497
    %v1907 = vunpack.c.l.b16 %v498
    %v1908 = vunpack.c.h.b16 %v498
    %v1909 = vunpack.c.l.b16 %v499
    %v1910 = vunpack.c.h.b16 %v499
    %v1911 = vunpack.c.l.b16 %v500
    %v1912 = vunpack.c.h.b16 %v500
    %v1913 = vunpack.c.l.b16 %v501
    %v1914 = vunpack.c.h.b16 %v501
    %v1915 = vunpack.c.l.b16 %v502
    %v1916 = vunpack.c.h.b16 %v502
    %v1917 = vunpack.c.l.b16 %v503
    %v1918 = vunpack.c.h.b16 %v503
    %v1919 = vunpack.c.l.b16 %v504
    %v1920 = vunpack.c.h.b16 %v504
    %v1921 = vunpack.c.l.b16 %v505
    %v1922 = vunpack.c.h.b16 %v505
    %v1923 = vunpack.c.l.b16 %v506
    %v1924 = vunpack.c.h.b16 %v506
    %v1925 = vunpack.c.l.b16 %v507
    %v1926 = vunpack.c.h.b16 %v507
    %v1927 = vunpack.c.l.b16 %v508
    %v1928 = vunpack.c.h.b16 %v508
    %v1929 = vunpack.c.l.b16 %v509
    %v1930 = vunpack.c.h.b16 %v509
    %v1931 = vunpack.c.l.b16 %v510
    %v1932 = vunpack.c.h.b16 %v510
    %v1933 = vunpack.c.l.b16 %v511
    %v1934 = vunpack.c.h.b16 %v511
    %v1935 = vunpack.c.l.b16 %v512
    %v1936 = vunpack.c.h.b16 %v512
    %v1937 = vunpack.c.l.b16 %v513
    %v1938 = vunpack.c.h.b16 %v513
    %v1939 = vunpack.c.l.b16 %v514
    %v1940 = vunpack.c.h.b16 %v514
    %v1941 = vunpack.c.l.b16 %v515
    %v1942 = vunpack.c.h.b16 %v515
    %v1943 = vunpack.c.l.b16 %v516
    %v1944 = vunpack.c.h.b16 %v516
    %v1945 = vunpack.c.l.b16 %v517
    %v1946 = vunpack.c.h.b16 %v517
    %v1947 = vunpack.c.l.b16 %v518
    %v1948 = vunpack.c.h.b16 %v518
    %v1949 = vunpack.c.l.b16 %v519
    %v1950 = vunpack.c.h.b16 %v519
    %v1951 = vunpack.c.l.b16 %v520
    %v1952 = vunpack.c.h.b16 %v520
    %v1953 = vunpack.c.l.b16 %v521
    %v1954 = vunpack.c.h.b16 %v521
    %v1955 = vunpack.c.l.b16 %v522
    %v1956 = vunpack.c.h.b16 %v522
    %v1957 = vunpack.c.l.b16 %v523
    %v1958 = vunpack.c.h.b16 %v523
    %v1959 = vunpack.c.l.b16 %v524
    %v1960 = vunpack.c.h.b16 %v524
    %v1961 = vunpack.c.l.b16 %v525
    %v1962 = vunpack.c.h.b16 %v525
    %v1963 = vunpack.c.l.b16 %v526
    %v1964 = vunpack.c.h.b16 %v526
    %v1965 = vunpack.c.l.b16 %v527
    %v1966 = vunpack.c.h.b16 %v527
    %v1967 = vunpack.c.l.b16 %v528
    %v1968 = vunpack.c.h.b16 %v528
    %v1969 = vunpack.c.l.b16 %v529
    %v1970 = vunpack.c.h.b16 %v529
    %v1971 = vunpack.c.l.b16 %v530
    %v1972 = vunpack.c.h.b16 %v530
    %v1973 = vunpack.c.l.b16 %v531
    %v1974 = vunpack.c.h.b16 %v531
    %v1975 = vunpack.c.l.b16 %v532
    %v1976 = vunpack.c.h.b16 %v532
    %v1977 = vunpack.c.l.b16 %v533
    %v1978 = vunpack.c.h.b16 %v533
    %v1979 = vunpack.c.l.b16 %v534
    %v1980 = vunpack.c.h.b16 %v534
    %v1981 = vunpack.c.l.b16 %v535
    %v1982 = vunpack.c.h.b16 %v535
    %v1983 = vunpack.c.l.b16 %v536
    %v1984 = vunpack.c.h.b16 %v536
    %v1985 = vunpack.c.l.b16 %v537
    %v1986 = vunpack.c.h.b16 %v537
    %v1987 = vunpack.c.l.b16 %v538
    %v1988 = vunpack.c.h.b16 %v538
    %v1989 = vunpack.c.l.b16 %v539
    %v1990 = vunpack.c.h.b16 %v539
    %v1991 = vunpack.c.l.b16 %v540
    %v1992 = vunpack.c.h.b16 %v540
    %v1993 = vunpack.c.l.b16 %v541
    %v1994 = vunpack.c.h.b16 %v541
    %v1995 = vunpack.c.l.b16 %v542
    %v1996 = vunpack.c.h.b16 %v542
    %v1997 = vunpack.c.l.b16 %v543
    %v1998 = vunpack.c.h.b16 %v543
    %v1999 = vunpack.c.l.b16 %v544
    %v2000 = vunpack.c.h.b16 %v544
    %v2001 = vunpack.c.l.b16 %v545
    %v2002 = vunpack.c.h.b16 %v545
    %v2003 = vunpack.c.l.b16 %v546
    %v2004 = vunpack.c.h.b16 %v546
    %v2005 = vunpack.c.l.b16 %v547
    %v2006 = vunpack.c.h.b16 %v547
    %v2007 = vunpack.c.l.b16 %v548
    %v2008 = vunpack.c.h.b16 %v548
    %v2009 = vunpack.c.l.b16 %v549
    %v2010 = vunpack.c.h.b16 %v549
    %v2011 = vunpack.c.l.b16 %v550
    %v2012 = vunpack.c.h.b16 %v550
    %v2013 = vunpack.c.l.b16 %v551
    %v2014 = vunpack.c.h.b16 %v551
    %v2015 = vunpack.c.l.b16 %v552
    %v2016 = vunpack.c.h.b16 %v552
    %v2017 = vunpack.c.l.b16 %v553
    %v2018 = vunpack.c.h.b16 %v553
    %v2019 = vunpack.c.l.b16 %v554
    %v2020 = vunpack.c.h.b16 %v554
    %v2021 = vunpack.c.l.b16 %v555
    %v2022 = vunpack.c.h.b16 %v555
    %v2023 = vunpack.c.l.b16 %v556
    %v2024 = vunpack.c.h.b16 %v556
    %v2025 = vunpack.c.l.b16 %v557
    %v2026 = vunpack.c.h.b16 %v557
    %v2027 = vunpack.c.l.b16 %v558
    %v2028 = vunpack.c.h.b16 %v558
    %v2029 = vunpack.c.l.b16 %v559
    %v2030 = vunpack.c.h.b16 %v559
    %v2031 = vunpack.c.l.b16 %v560
    %v2032 = vunpack.c.h.b16 %v560
    %v2033 = vunpack.c.l.b16 %v561
    %v2034 = vunpack.c.h.b16 %v561
    %v2035 = vunpack.c.l.b16 %v562
    %v2036 = vunpack.c.h.b16 %v562
    %v2037 = vunpack.c.l.b16 %v563
    %v2038 = vunpack.c.h.b16 %v563
    %v2039 = vunpack.c.l.b16 %v564
    %v2040 = vunpack.c.h.b16 %v564
    %v2041 = vunpack.c.l.b16 %v565
    %v2042 = vunpack.c.h.b16 %v565
    %v2043 = vunpack.c.l.b16 %v566
    %v2044 = vunpack.c.h.b16 %v566
    %v2045 = vunpack.c.l.b16 %v567
    %v2046 = vunpack.c.h.b16 %v567
    %v2047 = vunpack.c.l.b16 %v568
    %v2048 = vunpack.c.h.b16 %v568
    %v2049 = vunpack.c.l.b16 %v569
    %v2050 = vunpack.c.h.b16 %v569
    %v2051 = vunpack.c.l.b16 %v570
    %v2052 = vunpack.c.h.b16 %v570
    %v2053 = vunpack.c.l.b16 %v571
    %v2054 = vunpack.c.h.b16 %v571
    %v2055 = vunpack.c.l.b16 %v572
    %v2056 = vunpack.c.h.b16 %v572
    %v2057 = vunpack.c.l.b16 %v573
    %v2058 = vunpack.c.h.b16 %v573
    %v2059 = vunpack.c.l.b16 %v574
    %v2060 = vunpack.c.h.b16 %v574
    %v2061 = vunpack.c.l.b16 %v575
    %v2062 = vunpack.c.h.b16 %v575
    %v2063 = vunpack.c.l.b16 %v576
    %v2064 = vunpack.c.h.b16 %v576
    %v2065 = vunpack.c.l.b16 %v577
    %v2066 = vunpack.c.h.b16 %v577
    %v2067 = vunpack.c.l.b16 %v578
    %v2068 = vunpack.c.h.b16 %v578
    %v2069 = vunpack.c.l.b16 %v579
    %v2070 = vunpack.c.h.b16 %v579
    %v2071 = vunpack.c.l.b16 %v580
    %v2072 = vunpack.c.h.b16 %v580
    %v2073 = vunpack.c.l.b16 %v581
    %v2074 = vunpack.c.h.b16 %v581
    %v2075 = vunpack.c.l.b16 %v582
    %v2076 = vunpack.c.h.b16 %v582
    %v2077 = vunpack.c.l.b16 %v583
    %v2078 = vunpack.c.h.b16 %v583
    %v2079 = vunpack.c.l.b16 %v584
    %v2080 = vunpack.c.h.b16 %v584
    %v2081 = vunpack.c.l.b16 %v585
    %v2082 = vunpack.c.h.b16 %v585
    %v2083 = vunpack.c.l.b16 %v586
    %v2084 = vunpack.c.h.b16 %v586
    %v2085 = vunpack.c.l.b16 %v587
    %v2086 = vunpack.c.h.b16 %v587
    %v2087 = vunpack.c.l.b16 %v588
    %v2088 = vunpack.c.h.b16 %v588
    %v2089 = vunpack.c.l.b16 %v589
    %v2090 = vunpack.c.h.b16 %v589
    %v2091 = vunpack.c.l.b16 %v590
    %v2092 = vunpack.c.h.b16 %v590
    %v2093 = vunpack.c.l.b16 %v591
    %v2094 = vunpack.c.h.b16 %v591
    %v2095 = vunpack.c.l.b16 %v592
    %v2096 = vunpack.c.h.b16 %v592
    %v2097 = vunpack.c.l.b16 %v593
    %v2098 = vunpack.c.h.b16 %v593
    %v2099 = vunpack.c.l.b16 %v594
    %v2100 = vunpack.c.h.b16 %v594
    %v2101 = vunpack.c.l.b16 %v595
    %v2102 = vunpack.c.h.b16 %v595
    %v2103 = vunpack.c.l.b16 %v596
    %v2104 = vunpack.c.h.b16 %v596
    %v2105 = vunpack.c.l.b16 %v597
    %v2106 = vunpack.c.h.b16 %v597
    %v2107 = vunpack.c.l.b16 %v598
    %v2108 = vunpack.c.h.b16 %v598
    %v2109 = vunpack.c.l.b16 %v599
    %v2110 = vunpack.c.h.b16 %v599
    %v2111 = vunpack.c.l.b16 %v600
    %v2112 = vunpack.c.h.b16 %v600
    %v2113 = vunpack.c.l.b16 %v601
    %v2114 = vunpack.c.h.b16 %v601
    %v2115 = vunpack.c.l.b16 %v602
    %v2116 = vunpack.c.h.b16 %v602
    %v2117 = vunpack.c.l.b16 %v603
    %v2118 = vunpack.c.h.b16 %v603
    %v2119 = vunpack.c.l.b16 %v604
    %v2120 = vunpack.c.h.b16 %v604
    %v2121 = vunpack.c.l.b16 %v605
    %v2122 = vunpack.c.h.b16 %v605
    %v2123 = vunpack.c.l.b16 %v606
    %v2124 = vunpack.c.h.b16 %v606
    %v2125 = vunpack.c.l.b16 %v607
    %v2126 = vunpack.c.h.b16 %v607
    %v2127 = vunpack.c.l.b16 %v608
    %v2128 = vunpack.c.h.b16 %v608
    %v2129 = vunpack.c.l.b16 %v609
    %v2130 = vunpack.c.h.b16 %v609
    %v2131 = vunpack.c.l.b16 %v610
    %v2132 = vunpack.c.h.b16 %v610
    %v2133 = vunpack.c.l.b16 %v611
    %v2134 = vunpack.c.h.b16 %v611
    %v2135 = vunpack.c.l.b16 %v612
    %v2136 = vunpack.c.h.b16 %v612
    %v2137 = vunpack.c.l.b16 %v613
    %v2138 = vunpack.c.h.b16 %v613
    %v2139 = vunpack.c.l.b16 %v614
    %v2140 = vunpack.c.h.b16 %v614
    %v2141 = vunpack.c.l.b16 %v615
    %v2142 = vunpack.c.h.b16 %v615
    %v2143 = vunpack.c.l.b16 %v616
    %v2144 = vunpack.c.h.b16 %v616
    %v2145 = vunpack.c.l.b16 %v617
    %v2146 = vunpack.c.h.b16 %v617
    %v2147 = vunpack.c.l.b16 %v618
    %v2148 = vunpack.c.h.b16 %v618
    %v2149 = vunpack.c.l.b16 %v619
    %v2150 = vunpack.c.h.b16 %v619
    %v2151 = vunpack.c.l.b16 %v620
    %v2152 = vunpack.c.h.b16 %v620
    %v2153 = vunpack.c.l.b16 %v621
    %v2154 = vunpack.c.h.b16 %v621
    %v2155 = vunpack.c.l.b16 %v622
    %v2156 = vunpack.c.h.b16 %v622
    %v2157 = vunpack.c.l.b16 %v623
    %v2158 = vunpack.c.h.b16 %v623
    %v2159 = vunpack.c.l.b16 %v624
    %v2160 = vunpack.c.h.b16 %v624
    %v2161 = vpack.c.b16 %v1141, %v1137
    %v2162 = vpack.c.b16 %v1142, %v1138
    %v2163 = vpack.c.b16 %v1143, %v1139
    %v2164 = vpack.c.b16 %v1144, %v1140
    %v2165 = vpack.c.b16 %v1149, %v1145
    %v2166 = vpack.c.b16 %v1150, %v1146
    %v2167 = vpack.c.b16 %v1151, %v1147
    %v2168 = vpack.c.b16 %v1152, %v1148
    %v2169 = vpack.c.b16 %v1157, %v1153
    %v2170 = vpack.c.b16 %v1158, %v1154
    %v2171 = vpack.c.b16 %v1159, %v1155
    %v2172 = vpack.c.b16 %v1160, %v1156
    %v2173 = vpack.c.b16 %v1165, %v1161
    %v2174 = vpack.c.b16 %v1166, %v1162
    %v2175 = vpack.c.b16 %v1167, %v1163
    %v2176 = vpack.c.b16 %v1168, %v1164
    %v2177 = vpack.c.b16 %v1173, %v1169
    %v2178 = vpack.c.b16 %v1174, %v1170
    %v2179 = vpack.c.b16 %v1175, %v1171
    %v2180 = vpack.c.b16 %v1176, %v1172
    %v2181 = vpack.c.b16 %v1181, %v1177
    %v2182 = vpack.c.b16 %v1182, %v1178
    %v2183 = vpack.c.b16 %v1183, %v1179
    %v2184 = vpack.c.b16 %v1184, %v1180
    %v2185 = vpack.c.b16 %v1189, %v1185
    %v2186 = vpack.c.b16 %v1190, %v1186
    %v2187 = vpack.c.b16 %v1191, %v1187
    %v2188 = vpack.c.b16 %v1192, %v1188
    %v2189 = vpack.c.b16 %v1197, %v1193
    %v2190 = vpack.c.b16 %v1198, %v1194
    %v2191 = vpack.c.b16 %v1199, %v1195
    %v2192 = vpack.c.b16 %v1200, %v1196
    %v2193 = vpack.c.b16 %v1205, %v1201
    %v2194 = vpack.c.b16 %v1206, %v1202
    %v2195 = vpack.c.b16 %v1207, %v1203
    %v2196 = vpack.c.b16 %v1208, %v1204
    %v2197 = vpack.c.b16 %v1213, %v1209
    %v2198 = vpack.c.b16 %v1214, %v1210
    %v2199 = vpack.c.b16 %v1215, %v1211
    %v2200 = vpack.c.b16 %v1216, %v1212
    %v2201 = vpack.c.b16 %v1221, %v1217
    %v2202 = vpack.c.b16 %v1222, %v1218
    %v2203 = vpack.c.b16 %v1223, %v1219
    %v2204 = vpack.c.b16 %v1224, %v1220
    %v2205 = vpack.c.b16 %v1229, %v1225
    %v2206 = vpack.c.b16 %v1230, %v1226
    %v2207 = vpack.c.b16 %v1231, %v1227
    %v2208 = vpack.c.b16 %v1232, %v1228
    %v2209 = vpack.c.b16 %v1237, %v1233
    %v2210 = vpack.c.b16 %v1238, %v1234
    %v2211 = vpack.c.b16 %v1239, %v1235
    %v2212 = vpack.c.b16 %v1240, %v1236
    %v2213 = vpack.c.b16 %v1245, %v1241
    %v2214 = vpack.c.b16 %v1246, %v1242
    %v2215 = vpack.c.b16 %v1247, %v1243
    %v2216 = vpack.c.b16 %v1248, %v1244
    %v2217 = vpack.c.b16 %v1253, %v1249
    %v2218 = vpack.c.b16 %v1254, %v1250
    %v2219 = vpack.c.b16 %v1255, %v1251
    %v2220 = vpack.c.b16 %v1256, %v1252
    %v2221 = vpack.c.b16 %v1261, %v1257
    %v2222 = vpack.c.b16 %v1262, %v1258
    %v2223 = vpack.c.b16 %v1263, %v1259
    %v2224 = vpack.c.b16 %v1264, %v1260
    %v2225 = vpack.c.b16 %v1269, %v1265
    %v2226 = vpack.c.b16 %v1270, %v1266
    %v2227 = vpack.c.b16 %v1271, %v1267
    %v2228 = vpack.c.b16 %v1272, %v1268
    %v2229 = vpack.c.b16 %v1277, %v1273
    %v2230 = vpack.c.b16 %v1278, %v1274
    %v2231 = vpack.c.b16 %v1279, %v1275
    %v2232 = vpack.c.b16 %v1280, %v1276
    %v2233 = vpack.c.b16 %v1285, %v1281
    %v2234 = vpack.c.b16 %v1286, %v1282
    %v2235 = vpack.c.b16 %v1287, %v1283
    %v2236 = vpack.c.b16 %v1288, %v1284
    %v2237 = vpack.c.b16 %v1293, %v1289
    %v2238 = vpack.c.b16 %v1294, %v1290
    %v2239 = vpack.c.b16 %v1295, %v1291
    %v2240 = vpack.c.b16 %v1296, %v1292
    %v2241 = vpack.c.b16 %v1301, %v1297
    %v2242 = vpack.c.b16 %v1302, %v1298
    %v2243 = vpack.c.b16 %v1303, %v1299
    %v2244 = vpack.c.b16 %v1304, %v1300
    %v2245 = vpack.c.b16 %v1309, %v1305
    %v2246 = vpack.c.b16 %v1310, %v1306
    %v2247 = vpack.c.b16 %v1311, %v1307
    %v2248 = vpack.c.b16 %v1312, %v1308
    %v2249 = vpack.c.b16 %v1317, %v1313
    %v2250 = vpack.c.b16 %v1318, %v1314
    %v2251 = vpack.c.b16 %v1319, %v1315
    %v2252 = vpack.c.b16 %v1320, %v1316
    %v2253 = vpack.c.b16 %v1325, %v1321
    %v2254 = vpack.c.b16 %v1326, %v1322
    %v2255 = vpack.c.b16 %v1327, %v1323
    %v2256 = vpack.c.b16 %v1328, %v1324
    %v2257 = vpack.c.b16 %v1333, %v1329
    %v2258 = vpack.c.b16 %v1334, %v1330
    %v2259 = vpack.c.b16 %v1335, %v1331
    %v2260 = vpack.c.b16 %v1336, %v1332
    %v2261 = vpack.c.b16 %v1341, %v1337
    %v2262 = vpack.c.b16 %v1342, %v1338
    %v2263 = vpack.c.b16 %v1343, %v1339
    %v2264 = vpack.c.b16 %v1344, %v1340
    %v2265 = vpack.c.b16 %v1349, %v1345
    %v2266 = vpack.c.b16 %v1350, %v1346
    %v2267 = vpack.c.b16 %v1351, %v1347
    %v2268 = vpack.c.b16 %v1352, %v1348
    %v2269 = vpack.c.b16 %v1357, %v1353
    %v2270 = vpack.c.b16 %v1358, %v1354
    %v2271 = vpack.c.b16 %v1359, %v1355
    %v2272 = vpack.c.b16 %v1360, %v1356
    %v2273 = vpack.c.b16 %v1365, %v1361
    %v2274 = vpack.c.b16 %v1366, %v1362
    %v2275 = vpack.c.b16 %v1367, %v1363
    %v2276 = vpack.c.b16 %v1368, %v1364
    %v2277 = vpack.c.b16 %v1373, %v1369
    %v2278 = vpack.c.b16 %v1374, %v1370
    %v2279 = vpack.c.b16 %v1375, %v1371
    %v2280 = vpack.c.b16 %v1376, %v1372
    %v2281 = vpack.c.b16 %v1381, %v1377
    %v2282 = vpack.c.b16 %v1382, %v1378
    %v2283 = vpack.c.b16 %v1383, %v1379
    %v2284 = vpack.c.b16 %v1384, %v1380
    %v2285 = vpack.c.b16 %v1389, %v1385
    %v2286 = vpack.c.b16 %v1390, %v1386
    %v2287 = vpack.c.b16 %v1391, %v1387
    %v2288 = vpack.c.b16 %v1392, %v1388
    %v2289 = vpack.c.b16 %v1397, %v1393
    %v2290 = vpack.c.b16 %v1398, %v1394
    %v2291 = vpack.c.b16 %v1399, %v1395
    %v2292 = vpack.c.b16 %v1400, %v1396
    %v2293 = vpack.c.b16 %v1405, %v1401
    %v2294 = vpack.c.b16 %v1406, %v1402
    %v2295 = vpack.c.b16 %v1407, %v1403
    %v2296 = vpack.c.b16 %v1408, %v1404
    %v2297 = vpack.c.b16 %v1413, %v1409
    %v2298 = vpack.c.b16 %v1414, %v1410
    %v2299 = vpack.c.b16 %v1415, %v1411
    %v2300 = vpack.c.b16 %v1416, %v1412
    %v2301 = vpack.c.b16 %v1421, %v1417
    %v2302 = vpack.c.b16 %v1422, %v1418
    %v2303 = vpack.c.b16 %v1423, %v1419
    %v2304 = vpack.c.b16 %v1424, %v1420
    %v2305 = vpack.c.b16 %v1429, %v1425
    %v2306 = vpack.c.b16 %v1430, %v1426
    %v2307 = vpack.c.b16 %v1431, %v1427
    %v2308 = vpack.c.b16 %v1432, %v1428
    %v2309 = vpack.c.b16 %v1437, %v1433
    %v2310 = vpack.c.b16 %v1438, %v1434
    %v2311 = vpack.c.b16 %v1439, %v1435
    %v2312 = vpack.c.b16 %v1440, %v1436
    %v2313 = vpack.c.b16 %v1445, %v1441
    %v2314 = vpack.c.b16 %v1446, %v1442
    %v2315 = vpack.c.b16 %v1447, %v1443
    %v2316 = vpack.c.b16 %v1448, %v1444
    %v2317 = vpack.c.b16 %v1453, %v1449
    %v2318 = vpack.c.b16 %v1454, %v1450
    %v2319 = vpack.c.b16 %v1455, %v1451
    %v2320 = vpack.c.b16 %v1456, %v1452
    %v2321 = vpack.c.b16 %v1461, %v1457
    %v2322 = vpack.c.b16 %v1462, %v1458
    %v2323 = vpack.c.b16 %v1463, %v1459
    %v2324 = vpack.c.b16 %v1464, %v1460
    %v2325 = vpack.c.b16 %v1469, %v1465
    %v2326 = vpack.c.b16 %v1470, %v1466
    %v2327 = vpack.c.b16 %v1471, %v1467
    %v2328 = vpack.c.b16 %v1472, %v1468
    %v2329 = vpack.c.b16 %v1477, %v1473
    %v2330 = vpack.c.b16 %v1478, %v1474
    %v2331 = vpack.c.b16 %v1479, %v1475
    %v2332 = vpack.c.b16 %v1480, %v1476
    %v2333 = vpack.c.b16 %v1485, %v1481
    %v2334 = vpack.c.b16 %v1486, %v1482
    %v2335 = vpack.c.b16 %v1487, %v1483
    %v2336 = vpack.c.b16 %v1488, %v1484
    %v2337 = vpack.c.b16 %v1493, %v1489
    %v2338 = vpack.c.b16 %v1494, %v1490
    %v2339 = vpack.c.b16 %v1495, %v1491
    %v2340 = vpack.c.b16 %v1496, %v1492
    %v2341 = vpack.c.b16 %v1501, %v1497
    %v2342 = vpack.c.b16 %v1502, %v1498
    %v2343 = vpack.c.b16 %v1503, %v1499
    %v2344 = vpack.c.b16 %v1504, %v1500
    %v2345 = vpack.c.b16 %v1509, %v1505
    %v2346 = vpack.c.b16 %v1510, %v1506
    %v2347 = vpack.c.b16 %v1511, %v1507
    %v2348 = vpack.c.b16 %v1512, %v1508
    %v2349 = vpack.c.b16 %v1517, %v1513
    %v2350 = vpack.c.b16 %v1518, %v1514
    %v2351 = vpack.c.b16 %v1519, %v1515
    %v2352 = vpack.c.b16 %v1520, %v1516
    %v2353 = vpack.c.b16 %v1525, %v1521
    %v2354 = vpack.c.b16 %v1526, %v1522
    %v2355 = vpack.c.b16 %v1527, %v1523
    %v2356 = vpack.c.b16 %v1528, %v1524
    %v2357 = vpack.c.b16 %v1533, %v1529
    %v2358 = vpack.c.b16 %v1534, %v1530
    %v2359 = vpack.c.b16 %v1535, %v1531
    %v2360 = vpack.c.b16 %v1536, %v1532
    %v2361 = vpack.c.b16 %v1541, %v1537
    %v2362 = vpack.c.b16 %v1542, %v1538
    %v2363 = vpack.c.b16 %v1543, %v1539
    %v2364 = vpack.c.b16 %v1544, %v1540
    %v2365 = vpack.c.b16 %v1549, %v1545
    %v2366 = vpack.c.b16 %v1550, %v1546
    %v2367 = vpack.c.b16 %v1551, %v1547
    %v2368 = vpack.c.b16 %v1552, %v1548
    %v2369 = vpack.c.b16 %v1557, %v1553
    %v2370 = vpack.c.b16 %v1558, %v1554
    %v2371 = vpack.c.b16 %v1559, %v1555
    %v2372 = vpack.c.b16 %v1560, %v1556
    %v2373 = vpack.c.b16 %v1565, %v1561
    %v2374 = vpack.c.b16 %v1566, %v1562
    %v2375 = vpack.c.b16 %v1567, %v1563
    %v2376 = vpack.c.b16 %v1568, %v1564
    %v2377 = vpack.c.b16 %v1573, %v1569
    %v2378 = vpack.c.b16 %v1574, %v1570
    %v2379 = vpack.c.b16 %v1575, %v1571
    %v2380 = vpack.c.b16 %v1576, %v1572
    %v2381 = vpack.c.b16 %v1581, %v1577
    %v2382 = vpack.c.b16 %v1582, %v1578
    %v2383 = vpack.c.b16 %v1583, %v1579
    %v2384 = vpack.c.b16 %v1584, %v1580
    %v2385 = vpack.c.b16 %v1589, %v1585
    %v2386 = vpack.c.b16 %v1590, %v1586
    %v2387 = vpack.c.b16 %v1591, %v1587
    %v2388 = vpack.c.b16 %v1592, %v1588
    %v2389 = vpack.c.b16 %v1597, %v1593
    %v2390 = vpack.c.b16 %v1598, %v1594
    %v2391 = vpack.c.b16 %v1599, %v1595
    %v2392 = vpack.c.b16 %v1600, %v1596
    %v2393 = vpack.c.b16 %v1605, %v1601
    %v2394 = vpack.c.b16 %v1606, %v1602
    %v2395 = vpack.c.b16 %v1607, %v1603
    %v2396 = vpack.c.b16 %v1608, %v1604
    %v2397 = vpack.c.b16 %v1613, %v1609
    %v2398 = vpack.c.b16 %v1614, %v1610
    %v2399 = vpack.c.b16 %v1615, %v1611
    %v2400 = vpack.c.b16 %v1616, %v1612
    %v2401 = vpack.c.b16 %v1621, %v1617
    %v2402 = vpack.c.b16 %v1622, %v1618
    %v2403 = vpack.c.b16 %v1623, %v1619
    %v2404 = vpack.c.b16 %v1624, %v1620
    %v2405 = vpack.c.b16 %v1629, %v1625
    %v2406 = vpack.c.b16 %v1630, %v1626
    %v2407 = vpack.c.b16 %v1631, %v1627
    %v2408 = vpack.c.b16 %v1632, %v1628
    %v2409 = vpack.c.b16 %v1637, %v1633
    %v2410 = vpack.c.b16 %v1638, %v1634
    %v2411 = vpack.c.b16 %v1639, %v1635
    %v2412 = vpack.c.b16 %v1640, %v1636
    %v2413 = vpack.c.b16 %v1645, %v1641
    %v2414 = vpack.c.b16 %v1646, %v1642
    %v2415 = vpack.c.b16 %v1647, %v1643
    %v2416 = vpack.c.b16 %v1648, %v1644
    %v2417 = vpack.c.b16 %v1653, %v1649
    %v2418 = vpack.c.b16 %v1654, %v1650
    %v2419 = vpack.c.b16 %v1655, %v1651
    %v2420 = vpack.c.b16 %v1656, %v1652
    %v2421 = vpack.c.b16 %v1661, %v1657
    %v2422 = vpack.c.b16 %v1662, %v1658
    %v2423 = vpack.c.b16 %v1663, %v1659
    %v2424 = vpack.c.b16 %v1664, %v1660
    %v2425 = vpack.c.b16 %v1669, %v1665
    %v2426 = vpack.c.b16 %v1670, %v1666
    %v2427 = vpack.c.b16 %v1671, %v1667
    %v2428 = vpack.c.b16 %v1672, %v1668
    %v2429 = vpack.c.b16 %v1677, %v1673
    %v2430 = vpack.c.b16 %v1678, %v1674
    %v2431 = vpack.c.b16 %v1679, %v1675
    %v2432 = vpack.c.b16 %v1680, %v1676
    %v2433 = vpack.c.b16 %v1685, %v1681
    %v2434 = vpack.c.b16 %v1686, %v1682
    %v2435 = vpack.c.b16 %v1687, %v1683
    %v2436 = vpack.c.b16 %v1688, %v1684
    %v2437 = vpack.c.b16 %v1693, %v1689
    %v2438 = vpack.c.b16 %v1694, %v1690
    %v2439 = vpack.c.b16 %v1695, %v1691
    %v2440 = vpack.c.b16 %v1696, %v1692
    %v2441 = vpack.c.b16 %v1701, %v1697
    %v2442 = vpack.c.b16 %v1702, %v1698
    %v2443 = vpack.c.b16 %v1703, %v1699
    %v2444 = vpack.c.b16 %v1704, %v1700
    %v2445 = vpack.c.b16 %v1709, %v1705
    %v2446 = vpack.c.b16 %v1710, %v1706
    %v2447 = vpack.c.b16 %v1711, %v1707
    %v2448 = vpack.c.b16 %v1712, %v1708
    %v2449 = vpack.c.b16 %v1717, %v1713
    %v2450 = vpack.c.b16 %v1718, %v1714
    %v2451 = vpack.c.b16 %v1719, %v1715
    %v2452 = vpack.c.b16 %v1720, %v1716
    %v2453 = vpack.c.b16 %v1725, %v1721
    %v2454 = vpack.c.b16 %v1726, %v1722
    %v2455 = vpack.c.b16 %v1727, %v1723
    %v2456 = vpack.c.b16 %v1728, %v1724
    %v2457 = vpack.c.b16 %v1733, %v1729
    %v2458 = vpack.c.b16 %v1734, %v1730
    %v2459 = vpack.c.b16 %v1735, %v1731
    %v2460 = vpack.c.b16 %v1736, %v1732
    %v2461 = vpack.c.b16 %v1741, %v1737
    %v2462 = vpack.c.b16 %v1742, %v1738
    %v2463 = vpack.c.b16 %v1743, %v1739
    %v2464 = vpack.c.b16 %v1744, %v1740
    %v2465 = vpack.c.b16 %v1749, %v1745
    %v2466 = vpack.c.b16 %v1750, %v1746
    %v2467 = vpack.c.b16 %v1751, %v1747
    %v2468 = vpack.c.b16 %v1752, %v1748
    %v2469 = vpack.c.b16 %v1757, %v1753
    %v2470 = vpack.c.b16 %v1758, %v1754
    %v2471 = vpack.c.b16 %v1759, %v1755
    %v2472 = vpack.c.b16 %v1760, %v1756
    %v2473 = vpack.c.b16 %v1765, %v1761
    %v2474 = vpack.c.b16 %v1766, %v1762
    %v2475 = vpack.c.b16 %v1767, %v1763
    %v2476 = vpack.c.b16 %v1768, %v1764
    %v2477 = vpack.c.b16 %v1773, %v1769
    %v2478 = vpack.c.b16 %v1774, %v1770
    %v2479 = vpack.c.b16 %v1775, %v1771
    %v2480 = vpack.c.b16 %v1776, %v1772
    %v2481 = vpack.c.b16 %v1781, %v1777
    %v2482 = vpack.c.b16 %v1782, %v1778
    %v2483 = vpack.c.b16 %v1783, %v1779
    %v2484 = vpack.c.b16 %v1784, %v1780
    %v2485 = vpack.c.b16 %v1789, %v1785
    %v2486 = vpack.c.b16 %v1790, %v1786
    %v2487 = vpack.c.b16 %v1791, %v1787
    %v2488 = vpack.c.b16 %v1792, %v1788
    %v2489 = vpack.c.b16 %v1797, %v1793
    %v2490 = vpack.c.b16 %v1798, %v1794
    %v2491 = vpack.c.b16 %v1799, %v1795
    %v2492 = vpack.c.b16 %v1800, %v1796
    %v2493 = vpack.c.b16 %v1805, %v1801
    %v2494 = vpack.c.b16 %v1806, %v1802
    %v2495 = vpack.c.b16 %v1807, %v1803
    %v2496 = vpack.c.b16 %v1808, %v1804
    %v2497 = vpack.c.b16 %v1813, %v1809
    %v2498 = vpack.c.b16 %v1814, %v1810
    %v2499 = vpack.c.b16 %v1815, %v1811
    %v2500 = vpack.c.b16 %v1816, %v1812
    %v2501 = vpack.c.b16 %v1821, %v1817
    %v2502 = vpack.c.b16 %v1822, %v1818
    %v2503 = vpack.c.b16 %v1823, %v1819
    %v2504 = vpack.c.b16 %v1824, %v1820
    %v2505 = vpack.c.b16 %v1829, %v1825
    %v2506 = vpack.c.b16 %v1830, %v1826
    %v2507 = vpack.c.b16 %v1831, %v1827
    %v2508 = vpack.c.b16 %v1832, %v1828
    %v2509 = vpack.c.b16 %v1837, %v1833
    %v2510 = vpack.c.b16 %v1838, %v1834
    %v2511 = vpack.c.b16 %v1839, %v1835
    %v2512 = vpack.c.b16 %v1840, %v1836
    %v2513 = vpack.c.b16 %v1845, %v1841
    %v2514 = vpack.c.b16 %v1846, %v1842
    %v2515 = vpack.c.b16 %v1847, %v1843
    %v2516 = vpack.c.b16 %v1848, %v1844
    %v2517 = vpack.c.b16 %v1853, %v1849
    %v2518 = vpack.c.b16 %v1854, %v1850
    %v2519 = vpack.c.b16 %v1855, %v1851
    %v2520 = vpack.c.b16 %v1856, %v1852
    %v2521 = vpack.c.b16 %v1861, %v1857
    %v2522 = vpack.c.b16 %v1862, %v1858
    %v2523 = vpack.c.b16 %v1863, %v1859
    %v2524 = vpack.c.b16 %v1864, %v1860
    %v2525 = vpack.c.b16 %v1869, %v1865
    %v2526 = vpack.c.b16 %v1870, %v1866
    %v2527 = vpack.c.b16 %v1871, %v1867
    %v2528 = vpack.c.b16 %v1872, %v1868
    %v2529 = vpack.c.b16 %v1877, %v1873
    %v2530 = vpack.c.b16 %v1878, %v1874
    %v2531 = vpack.c.b16 %v1879, %v1875
    %v2532 = vpack.c.b16 %v1880, %v1876
    %v2533 = vpack.c.b16 %v1885, %v1881
    %v2534 = vpack.c.b16 %v1886, %v1882
    %v2535 = vpack.c.b16 %v1887, %v1883
    %v2536 = vpack.c.b16 %v1888, %v1884
    %v2537 = vpack.c.b16 %v1893, %v1889
    %v2538 = vpack.c.b16 %v1894, %v1890
    %v2539 = vpack.c.b16 %v1895, %v1891
    %v2540 = vpack.c.b16 %v1896, %v1892
    %v2541 = vpack.c.b16 %v1901, %v1897
    %v2542 = vpack.c.b16 %v1902, %v1898
    %v2543 = vpack.c.b16 %v1903, %v1899
    %v2544 = vpack.c.b16 %v1904, %v1900
    %v2545 = vpack.c.b16 %v1909, %v1905
    %v2546 = vpack.c.b16 %v1910, %v1906
    %v2547 = vpack.c.b16 %v1911, %v1907
    %v2548 = vpack.c.b16 %v1912, %v1908
    %v2549 = vpack.c.b16 %v1917, %v1913
    %v2550 = vpack.c.b16 %v1918, %v1914
    %v2551 = vpack.c.b16 %v1919, %v1915
    %v2552 = vpack.c.b16 %v1920, %v1916
    %v2553 = vpack.c.b16 %v1925, %v1921
    %v2554 = vpack.c.b16 %v1926, %v1922
    %v2555 = vpack.c.b16 %v1927, %v1923
    %v2556 = vpack.c.b16 %v1928, %v1924
    %v2557 = vpack.c.b16 %v1933, %v1929
    %v2558 = vpack.c.b16 %v1934, %v1930
    %v2559 = vpack.c.b16 %v1935, %v1931
    %v2560 = vpack.c.b16 %v1936, %v1932
    %v2561 = vpack.c.b16 %v1941, %v1937
    %v2562 = vpack.c.b16 %v1942, %v1938
    %v2563 = vpack.c.b16 %v1943, %v1939
    %v2564 = vpack.c.b16 %v1944, %v1940
    %v2565 = vpack.c.b16 %v1949, %v1945
    %v2566 = vpack.c.b16 %v1950, %v1946
    %v2567 = vpack.c.b16 %v1951, %v1947
    %v2568 = vpack.c.b16 %v1952, %v1948
    %v2569 = vpack.c.b16 %v1957, %v1953
    %v2570 = vpack.c.b16 %v1958, %v1954
    %v2571 = vpack.c.b16 %v1959, %v1955
    %v2572 = vpack.c.b16 %v1960, %v1956
    %v2573 = vpack.c.b16 %v1965, %v1961
    %v2574 = vpack.c.b16 %v1966, %v1962
    %v2575 = vpack.c.b16 %v1967, %v1963
    %v2576 = vpack.c.b16 %v1968, %v1964
    %v2577 = vpack.c.b16 %v1973, %v1969
    %v2578 = vpack.c.b16 %v1974, %v1970
    %v2579 = vpack.c.b16 %v1975, %v1971
    %v2580 = vpack.c.b16 %v1976, %v1972
    %v2581 = vpack.c.b16 %v1981, %v1977
    %v2582 = vpack.c.b16 %v1982, %v1978
    %v2583 = vpack.c.b16 %v1983, %v1979
    %v2584 = vpack.c.b16 %v1984, %v1980
    %v2585 = vpack.c.b16 %v1989, %v1985
    %v2586 = vpack.c.b16 %v1990, %v1986
    %v2587 = vpack.c.b16 %v1991, %v1987
    %v2588 = vpack.c.b16 %v1992, %v1988
    %v2589 = vpack.c.b16 %v1997, %v1993
    %v2590 = vpack.c.b16 %v1998, %v1994
    %v2591 = vpack.c.b16 %v1999, %v1995
    %v2592 = vpack.c.b16 %v2000, %v1996
    %v2593 = vpack.c.b16 %v2005, %v2001
    %v2594 = vpack.c.b16 %v2006, %v2002
    %v2595 = vpack.c.b16 %v2007, %v2003
    %v2596 = vpack.c.b16 %v2008, %v2004
    %v2597 = vpack.c.b16 %v2013, %v2009
    %v2598 = vpack.c.b16 %v2014, %v2010
    %v2599 = vpack.c.b16 %v2015, %v2011
    %v2600 = vpack.c.b16 %v2016, %v2012
    %v2601 = vpack.c.b16 %v2021, %v2017
    %v2602 = vpack.c.b16 %v2022, %v2018
    %v2603 = vpack.c.b16 %v2023, %v2019
    %v2604 = vpack.c.b16 %v2024, %v2020
    %v2605 = vpack.c.b16 %v2029, %v2025
    %v2606 = vpack.c.b16 %v2030, %v2026
    %v2607 = vpack.c.b16 %v2031, %v2027
    %v2608 = vpack.c.b16 %v2032, %v2028
    %v2609 = vpack.c.b16 %v2037, %v2033
    %v2610 = vpack.c.b16 %v2038, %v2034
    %v2611 = vpack.c.b16 %v2039, %v2035
    %v2612 = vpack.c.b16 %v2040, %v2036
    %v2613 = vpack.c.b16 %v2045, %v2041
    %v2614 = vpack.c.b16 %v2046, %v2042
    %v2615 = vpack.c.b16 %v2047, %v2043
    %v2616 = vpack.c.b16 %v2048, %v2044
    %v2617 = vpack.c.b16 %v2053, %v2049
    %v2618 = vpack.c.b16 %v2054, %v2050
    %v2619 = vpack.c.b16 %v2055, %v2051
    %v2620 = vpack.c.b16 %v2056, %v2052
    %v2621 = vpack.c.b16 %v2061, %v2057
    %v2622 = vpack.c.b16 %v2062, %v2058
    %v2623 = vpack.c.b16 %v2063, %v2059
    %v2624 = vpack.c.b16 %v2064, %v2060
    %v2625 = vpack.c.b16 %v2069, %v2065
    %v2626 = vpack.c.b16 %v2070, %v2066
    %v2627 = vpack.c.b16 %v2071, %v2067
    %v2628 = vpack.c.b16 %v2072, %v2068
    %v2629 = vpack.c.b16 %v2077, %v2073
    %v2630 = vpack.c.b16 %v2078, %v2074
    %v2631 = vpack.c.b16 %v2079, %v2075
    %v2632 = vpack.c.b16 %v2080, %v2076
    %v2633 = vpack.c.b16 %v2085, %v2081
    %v2634 = vpack.c.b16 %v2086, %v2082
    %v2635 = vpack.c.b16 %v2087, %v2083
    %v2636 = vpack.c.b16 %v2088, %v2084
    %v2637 = vpack.c.b16 %v2093, %v2089
    %v2638 = vpack.c.b16 %v2094, %v2090
    %v2639 = vpack.c.b16 %v2095, %v2091
    %v2640 = vpack.c.b16 %v2096, %v2092
    %v2641 = vpack.c.b16 %v2101, %v2097
    %v2642 = vpack.c.b16 %v2102, %v2098
    %v2643 = vpack.c.b16 %v2103, %v2099
    %v2644 = vpack.c.b16 %v2104, %v2100
    %v2645 = vpack.c.b16 %v2109, %v2105
    %v2646 = vpack.c.b16 %v2110, %v2106
    %v2647 = vpack.c.b16 %v2111, %v2107
    %v2648 = vpack.c.b16 %v2112, %v2108
    %v2649 = vpack.c.b16 %v2117, %v2113
    %v2650 = vpack.c.b16 %v2118, %v2114
    %v2651 = vpack.c.b16 %v2119, %v2115
    %v2652 = vpack.c.b16 %v2120, %v2116
    %v2653 = vpack.c.b16 %v2125, %v2121
    %v2654 = vpack.c.b16 %v2126, %v2122
    %v2655 = vpack.c.b16 %v2127, %v2123
    %v2656 = vpack.c.b16 %v2128, %v2124
    %v2657 = vpack.c.b16 %v2133, %v2129
    %v2658 = vpack.c.b16 %v2134, %v2130
    %v2659 = vpack.c.b16 %v2135, %v2131
    %v2660 = vpack.c.b16 %v2136, %v2132
    %v2661 = vpack.c.b16 %v2141, %v2137
    %v2662 = vpack.c.b16 %v2142, %v2138
    %v2663 = vpack.c.b16 %v2143, %v2139
    %v2664 = vpack.c.b16 %v2144, %v2140
    %v2665 = vpack.c.b16 %v2149, %v2145
    %v2666 = vpack.c.b16 %v2150, %v2146
    %v2667 = vpack.c.b16 %v2151, %v2147
    %v2668 = vpack.c.b16 %v2152, %v2148
    %v2669 = vpack.c.b16 %v2157, %v2153
    %v2670 = vpack.c.b16 %v2158, %v2154
    %v2671 = vpack.c.b16 %v2159, %v2155
    %v2672 = vpack.c.b16 %v2160, %v2156
    %3185 = vmatpush.bf16.msra.mxu0 %v2189
    %3186 = vmatpush.bf16.msra.mxu0 %v2185
    %3187 = vmatpush.bf16.msra.mxu0 %v2181
    %3188 = vmatpush.bf16.msra.mxu0 %v2177
    %3189 = vmatpush.bf16.msra.mxu0 %v2173
    %3190 = vmatpush.bf16.msra.mxu0 %v2169
    %3191 = vmatpush.bf16.msra.mxu0 %v2165
    %3192 = vmatpush.bf16.msra.mxu0 %v2161
    %3193 = vmatmul.bf16.gmra.mxu0 %v97
    %v3194 = vpop.f32.mrf.mxu0
    %v3195 = vadd.f32 0.0, %v3194
    %v3196 = vpop.f32.mrf.mxu0
    %3197 = vdwg.mxu0
    %3198 = vmatpush.bf16.msra.mxu0 %v2221
    %3199 = vmatpush.bf16.msra.mxu0 %v2217
    %3200 = vmatpush.bf16.msra.mxu0 %v2213
    %3201 = vmatpush.bf16.msra.mxu0 %v2209
    %3202 = vmatpush.bf16.msra.mxu0 %v2205
    %3203 = vmatpush.bf16.msra.mxu0 %v2201
    %3204 = vmatpush.bf16.msra.mxu0 %v2197
    %3205 = vmatpush.bf16.msra.mxu0 %v2193
    %3206 = vmatmul.bf16.gmra.mxu0 %v98
    %v3207 = vpop.f32.mrf.mxu0
    %v3208 = vadd.f32 %v3195, %v3207
    %v3209 = vpop.f32.mrf.mxu0
    %3210 = vdwg.mxu0
    %3211 = vmatpush.bf16.msra.mxu0 %v2253
    %3212 = vmatpush.bf16.msra.mxu0 %v2249
    %3213 = vmatpush.bf16.msra.mxu0 %v2245
    %3214 = vmatpush.bf16.msra.mxu0 %v2241
    %3215 = vmatpush.bf16.msra.mxu0 %v2237
    %3216 = vmatpush.bf16.msra.mxu0 %v2233
    %3217 = vmatpush.bf16.msra.mxu0 %v2229
    %3218 = vmatpush.bf16.msra.mxu0 %v2225
    %3219 = vmatmul.bf16.gmra.mxu0 %v99
    %v3220 = vpop.f32.mrf.mxu0
    %v3221 = vadd.f32 %v3208, %v3220
    %v3222 = vpop.f32.mrf.mxu0
    %3223 = vdwg.mxu0
    %3224 = vmatpush.bf16.msra.mxu0 %v2285
    %3225 = vmatpush.bf16.msra.mxu0 %v2281
    %3226 = vmatpush.bf16.msra.mxu0 %v2277
    %3227 = vmatpush.bf16.msra.mxu0 %v2273
    %3228 = vmatpush.bf16.msra.mxu0 %v2269
    %3229 = vmatpush.bf16.msra.mxu0 %v2265
    %3230 = vmatpush.bf16.msra.mxu0 %v2261
    %3231 = vmatpush.bf16.msra.mxu0 %v2257
    %3232 = vmatmul.bf16.gmra.mxu0 %v100
    %v3233 = vpop.f32.mrf.mxu0
    %v3234 = vadd.f32 %v3221, %v3233
    %v3235 = vpop.f32.mrf.mxu0
    %3236 = vdwg.mxu0
    %3237 = vmatpush.bf16.msra.mxu0 %v2317
    %3238 = vmatpush.bf16.msra.mxu0 %v2313
    %3239 = vmatpush.bf16.msra.mxu0 %v2309
    %3240 = vmatpush.bf16.msra.mxu0 %v2305
    %3241 = vmatpush.bf16.msra.mxu0 %v2301
    %3242 = vmatpush.bf16.msra.mxu0 %v2297
    %3243 = vmatpush.bf16.msra.mxu0 %v2293
    %3244 = vmatpush.bf16.msra.mxu0 %v2289
    %3245 = vmatmul.bf16.gmra.mxu0 %v101
    %v3246 = vpop.f32.mrf.mxu0
    %v3247 = vadd.f32 %v3234, %v3246
    %v3248 = vpop.f32.mrf.mxu0
    %3249 = vdwg.mxu0
    %3250 = vmatpush.bf16.msra.mxu0 %v2349
    %3251 = vmatpush.bf16.msra.mxu0 %v2345
    %3252 = vmatpush.bf16.msra.mxu0 %v2341
    %3253 = vmatpush.bf16.msra.mxu0 %v2337
    %3254 = vmatpush.bf16.msra.mxu0 %v2333
    %3255 = vmatpush.bf16.msra.mxu0 %v2329
    %3256 = vmatpush.bf16.msra.mxu0 %v2325
    %3257 = vmatpush.bf16.msra.mxu0 %v2321
    %3258 = vmatmul.bf16.gmra.mxu0 %v102
    %v3259 = vpop.f32.mrf.mxu0
    %v3260 = vadd.f32 %v3247, %v3259
    %v3261 = vpop.f32.mrf.mxu0
    %3262 = vdwg.mxu0
    %3263 = vmatpush.bf16.msra.mxu0 %v2381
    %3264 = vmatpush.bf16.msra.mxu0 %v2377
    %3265 = vmatpush.bf16.msra.mxu0 %v2373
    %3266 = vmatpush.bf16.msra.mxu0 %v2369
    %3267 = vmatpush.bf16.msra.mxu0 %v2365
    %3268 = vmatpush.bf16.msra.mxu0 %v2361
    %3269 = vmatpush.bf16.msra.mxu0 %v2357
    %3270 = vmatpush.bf16.msra.mxu0 %v2353
    %3271 = vmatmul.bf16.gmra.mxu0 %v103
    %v3272 = vpop.f32.mrf.mxu0
    %v3273 = vadd.f32 %v3260, %v3272
    %v3274 = vpop.f32.mrf.mxu0
    %3275 = vdwg.mxu0
    %3276 = vmatpush.bf16.msra.mxu0 %v2413
    %3277 = vmatpush.bf16.msra.mxu0 %v2409
    %3278 = vmatpush.bf16.msra.mxu0 %v2405
    %3279 = vmatpush.bf16.msra.mxu0 %v2401
    %3280 = vmatpush.bf16.msra.mxu0 %v2397
    %3281 = vmatpush.bf16.msra.mxu0 %v2393
    %3282 = vmatpush.bf16.msra.mxu0 %v2389
    %3283 = vmatpush.bf16.msra.mxu0 %v2385
    %3284 = vmatmul.bf16.gmra.mxu0 %v104
    %v3285 = vpop.f32.mrf.mxu0
    %v3286 = vadd.f32 %v3273, %v3285
    %v3287 = vpop.f32.mrf.mxu0
    %3288 = vdwg.mxu0
    %3289 = vmatpush.bf16.msra.mxu0 %v2445
    %3290 = vmatpush.bf16.msra.mxu0 %v2441
    %3291 = vmatpush.bf16.msra.mxu0 %v2437
    %3292 = vmatpush.bf16.msra.mxu0 %v2433
    %3293 = vmatpush.bf16.msra.mxu0 %v2429
    %3294 = vmatpush.bf16.msra.mxu0 %v2425
    %3295 = vmatpush.bf16.msra.mxu0 %v2421
    %3296 = vmatpush.bf16.msra.mxu0 %v2417
    %3297 = vmatmul.bf16.gmra.mxu0 %v105
    %v3298 = vpop.f32.mrf.mxu0
    %v3299 = vadd.f32 %v3286, %v3298
    %v3300 = vpop.f32.mrf.mxu0
    %3301 = vdwg.mxu0
    %3302 = vmatpush.bf16.msra.mxu0 %v2477
    %3303 = vmatpush.bf16.msra.mxu0 %v2473
    %3304 = vmatpush.bf16.msra.mxu0 %v2469
    %3305 = vmatpush.bf16.msra.mxu0 %v2465
    %3306 = vmatpush.bf16.msra.mxu0 %v2461
    %3307 = vmatpush.bf16.msra.mxu0 %v2457
    %3308 = vmatpush.bf16.msra.mxu0 %v2453
    %3309 = vmatpush.bf16.msra.mxu0 %v2449
    %3310 = vmatmul.bf16.gmra.mxu0 %v106
    %v3311 = vpop.f32.mrf.mxu0
    %v3312 = vadd.f32 %v3299, %v3311
    %v3313 = vpop.f32.mrf.mxu0
    %3314 = vdwg.mxu0
    %3315 = vmatpush.bf16.msra.mxu0 %v2509
    %3316 = vmatpush.bf16.msra.mxu0 %v2505
    %3317 = vmatpush.bf16.msra.mxu0 %v2501
    %3318 = vmatpush.bf16.msra.mxu0 %v2497
    %3319 = vmatpush.bf16.msra.mxu0 %v2493
    %3320 = vmatpush.bf16.msra.mxu0 %v2489
    %3321 = vmatpush.bf16.msra.mxu0 %v2485
    %3322 = vmatpush.bf16.msra.mxu0 %v2481
    %3323 = vmatmul.bf16.gmra.mxu0 %v107
    %v3324 = vpop.f32.mrf.mxu0
    %v3325 = vadd.f32 %v3312, %v3324
    %v3326 = vpop.f32.mrf.mxu0
    %3327 = vdwg.mxu0
    %3328 = vmatpush.bf16.msra.mxu0 %v2541
    %3329 = vmatpush.bf16.msra.mxu0 %v2537
    %3330 = vmatpush.bf16.msra.mxu0 %v2533
    %3331 = vmatpush.bf16.msra.mxu0 %v2529
    %3332 = vmatpush.bf16.msra.mxu0 %v2525
    %3333 = vmatpush.bf16.msra.mxu0 %v2521
    %3334 = vmatpush.bf16.msra.mxu0 %v2517
    %3335 = vmatpush.bf16.msra.mxu0 %v2513
    %3336 = vmatmul.bf16.gmra.mxu0 %v108
    %v3337 = vpop.f32.mrf.mxu0
    %v3338 = vadd.f32 %v3325, %v3337
    %v3339 = vpop.f32.mrf.mxu0
    %3340 = vdwg.mxu0
    %3341 = vmatpush.bf16.msra.mxu0 %v2573
    %3342 = vmatpush.bf16.msra.mxu0 %v2569
    %3343 = vmatpush.bf16.msra.mxu0 %v2565
    %3344 = vmatpush.bf16.msra.mxu0 %v2561
    %3345 = vmatpush.bf16.msra.mxu0 %v2557
    %3346 = vmatpush.bf16.msra.mxu0 %v2553
    %3347 = vmatpush.bf16.msra.mxu0 %v2549
    %3348 = vmatpush.bf16.msra.mxu0 %v2545
    %3349 = vmatmul.bf16.gmra.mxu0 %v109
    %v3350 = vpop.f32.mrf.mxu0
    %v3351 = vadd.f32 %v3338, %v3350
    %v3352 = vpop.f32.mrf.mxu0
    %3353 = vdwg.mxu0
    %3354 = vmatpush.bf16.msra.mxu0 %v2605
    %3355 = vmatpush.bf16.msra.mxu0 %v2601
    %3356 = vmatpush.bf16.msra.mxu0 %v2597
    %3357 = vmatpush.bf16.msra.mxu0 %v2593
    %3358 = vmatpush.bf16.msra.mxu0 %v2589
    %3359 = vmatpush.bf16.msra.mxu0 %v2585
    %3360 = vmatpush.bf16.msra.mxu0 %v2581
    %3361 = vmatpush.bf16.msra.mxu0 %v2577
    %3362 = vmatmul.bf16.gmra.mxu0 %v110
    %v3363 = vpop.f32.mrf.mxu0
    %v3364 = vadd.f32 %v3351, %v3363
    %v3365 = vpop.f32.mrf.mxu0
    %3366 = vdwg.mxu0
    %3367 = vmatpush.bf16.msra.mxu0 %v2637
    %3368 = vmatpush.bf16.msra.mxu0 %v2633
    %3369 = vmatpush.bf16.msra.mxu0 %v2629
    %3370 = vmatpush.bf16.msra.mxu0 %v2625
    %3371 = vmatpush.bf16.msra.mxu0 %v2621
    %3372 = vmatpush.bf16.msra.mxu0 %v2617
    %3373 = vmatpush.bf16.msra.mxu0 %v2613
    %3374 = vmatpush.bf16.msra.mxu0 %v2609
    %3375 = vmatmul.bf16.gmra.mxu0 %v111
    %v3376 = vpop.f32.mrf.mxu0
    %v3377 = vadd.f32 %v3364, %v3376
    %v3378 = vpop.f32.mrf.mxu0
    %3379 = vdwg.mxu0
    %3380 = vmatpush.bf16.msra.mxu0 %v2669
    %3381 = vmatpush.bf16.msra.mxu0 %v2665
    %3382 = vmatpush.bf16.msra.mxu0 %v2661
    %3383 = vmatpush.bf16.msra.mxu0 %v2657
    %3384 = vmatpush.bf16.msra.mxu0 %v2653
    %3385 = vmatpush.bf16.msra.mxu0 %v2649
    %3386 = vmatpush.bf16.msra.mxu0 %v2645
    %3387 = vmatpush.bf16.msra.mxu0 %v2641
    %3388 = vmatmul.bf16.gmra.mxu0 %v112
    %v3389 = vpop.f32.mrf.mxu0
    %v3390 = vadd.f32 %v3377, %v3389
    %v3391 = vpop.f32.mrf.mxu0
    %3392 = vdwg.mxu0
    %3393 = vmatpush.bf16.msra.mxu0 %v2190
    %3394 = vmatpush.bf16.msra.mxu0 %v2186
    %3395 = vmatpush.bf16.msra.mxu0 %v2182
    %3396 = vmatpush.bf16.msra.mxu0 %v2178
    %3397 = vmatpush.bf16.msra.mxu0 %v2174
    %3398 = vmatpush.bf16.msra.mxu0 %v2170
    %3399 = vmatpush.bf16.msra.mxu0 %v2166
    %3400 = vmatpush.bf16.msra.mxu0 %v2162
    %3401 = vmatmul.bf16.gmra.mxu0 %v97
    %v3402 = vpop.f32.mrf.mxu0
    %v3403 = vadd.f32 0.0, %v3402
    %v3404 = vpop.f32.mrf.mxu0
    %3405 = vdwg.mxu0
    %3406 = vmatpush.bf16.msra.mxu0 %v2222
    %3407 = vmatpush.bf16.msra.mxu0 %v2218
    %3408 = vmatpush.bf16.msra.mxu0 %v2214
    %3409 = vmatpush.bf16.msra.mxu0 %v2210
    %3410 = vmatpush.bf16.msra.mxu0 %v2206
    %3411 = vmatpush.bf16.msra.mxu0 %v2202
    %3412 = vmatpush.bf16.msra.mxu0 %v2198
    %3413 = vmatpush.bf16.msra.mxu0 %v2194
    %3414 = vmatmul.bf16.gmra.mxu0 %v98
    %v3415 = vpop.f32.mrf.mxu0
    %v3416 = vadd.f32 %v3403, %v3415
    %v3417 = vpop.f32.mrf.mxu0
    %3418 = vdwg.mxu0
    %3419 = vmatpush.bf16.msra.mxu0 %v2254
    %3420 = vmatpush.bf16.msra.mxu0 %v2250
    %3421 = vmatpush.bf16.msra.mxu0 %v2246
    %3422 = vmatpush.bf16.msra.mxu0 %v2242
    %3423 = vmatpush.bf16.msra.mxu0 %v2238
    %3424 = vmatpush.bf16.msra.mxu0 %v2234
    %3425 = vmatpush.bf16.msra.mxu0 %v2230
    %3426 = vmatpush.bf16.msra.mxu0 %v2226
    %3427 = vmatmul.bf16.gmra.mxu0 %v99
    %v3428 = vpop.f32.mrf.mxu0
    %v3429 = vadd.f32 %v3416, %v3428
    %v3430 = vpop.f32.mrf.mxu0
    %3431 = vdwg.mxu0
    %3432 = vmatpush.bf16.msra.mxu0 %v2286
    %3433 = vmatpush.bf16.msra.mxu0 %v2282
    %3434 = vmatpush.bf16.msra.mxu0 %v2278
    %3435 = vmatpush.bf16.msra.mxu0 %v2274
    %3436 = vmatpush.bf16.msra.mxu0 %v2270
    %3437 = vmatpush.bf16.msra.mxu0 %v2266
    %3438 = vmatpush.bf16.msra.mxu0 %v2262
    %3439 = vmatpush.bf16.msra.mxu0 %v2258
    %3440 = vmatmul.bf16.gmra.mxu0 %v100
    %v3441 = vpop.f32.mrf.mxu0
    %v3442 = vadd.f32 %v3429, %v3441
    %v3443 = vpop.f32.mrf.mxu0
    %3444 = vdwg.mxu0
    %3445 = vmatpush.bf16.msra.mxu0 %v2318
    %3446 = vmatpush.bf16.msra.mxu0 %v2314
    %3447 = vmatpush.bf16.msra.mxu0 %v2310
    %3448 = vmatpush.bf16.msra.mxu0 %v2306
    %3449 = vmatpush.bf16.msra.mxu0 %v2302
    %3450 = vmatpush.bf16.msra.mxu0 %v2298
    %3451 = vmatpush.bf16.msra.mxu0 %v2294
    %3452 = vmatpush.bf16.msra.mxu0 %v2290
    %3453 = vmatmul.bf16.gmra.mxu0 %v101
    %v3454 = vpop.f32.mrf.mxu0
    %v3455 = vadd.f32 %v3442, %v3454
    %v3456 = vpop.f32.mrf.mxu0
    %3457 = vdwg.mxu0
    %3458 = vmatpush.bf16.msra.mxu0 %v2350
    %3459 = vmatpush.bf16.msra.mxu0 %v2346
    %3460 = vmatpush.bf16.msra.mxu0 %v2342
    %3461 = vmatpush.bf16.msra.mxu0 %v2338
    %3462 = vmatpush.bf16.msra.mxu0 %v2334
    %3463 = vmatpush.bf16.msra.mxu0 %v2330
    %3464 = vmatpush.bf16.msra.mxu0 %v2326
    %3465 = vmatpush.bf16.msra.mxu0 %v2322
    %3466 = vmatmul.bf16.gmra.mxu0 %v102
    %v3467 = vpop.f32.mrf.mxu0
    %v3468 = vadd.f32 %v3455, %v3467
    %v3469 = vpop.f32.mrf.mxu0
    %3470 = vdwg.mxu0
    %3471 = vmatpush.bf16.msra.mxu0 %v2382
    %3472 = vmatpush.bf16.msra.mxu0 %v2378
    %3473 = vmatpush.bf16.msra.mxu0 %v2374
    %3474 = vmatpush.bf16.msra.mxu0 %v2370
    %3475 = vmatpush.bf16.msra.mxu0 %v2366
    %3476 = vmatpush.bf16.msra.mxu0 %v2362
    %3477 = vmatpush.bf16.msra.mxu0 %v2358
    %3478 = vmatpush.bf16.msra.mxu0 %v2354
    %3479 = vmatmul.bf16.gmra.mxu0 %v103
    %v3480 = vpop.f32.mrf.mxu0
    %v3481 = vadd.f32 %v3468, %v3480
    %v3482 = vpop.f32.mrf.mxu0
    %3483 = vdwg.mxu0
    %3484 = vmatpush.bf16.msra.mxu0 %v2414
    %3485 = vmatpush.bf16.msra.mxu0 %v2410
    %3486 = vmatpush.bf16.msra.mxu0 %v2406
    %3487 = vmatpush.bf16.msra.mxu0 %v2402
    %3488 = vmatpush.bf16.msra.mxu0 %v2398
    %3489 = vmatpush.bf16.msra.mxu0 %v2394
    %3490 = vmatpush.bf16.msra.mxu0 %v2390
    %3491 = vmatpush.bf16.msra.mxu0 %v2386
    %3492 = vmatmul.bf16.gmra.mxu0 %v104
    %v3493 = vpop.f32.mrf.mxu0
    %v3494 = vadd.f32 %v3481, %v3493
    %v3495 = vpop.f32.mrf.mxu0
    %3496 = vdwg.mxu0
    %3497 = vmatpush.bf16.msra.mxu0 %v2446
    %3498 = vmatpush.bf16.msra.mxu0 %v2442
    %3499 = vmatpush.bf16.msra.mxu0 %v2438
    %3500 = vmatpush.bf16.msra.mxu0 %v2434
    %3501 = vmatpush.bf16.msra.mxu0 %v2430
    %3502 = vmatpush.bf16.msra.mxu0 %v2426
    %3503 = vmatpush.bf16.msra.mxu0 %v2422
    %3504 = vmatpush.bf16.msra.mxu0 %v2418
    %3505 = vmatmul.bf16.gmra.mxu0 %v105
    %v3506 = vpop.f32.mrf.mxu0
    %v3507 = vadd.f32 %v3494, %v3506
    %v3508 = vpop.f32.mrf.mxu0
    %3509 = vdwg.mxu0
    %3510 = vmatpush.bf16.msra.mxu0 %v2478
    %3511 = vmatpush.bf16.msra.mxu0 %v2474
    %3512 = vmatpush.bf16.msra.mxu0 %v2470
    %3513 = vmatpush.bf16.msra.mxu0 %v2466
    %3514 = vmatpush.bf16.msra.mxu0 %v2462
    %3515 = vmatpush.bf16.msra.mxu0 %v2458
    %3516 = vmatpush.bf16.msra.mxu0 %v2454
    %3517 = vmatpush.bf16.msra.mxu0 %v2450
    %3518 = vmatmul.bf16.gmra.mxu0 %v106
    %v3519 = vpop.f32.mrf.mxu0
    %v3520 = vadd.f32 %v3507, %v3519
    %v3521 = vpop.f32.mrf.mxu0
    %3522 = vdwg.mxu0
    %3523 = vmatpush.bf16.msra.mxu0 %v2510
    %3524 = vmatpush.bf16.msra.mxu0 %v2506
    %3525 = vmatpush.bf16.msra.mxu0 %v2502
    %3526 = vmatpush.bf16.msra.mxu0 %v2498
    %3527 = vmatpush.bf16.msra.mxu0 %v2494
    %3528 = vmatpush.bf16.msra.mxu0 %v2490
    %3529 = vmatpush.bf16.msra.mxu0 %v2486
    %3530 = vmatpush.bf16.msra.mxu0 %v2482
    %3531 = vmatmul.bf16.gmra.mxu0 %v107
    %v3532 = vpop.f32.mrf.mxu0
    %v3533 = vadd.f32 %v3520, %v3532
    %v3534 = vpop.f32.mrf.mxu0
    %3535 = vdwg.mxu0
    %3536 = vmatpush.bf16.msra.mxu0 %v2542
    %3537 = vmatpush.bf16.msra.mxu0 %v2538
    %3538 = vmatpush.bf16.msra.mxu0 %v2534
    %3539 = vmatpush.bf16.msra.mxu0 %v2530
    %3540 = vmatpush.bf16.msra.mxu0 %v2526
    %3541 = vmatpush.bf16.msra.mxu0 %v2522
    %3542 = vmatpush.bf16.msra.mxu0 %v2518
    %3543 = vmatpush.bf16.msra.mxu0 %v2514
    %3544 = vmatmul.bf16.gmra.mxu0 %v108
    %v3545 = vpop.f32.mrf.mxu0
    %v3546 = vadd.f32 %v3533, %v3545
    %v3547 = vpop.f32.mrf.mxu0
    %3548 = vdwg.mxu0
    %3549 = vmatpush.bf16.msra.mxu0 %v2574
    %3550 = vmatpush.bf16.msra.mxu0 %v2570
    %3551 = vmatpush.bf16.msra.mxu0 %v2566
    %3552 = vmatpush.bf16.msra.mxu0 %v2562
    %3553 = vmatpush.bf16.msra.mxu0 %v2558
    %3554 = vmatpush.bf16.msra.mxu0 %v2554
    %3555 = vmatpush.bf16.msra.mxu0 %v2550
    %3556 = vmatpush.bf16.msra.mxu0 %v2546
    %3557 = vmatmul.bf16.gmra.mxu0 %v109
    %v3558 = vpop.f32.mrf.mxu0
    %v3559 = vadd.f32 %v3546, %v3558
    %v3560 = vpop.f32.mrf.mxu0
    %3561 = vdwg.mxu0
    %3562 = vmatpush.bf16.msra.mxu0 %v2606
    %3563 = vmatpush.bf16.msra.mxu0 %v2602
    %3564 = vmatpush.bf16.msra.mxu0 %v2598
    %3565 = vmatpush.bf16.msra.mxu0 %v2594
    %3566 = vmatpush.bf16.msra.mxu0 %v2590
    %3567 = vmatpush.bf16.msra.mxu0 %v2586
    %3568 = vmatpush.bf16.msra.mxu0 %v2582
    %3569 = vmatpush.bf16.msra.mxu0 %v2578
    %3570 = vmatmul.bf16.gmra.mxu0 %v110
    %v3571 = vpop.f32.mrf.mxu0
    %v3572 = vadd.f32 %v3559, %v3571
    %v3573 = vpop.f32.mrf.mxu0
    %3574 = vdwg.mxu0
    %3575 = vmatpush.bf16.msra.mxu0 %v2638
    %3576 = vmatpush.bf16.msra.mxu0 %v2634
    %3577 = vmatpush.bf16.msra.mxu0 %v2630
    %3578 = vmatpush.bf16.msra.mxu0 %v2626
    %3579 = vmatpush.bf16.msra.mxu0 %v2622
    %3580 = vmatpush.bf16.msra.mxu0 %v2618
    %3581 = vmatpush.bf16.msra.mxu0 %v2614
    %3582 = vmatpush.bf16.msra.mxu0 %v2610
    %3583 = vmatmul.bf16.gmra.mxu0 %v111
    %v3584 = vpop.f32.mrf.mxu0
    %v3585 = vadd.f32 %v3572, %v3584
    %v3586 = vpop.f32.mrf.mxu0
    %3587 = vdwg.mxu0
    %3588 = vmatpush.bf16.msra.mxu0 %v2670
    %3589 = vmatpush.bf16.msra.mxu0 %v2666
    %3590 = vmatpush.bf16.msra.mxu0 %v2662
    %3591 = vmatpush.bf16.msra.mxu0 %v2658
    %3592 = vmatpush.bf16.msra.mxu0 %v2654
    %3593 = vmatpush.bf16.msra.mxu0 %v2650
    %3594 = vmatpush.bf16.msra.mxu0 %v2646
    %3595 = vmatpush.bf16.msra.mxu0 %v2642
    %3596 = vmatmul.bf16.gmra.mxu0 %v112
    %v3597 = vpop.f32.mrf.mxu0
    %v3598 = vadd.f32 %v3585, %v3597
    %v3599 = vpop.f32.mrf.mxu0
    %3600 = vdwg.mxu0
    %3601 = vmatpush.bf16.msra.mxu0 %v2191
    %3602 = vmatpush.bf16.msra.mxu0 %v2187
    %3603 = vmatpush.bf16.msra.mxu0 %v2183
    %3604 = vmatpush.bf16.msra.mxu0 %v2179
    %3605 = vmatpush.bf16.msra.mxu0 %v2175
    %3606 = vmatpush.bf16.msra.mxu0 %v2171
    %3607 = vmatpush.bf16.msra.mxu0 %v2167
    %3608 = vmatpush.bf16.msra.mxu0 %v2163
    %3609 = vmatmul.bf16.gmra.mxu0 %v97
    %v3610 = vpop.f32.mrf.mxu0
    %v3611 = vadd.f32 0.0, %v3610
    %v3612 = vpop.f32.mrf.mxu0
    %3613 = vdwg.mxu0
    %3614 = vmatpush.bf16.msra.mxu0 %v2223
    %3615 = vmatpush.bf16.msra.mxu0 %v2219
    %3616 = vmatpush.bf16.msra.mxu0 %v2215
    %3617 = vmatpush.bf16.msra.mxu0 %v2211
    %3618 = vmatpush.bf16.msra.mxu0 %v2207
    %3619 = vmatpush.bf16.msra.mxu0 %v2203
    %3620 = vmatpush.bf16.msra.mxu0 %v2199
    %3621 = vmatpush.bf16.msra.mxu0 %v2195
    %3622 = vmatmul.bf16.gmra.mxu0 %v98
    %v3623 = vpop.f32.mrf.mxu0
    %v3624 = vadd.f32 %v3611, %v3623
    %v3625 = vpop.f32.mrf.mxu0
    %3626 = vdwg.mxu0
    %3627 = vmatpush.bf16.msra.mxu0 %v2255
    %3628 = vmatpush.bf16.msra.mxu0 %v2251
    %3629 = vmatpush.bf16.msra.mxu0 %v2247
    %3630 = vmatpush.bf16.msra.mxu0 %v2243
    %3631 = vmatpush.bf16.msra.mxu0 %v2239
    %3632 = vmatpush.bf16.msra.mxu0 %v2235
    %3633 = vmatpush.bf16.msra.mxu0 %v2231
    %3634 = vmatpush.bf16.msra.mxu0 %v2227
    %3635 = vmatmul.bf16.gmra.mxu0 %v99
    %v3636 = vpop.f32.mrf.mxu0
    %v3637 = vadd.f32 %v3624, %v3636
    %v3638 = vpop.f32.mrf.mxu0
    %3639 = vdwg.mxu0
    %3640 = vmatpush.bf16.msra.mxu0 %v2287
    %3641 = vmatpush.bf16.msra.mxu0 %v2283
    %3642 = vmatpush.bf16.msra.mxu0 %v2279
    %3643 = vmatpush.bf16.msra.mxu0 %v2275
    %3644 = vmatpush.bf16.msra.mxu0 %v2271
    %3645 = vmatpush.bf16.msra.mxu0 %v2267
    %3646 = vmatpush.bf16.msra.mxu0 %v2263
    %3647 = vmatpush.bf16.msra.mxu0 %v2259
    %3648 = vmatmul.bf16.gmra.mxu0 %v100
    %v3649 = vpop.f32.mrf.mxu0
    %v3650 = vadd.f32 %v3637, %v3649
    %v3651 = vpop.f32.mrf.mxu0
    %3652 = vdwg.mxu0
    %3653 = vmatpush.bf16.msra.mxu0 %v2319
    %3654 = vmatpush.bf16.msra.mxu0 %v2315
    %3655 = vmatpush.bf16.msra.mxu0 %v2311
    %3656 = vmatpush.bf16.msra.mxu0 %v2307
    %3657 = vmatpush.bf16.msra.mxu0 %v2303
    %3658 = vmatpush.bf16.msra.mxu0 %v2299
    %3659 = vmatpush.bf16.msra.mxu0 %v2295
    %3660 = vmatpush.bf16.msra.mxu0 %v2291
    %3661 = vmatmul.bf16.gmra.mxu0 %v101
    %v3662 = vpop.f32.mrf.mxu0
    %v3663 = vadd.f32 %v3650, %v3662
    %v3664 = vpop.f32.mrf.mxu0
    %3665 = vdwg.mxu0
    %3666 = vmatpush.bf16.msra.mxu0 %v2351
    %3667 = vmatpush.bf16.msra.mxu0 %v2347
    %3668 = vmatpush.bf16.msra.mxu0 %v2343
    %3669 = vmatpush.bf16.msra.mxu0 %v2339
    %3670 = vmatpush.bf16.msra.mxu0 %v2335
    %3671 = vmatpush.bf16.msra.mxu0 %v2331
    %3672 = vmatpush.bf16.msra.mxu0 %v2327
    %3673 = vmatpush.bf16.msra.mxu0 %v2323
    %3674 = vmatmul.bf16.gmra.mxu0 %v102
    %v3675 = vpop.f32.mrf.mxu0
    %v3676 = vadd.f32 %v3663, %v3675
    %v3677 = vpop.f32.mrf.mxu0
    %3678 = vdwg.mxu0
    %3679 = vmatpush.bf16.msra.mxu0 %v2383
    %3680 = vmatpush.bf16.msra.mxu0 %v2379
    %3681 = vmatpush.bf16.msra.mxu0 %v2375
    %3682 = vmatpush.bf16.msra.mxu0 %v2371
    %3683 = vmatpush.bf16.msra.mxu0 %v2367
    %3684 = vmatpush.bf16.msra.mxu0 %v2363
    %3685 = vmatpush.bf16.msra.mxu0 %v2359
    %3686 = vmatpush.bf16.msra.mxu0 %v2355
    %3687 = vmatmul.bf16.gmra.mxu0 %v103
    %v3688 = vpop.f32.mrf.mxu0
    %v3689 = vadd.f32 %v3676, %v3688
    %v3690 = vpop.f32.mrf.mxu0
    %3691 = vdwg.mxu0
    %3692 = vmatpush.bf16.msra.mxu0 %v2415
    %3693 = vmatpush.bf16.msra.mxu0 %v2411
    %3694 = vmatpush.bf16.msra.mxu0 %v2407
    %3695 = vmatpush.bf16.msra.mxu0 %v2403
    %3696 = vmatpush.bf16.msra.mxu0 %v2399
    %3697 = vmatpush.bf16.msra.mxu0 %v2395
    %3698 = vmatpush.bf16.msra.mxu0 %v2391
    %3699 = vmatpush.bf16.msra.mxu0 %v2387
    %3700 = vmatmul.bf16.gmra.mxu0 %v104
    %v3701 = vpop.f32.mrf.mxu0
    %v3702 = vadd.f32 %v3689, %v3701
    %v3703 = vpop.f32.mrf.mxu0
    %3704 = vdwg.mxu0
    %3705 = vmatpush.bf16.msra.mxu0 %v2447
    %3706 = vmatpush.bf16.msra.mxu0 %v2443
    %3707 = vmatpush.bf16.msra.mxu0 %v2439
    %3708 = vmatpush.bf16.msra.mxu0 %v2435
    %3709 = vmatpush.bf16.msra.mxu0 %v2431
    %3710 = vmatpush.bf16.msra.mxu0 %v2427
    %3711 = vmatpush.bf16.msra.mxu0 %v2423
    %3712 = vmatpush.bf16.msra.mxu0 %v2419
    %3713 = vmatmul.bf16.gmra.mxu0 %v105
    %v3714 = vpop.f32.mrf.mxu0
    %v3715 = vadd.f32 %v3702, %v3714
    %v3716 = vpop.f32.mrf.mxu0
    %3717 = vdwg.mxu0
    %3718 = vmatpush.bf16.msra.mxu0 %v2479
    %3719 = vmatpush.bf16.msra.mxu0 %v2475
    %3720 = vmatpush.bf16.msra.mxu0 %v2471
    %3721 = vmatpush.bf16.msra.mxu0 %v2467
    %3722 = vmatpush.bf16.msra.mxu0 %v2463
    %3723 = vmatpush.bf16.msra.mxu0 %v2459
    %3724 = vmatpush.bf16.msra.mxu0 %v2455
    %3725 = vmatpush.bf16.msra.mxu0 %v2451
    %3726 = vmatmul.bf16.gmra.mxu0 %v106
    %v3727 = vpop.f32.mrf.mxu0
    %v3728 = vadd.f32 %v3715, %v3727
    %v3729 = vpop.f32.mrf.mxu0
    %3730 = vdwg.mxu0
    %3731 = vmatpush.bf16.msra.mxu0 %v2511
    %3732 = vmatpush.bf16.msra.mxu0 %v2507
    %3733 = vmatpush.bf16.msra.mxu0 %v2503
    %3734 = vmatpush.bf16.msra.mxu0 %v2499
    %3735 = vmatpush.bf16.msra.mxu0 %v2495
    %3736 = vmatpush.bf16.msra.mxu0 %v2491
    %3737 = vmatpush.bf16.msra.mxu0 %v2487
    %3738 = vmatpush.bf16.msra.mxu0 %v2483
    %3739 = vmatmul.bf16.gmra.mxu0 %v107
    %v3740 = vpop.f32.mrf.mxu0
    %v3741 = vadd.f32 %v3728, %v3740
    %v3742 = vpop.f32.mrf.mxu0
    %3743 = vdwg.mxu0
    %3744 = vmatpush.bf16.msra.mxu0 %v2543
    %3745 = vmatpush.bf16.msra.mxu0 %v2539
    %3746 = vmatpush.bf16.msra.mxu0 %v2535
    %3747 = vmatpush.bf16.msra.mxu0 %v2531
    %3748 = vmatpush.bf16.msra.mxu0 %v2527
    %3749 = vmatpush.bf16.msra.mxu0 %v2523
    %3750 = vmatpush.bf16.msra.mxu0 %v2519
    %3751 = vmatpush.bf16.msra.mxu0 %v2515
    %3752 = vmatmul.bf16.gmra.mxu0 %v108
    %v3753 = vpop.f32.mrf.mxu0
    %v3754 = vadd.f32 %v3741, %v3753
    %v3755 = vpop.f32.mrf.mxu0
    %3756 = vdwg.mxu0
    %3757 = vmatpush.bf16.msra.mxu0 %v2575
    %3758 = vmatpush.bf16.msra.mxu0 %v2571
    %3759 = vmatpush.bf16.msra.mxu0 %v2567
    %3760 = vmatpush.bf16.msra.mxu0 %v2563
    %3761 = vmatpush.bf16.msra.mxu0 %v2559
    %3762 = vmatpush.bf16.msra.mxu0 %v2555
    %3763 = vmatpush.bf16.msra.mxu0 %v2551
    %3764 = vmatpush.bf16.msra.mxu0 %v2547
    %3765 = vmatmul.bf16.gmra.mxu0 %v109
    %v3766 = vpop.f32.mrf.mxu0
    %v3767 = vadd.f32 %v3754, %v3766
    %v3768 = vpop.f32.mrf.mxu0
    %3769 = vdwg.mxu0
    %3770 = vmatpush.bf16.msra.mxu0 %v2607
    %3771 = vmatpush.bf16.msra.mxu0 %v2603
    %3772 = vmatpush.bf16.msra.mxu0 %v2599
    %3773 = vmatpush.bf16.msra.mxu0 %v2595
    %3774 = vmatpush.bf16.msra.mxu0 %v2591
    %3775 = vmatpush.bf16.msra.mxu0 %v2587
    %3776 = vmatpush.bf16.msra.mxu0 %v2583
    %3777 = vmatpush.bf16.msra.mxu0 %v2579
    %3778 = vmatmul.bf16.gmra.mxu0 %v110
    %v3779 = vpop.f32.mrf.mxu0
    %v3780 = vadd.f32 %v3767, %v3779
    %v3781 = vpop.f32.mrf.mxu0
    %3782 = vdwg.mxu0
    %3783 = vmatpush.bf16.msra.mxu0 %v2639
    %3784 = vmatpush.bf16.msra.mxu0 %v2635
    %3785 = vmatpush.bf16.msra.mxu0 %v2631
    %3786 = vmatpush.bf16.msra.mxu0 %v2627
    %3787 = vmatpush.bf16.msra.mxu0 %v2623
    %3788 = vmatpush.bf16.msra.mxu0 %v2619
    %3789 = vmatpush.bf16.msra.mxu0 %v2615
    %3790 = vmatpush.bf16.msra.mxu0 %v2611
    %3791 = vmatmul.bf16.gmra.mxu0 %v111
    %v3792 = vpop.f32.mrf.mxu0
    %v3793 = vadd.f32 %v3780, %v3792
    %v3794 = vpop.f32.mrf.mxu0
    %3795 = vdwg.mxu0
    %3796 = vmatpush.bf16.msra.mxu0 %v2671
    %3797 = vmatpush.bf16.msra.mxu0 %v2667
    %3798 = vmatpush.bf16.msra.mxu0 %v2663
    %3799 = vmatpush.bf16.msra.mxu0 %v2659
    %3800 = vmatpush.bf16.msra.mxu0 %v2655
    %3801 = vmatpush.bf16.msra.mxu0 %v2651
    %3802 = vmatpush.bf16.msra.mxu0 %v2647
    %3803 = vmatpush.bf16.msra.mxu0 %v2643
    %3804 = vmatmul.bf16.gmra.mxu0 %v112
    %v3805 = vpop.f32.mrf.mxu0
    %v3806 = vadd.f32 %v3793, %v3805
    %v3807 = vpop.f32.mrf.mxu0
    %3808 = vdwg.mxu0
    %3809 = vmatpush.bf16.msra.mxu0 %v2192
    %3810 = vmatpush.bf16.msra.mxu0 %v2188
    %3811 = vmatpush.bf16.msra.mxu0 %v2184
    %3812 = vmatpush.bf16.msra.mxu0 %v2180
    %3813 = vmatpush.bf16.msra.mxu0 %v2176
    %3814 = vmatpush.bf16.msra.mxu0 %v2172
    %3815 = vmatpush.bf16.msra.mxu0 %v2168
    %3816 = vmatpush.bf16.msra.mxu0 %v2164
    %3817 = vmatmul.bf16.gmra.mxu0 %v97
    %v3818 = vpop.f32.mrf.mxu0
    %v3819 = vadd.f32 0.0, %v3818
    %v3820 = vpop.f32.mrf.mxu0
    %3821 = vdwg.mxu0
    %3822 = vmatpush.bf16.msra.mxu0 %v2224
    %3823 = vmatpush.bf16.msra.mxu0 %v2220
    %3824 = vmatpush.bf16.msra.mxu0 %v2216
    %3825 = vmatpush.bf16.msra.mxu0 %v2212
    %3826 = vmatpush.bf16.msra.mxu0 %v2208
    %3827 = vmatpush.bf16.msra.mxu0 %v2204
    %3828 = vmatpush.bf16.msra.mxu0 %v2200
    %3829 = vmatpush.bf16.msra.mxu0 %v2196
    %3830 = vmatmul.bf16.gmra.mxu0 %v98
    %v3831 = vpop.f32.mrf.mxu0
    %v3832 = vadd.f32 %v3819, %v3831
    %v3833 = vpop.f32.mrf.mxu0
    %3834 = vdwg.mxu0
    %3835 = vmatpush.bf16.msra.mxu0 %v2256
    %3836 = vmatpush.bf16.msra.mxu0 %v2252
    %3837 = vmatpush.bf16.msra.mxu0 %v2248
    %3838 = vmatpush.bf16.msra.mxu0 %v2244
    %3839 = vmatpush.bf16.msra.mxu0 %v2240
    %3840 = vmatpush.bf16.msra.mxu0 %v2236
    %3841 = vmatpush.bf16.msra.mxu0 %v2232
    %3842 = vmatpush.bf16.msra.mxu0 %v2228
    %3843 = vmatmul.bf16.gmra.mxu0 %v99
    %v3844 = vpop.f32.mrf.mxu0
    %v3845 = vadd.f32 %v3832, %v3844
    %v3846 = vpop.f32.mrf.mxu0
    %3847 = vdwg.mxu0
    %3848 = vmatpush.bf16.msra.mxu0 %v2288
    %3849 = vmatpush.bf16.msra.mxu0 %v2284
    %3850 = vmatpush.bf16.msra.mxu0 %v2280
    %3851 = vmatpush.bf16.msra.mxu0 %v2276
    %3852 = vmatpush.bf16.msra.mxu0 %v2272
    %3853 = vmatpush.bf16.msra.mxu0 %v2268
    %3854 = vmatpush.bf16.msra.mxu0 %v2264
    %3855 = vmatpush.bf16.msra.mxu0 %v2260
    %3856 = vmatmul.bf16.gmra.mxu0 %v100
    %v3857 = vpop.f32.mrf.mxu0
    %v3858 = vadd.f32 %v3845, %v3857
    %v3859 = vpop.f32.mrf.mxu0
    %3860 = vdwg.mxu0
    %3861 = vmatpush.bf16.msra.mxu0 %v2320
    %3862 = vmatpush.bf16.msra.mxu0 %v2316
    %3863 = vmatpush.bf16.msra.mxu0 %v2312
    %3864 = vmatpush.bf16.msra.mxu0 %v2308
    %3865 = vmatpush.bf16.msra.mxu0 %v2304
    %3866 = vmatpush.bf16.msra.mxu0 %v2300
    %3867 = vmatpush.bf16.msra.mxu0 %v2296
    %3868 = vmatpush.bf16.msra.mxu0 %v2292
    %3869 = vmatmul.bf16.gmra.mxu0 %v101
    %v3870 = vpop.f32.mrf.mxu0
    %v3871 = vadd.f32 %v3858, %v3870
    %v3872 = vpop.f32.mrf.mxu0
    %3873 = vdwg.mxu0
    %3874 = vmatpush.bf16.msra.mxu0 %v2352
    %3875 = vmatpush.bf16.msra.mxu0 %v2348
    %3876 = vmatpush.bf16.msra.mxu0 %v2344
    %3877 = vmatpush.bf16.msra.mxu0 %v2340
    %3878 = vmatpush.bf16.msra.mxu0 %v2336
    %3879 = vmatpush.bf16.msra.mxu0 %v2332
    %3880 = vmatpush.bf16.msra.mxu0 %v2328
    %3881 = vmatpush.bf16.msra.mxu0 %v2324
    %3882 = vmatmul.bf16.gmra.mxu0 %v102
    %v3883 = vpop.f32.mrf.mxu0
    %v3884 = vadd.f32 %v3871, %v3883
    %v3885 = vpop.f32.mrf.mxu0
    %3886 = vdwg.mxu0
    %3887 = vmatpush.bf16.msra.mxu0 %v2384
    %3888 = vmatpush.bf16.msra.mxu0 %v2380
    %3889 = vmatpush.bf16.msra.mxu0 %v2376
    %3890 = vmatpush.bf16.msra.mxu0 %v2372
    %3891 = vmatpush.bf16.msra.mxu0 %v2368
    %3892 = vmatpush.bf16.msra.mxu0 %v2364
    %3893 = vmatpush.bf16.msra.mxu0 %v2360
    %3894 = vmatpush.bf16.msra.mxu0 %v2356
    %3895 = vmatmul.bf16.gmra.mxu0 %v103
    %v3896 = vpop.f32.mrf.mxu0
    %v3897 = vadd.f32 %v3884, %v3896
    %v3898 = vpop.f32.mrf.mxu0
    %3899 = vdwg.mxu0
    %3900 = vmatpush.bf16.msra.mxu0 %v2416
    %3901 = vmatpush.bf16.msra.mxu0 %v2412
    %3902 = vmatpush.bf16.msra.mxu0 %v2408
    %3903 = vmatpush.bf16.msra.mxu0 %v2404
    %3904 = vmatpush.bf16.msra.mxu0 %v2400
    %3905 = vmatpush.bf16.msra.mxu0 %v2396
    %3906 = vmatpush.bf16.msra.mxu0 %v2392
    %3907 = vmatpush.bf16.msra.mxu0 %v2388
    %3908 = vmatmul.bf16.gmra.mxu0 %v104
    %v3909 = vpop.f32.mrf.mxu0
    %v3910 = vadd.f32 %v3897, %v3909
    %v3911 = vpop.f32.mrf.mxu0
    %3912 = vdwg.mxu0
    %3913 = vmatpush.bf16.msra.mxu0 %v2448
    %3914 = vmatpush.bf16.msra.mxu0 %v2444
    %3915 = vmatpush.bf16.msra.mxu0 %v2440
    %3916 = vmatpush.bf16.msra.mxu0 %v2436
    %3917 = vmatpush.bf16.msra.mxu0 %v2432
    %3918 = vmatpush.bf16.msra.mxu0 %v2428
    %3919 = vmatpush.bf16.msra.mxu0 %v2424
    %3920 = vmatpush.bf16.msra.mxu0 %v2420
    %3921 = vmatmul.bf16.gmra.mxu0 %v105
    %v3922 = vpop.f32.mrf.mxu0
    %v3923 = vadd.f32 %v3910, %v3922
    %v3924 = vpop.f32.mrf.mxu0
    %3925 = vdwg.mxu0
    %3926 = vmatpush.bf16.msra.mxu0 %v2480
    %3927 = vmatpush.bf16.msra.mxu0 %v2476
    %3928 = vmatpush.bf16.msra.mxu0 %v2472
    %3929 = vmatpush.bf16.msra.mxu0 %v2468
    %3930 = vmatpush.bf16.msra.mxu0 %v2464
    %3931 = vmatpush.bf16.msra.mxu0 %v2460
    %3932 = vmatpush.bf16.msra.mxu0 %v2456
    %3933 = vmatpush.bf16.msra.mxu0 %v2452
    %3934 = vmatmul.bf16.gmra.mxu0 %v106
    %v3935 = vpop.f32.mrf.mxu0
    %v3936 = vadd.f32 %v3923, %v3935
    %v3937 = vpop.f32.mrf.mxu0
    %3938 = vdwg.mxu0
    %3939 = vmatpush.bf16.msra.mxu0 %v2512
    %3940 = vmatpush.bf16.msra.mxu0 %v2508
    %3941 = vmatpush.bf16.msra.mxu0 %v2504
    %3942 = vmatpush.bf16.msra.mxu0 %v2500
    %3943 = vmatpush.bf16.msra.mxu0 %v2496
    %3944 = vmatpush.bf16.msra.mxu0 %v2492
    %3945 = vmatpush.bf16.msra.mxu0 %v2488
    %3946 = vmatpush.bf16.msra.mxu0 %v2484
    %3947 = vmatmul.bf16.gmra.mxu0 %v107
    %v3948 = vpop.f32.mrf.mxu0
    %v3949 = vadd.f32 %v3936, %v3948
    %v3950 = vpop.f32.mrf.mxu0
    %3951 = vdwg.mxu0
    %3952 = vmatpush.bf16.msra.mxu0 %v2544
    %3953 = vmatpush.bf16.msra.mxu0 %v2540
    %3954 = vmatpush.bf16.msra.mxu0 %v2536
    %3955 = vmatpush.bf16.msra.mxu0 %v2532
    %3956 = vmatpush.bf16.msra.mxu0 %v2528
    %3957 = vmatpush.bf16.msra.mxu0 %v2524
    %3958 = vmatpush.bf16.msra.mxu0 %v2520
    %3959 = vmatpush.bf16.msra.mxu0 %v2516
    %3960 = vmatmul.bf16.gmra.mxu0 %v108
    %v3961 = vpop.f32.mrf.mxu0
    %v3962 = vadd.f32 %v3949, %v3961
    %v3963 = vpop.f32.mrf.mxu0
    %3964 = vdwg.mxu0
    %3965 = vmatpush.bf16.msra.mxu0 %v2576
    %3966 = vmatpush.bf16.msra.mxu0 %v2572
    %3967 = vmatpush.bf16.msra.mxu0 %v2568
    %3968 = vmatpush.bf16.msra.mxu0 %v2564
    %3969 = vmatpush.bf16.msra.mxu0 %v2560
    %3970 = vmatpush.bf16.msra.mxu0 %v2556
    %3971 = vmatpush.bf16.msra.mxu0 %v2552
    %3972 = vmatpush.bf16.msra.mxu0 %v2548
    %3973 = vmatmul.bf16.gmra.mxu0 %v109
    %v3974 = vpop.f32.mrf.mxu0
    %v3975 = vadd.f32 %v3962, %v3974
    %v3976 = vpop.f32.mrf.mxu0
    %3977 = vdwg.mxu0
    %3978 = vmatpush.bf16.msra.mxu0 %v2608
    %3979 = vmatpush.bf16.msra.mxu0 %v2604
    %3980 = vmatpush.bf16.msra.mxu0 %v2600
    %3981 = vmatpush.bf16.msra.mxu0 %v2596
    %3982 = vmatpush.bf16.msra.mxu0 %v2592
    %3983 = vmatpush.bf16.msra.mxu0 %v2588
    %3984 = vmatpush.bf16.msra.mxu0 %v2584
    %3985 = vmatpush.bf16.msra.mxu0 %v2580
    %3986 = vmatmul.bf16.gmra.mxu0 %v110
    %v3987 = vpop.f32.mrf.mxu0
    %v3988 = vadd.f32 %v3975, %v3987
    %v3989 = vpop.f32.mrf.mxu0
    %3990 = vdwg.mxu0
    %3991 = vmatpush.bf16.msra.mxu0 %v2640
    %3992 = vmatpush.bf16.msra.mxu0 %v2636
    %3993 = vmatpush.bf16.msra.mxu0 %v2632
    %3994 = vmatpush.bf16.msra.mxu0 %v2628
    %3995 = vmatpush.bf16.msra.mxu0 %v2624
    %3996 = vmatpush.bf16.msra.mxu0 %v2620
    %3997 = vmatpush.bf16.msra.mxu0 %v2616
    %3998 = vmatpush.bf16.msra.mxu0 %v2612
    %3999 = vmatmul.bf16.gmra.mxu0 %v111
    %v4000 = vpop.f32.mrf.mxu0
    %v4001 = vadd.f32 %v3988, %v4000
    %v4002 = vpop.f32.mrf.mxu0
    %4003 = vdwg.mxu0
    %4004 = vmatpush.bf16.msra.mxu0 %v2672
    %4005 = vmatpush.bf16.msra.mxu0 %v2668
    %4006 = vmatpush.bf16.msra.mxu0 %v2664
    %4007 = vmatpush.bf16.msra.mxu0 %v2660
    %4008 = vmatpush.bf16.msra.mxu0 %v2656
    %4009 = vmatpush.bf16.msra.mxu0 %v2652
    %4010 = vmatpush.bf16.msra.mxu0 %v2648
    %4011 = vmatpush.bf16.msra.mxu0 %v2644
    %4012 = vmatmul.bf16.gmra.mxu0 %v112
    %v4013 = vpop.f32.mrf.mxu0
    %v4014 = vadd.f32 %v4001, %v4013
    %v4015 = vpop.f32.mrf.mxu0
    %4016 = vdwg.mxu0
    %v4017 = vrot.slane %v3390, 4
    %v4018 = vadd.f32 %v3390, %v4017
    %v4019 = vrot.slane %v4018, 2
    %v4020 = vadd.f32 %v4018, %v4019
    %v4021 = vrot.slane %v4020, 1
    %v4022 = vadd.f32 %v4020, %v4021
    %v4023 = vrot.slane %v3598, 4
    %v4024 = vadd.f32 %v3598, %v4023
    %v4025 = vrot.slane %v4024, 2
    %v4026 = vadd.f32 %v4024, %v4025
    %v4027 = vrot.slane %v4026, 1
    %v4028 = vadd.f32 %v4026, %v4027
    %v4029 = vrot.slane %v3806, 4
    %v4030 = vadd.f32 %v3806, %v4029
    %v4031 = vrot.slane %v4030, 2
    %v4032 = vadd.f32 %v4030, %v4031
    %v4033 = vrot.slane %v4032, 1
    %v4034 = vadd.f32 %v4032, %v4033
    %v4035 = vrot.slane %v4014, 4
    %v4036 = vadd.f32 %v4014, %v4035
    %v4037 = vrot.slane %v4036, 2
    %v4038 = vadd.f32 %v4036, %v4037
    %v4039 = vrot.slane %v4038, 1
    %v4040 = vadd.f32 %v4038, %v4039
    %v4041 = vrcp.pop 8.0
    %v4042 = vmul.f32 8.0, %v4041
    %v4043 = vsub.f32 1.0, %v4042
    %v4044 = vmul.f32 %v4041, %v4043
    %v4045 = vadd.f32 %v4041, %v4044
    %vm4046 = vweird.f32 %v4041
    %v4047 = vsel %vm4046, %v4041, %v4045
    %v4048 = vmul.f32 %v4022, %v4047
    %v4049 = vmul.f32 %v4028, %v4047
    %v4050 = vmul.f32 %v4034, %v4047
    %v4051 = vmul.f32 %v4040, %v4047
    %v4052 = vsub.f32 %v3390, %v4048
    %v4053 = vsub.f32 %v3598, %v4049
    %v4054 = vsub.f32 %v3806, %v4050
    %v4055 = vsub.f32 %v4014, %v4051
    %v4056 = vmul.f32 %v4052, %v4052
    %v4057 = vmul.f32 %v4053, %v4053
    %v4058 = vmul.f32 %v4054, %v4054
    %v4059 = vmul.f32 %v4055, %v4055
    %v4060 = vrot.slane %v4056, 4
    %v4061 = vadd.f32 %v4056, %v4060
    %v4062 = vrot.slane %v4061, 2
    %v4063 = vadd.f32 %v4061, %v4062
    %v4064 = vrot.slane %v4063, 1
    %v4065 = vadd.f32 %v4063, %v4064
    %v4066 = vrot.slane %v4057, 4
    %v4067 = vadd.f32 %v4057, %v4066
    %v4068 = vrot.slane %v4067, 2
    %v4069 = vadd.f32 %v4067, %v4068
    %v4070 = vrot.slane %v4069, 1
    %v4071 = vadd.f32 %v4069, %v4070
    %v4072 = vrot.slane %v4058, 4
    %v4073 = vadd.f32 %v4058, %v4072
    %v4074 = vrot.slane %v4073, 2
    %v4075 = vadd.f32 %v4073, %v4074
    %v4076 = vrot.slane %v4075, 1
    %v4077 = vadd.f32 %v4075, %v4076
    %v4078 = vrot.slane %v4059, 4
    %v4079 = vadd.f32 %v4059, %v4078
    %v4080 = vrot.slane %v4079, 2
    %v4081 = vadd.f32 %v4079, %v4080
    %v4082 = vrot.slane %v4081, 1
    %v4083 = vadd.f32 %v4081, %v4082
    %v4084 = vmul.f32 %v4065, %v4047
    %v4085 = vmul.f32 %v4071, %v4047
    %v4086 = vmul.f32 %v4077, %v4047
    %v4087 = vmul.f32 %v4083, %v4047
    %v4088 = vadd.f32 %v4084, 1e-05
    %v4089 = vadd.f32 %v4085, 1e-05
    %v4090 = vadd.f32 %v4086, 1e-05
    %v4091 = vadd.f32 %v4087, 1e-05
    %v4092 = vrsqrt.pop %v4088
    %v4093 = vmul.f32 %v4092, %v4088
    %v4094 = vmul.f32 %v4093, %v4092
    %v4095 = vmul.f32 0.5, %v4094
    %v4096 = vsub.f32 1.5, %v4095
    %v4097 = vmul.f32 %v4092, %v4096
    %vm4098 = vweird.f32 %v4088
    %vm4099 = vweird.f32 %v4092
    %vm4100 = vmor %vm4098, %vm4099
    %v4101 = vsel %vm4100, %v4092, %v4097
    %v4102 = vrsqrt.pop %v4089
    %v4103 = vmul.f32 %v4102, %v4089
    %v4104 = vmul.f32 %v4103, %v4102
    %v4105 = vmul.f32 0.5, %v4104
    %v4106 = vsub.f32 1.5, %v4105
    %v4107 = vmul.f32 %v4102, %v4106
    %vm4108 = vweird.f32 %v4089
    %vm4109 = vweird.f32 %v4102
    %vm4110 = vmor %vm4108, %vm4109
    %v4111 = vsel %vm4110, %v4102, %v4107
    %v4112 = vrsqrt.pop %v4090
    %v4113 = vmul.f32 %v4112, %v4090
    %v4114 = vmul.f32 %v4113, %v4112
    %v4115 = vmul.f32 0.5, %v4114
    %v4116 = vsub.f32 1.5, %v4115
    %v4117 = vmul.f32 %v4112, %v4116
    %vm4118 = vweird.f32 %v4090
    %vm4119 = vweird.f32 %v4112
    %vm4120 = vmor %vm4118, %vm4119
    %v4121 = vsel %vm4120, %v4112, %v4117
    %v4122 = vrsqrt.pop %v4091
    %v4123 = vmul.f32 %v4122, %v4091
    %v4124 = vmul.f32 %v4123, %v4122
    %v4125 = vmul.f32 0.5, %v4124
    %v4126 = vsub.f32 1.5, %v4125
    %v4127 = vmul.f32 %v4122, %v4126
    %vm4128 = vweird.f32 %v4091
    %vm4129 = vweird.f32 %v4122
    %vm4130 = vmor %vm4128, %vm4129
    %v4131 = vsel %vm4130, %v4122, %v4127
    %v4136 = vrot.slane %v4111, 7
    %v4137 = vrot.slane %v4121, 6
    %v4138 = vrot.slane %v4131, 5
    %vm4139 = vcmask 1040384
    %v4140 = vsel %vm4139, %v4101, %v4136
    %vm4141 = vcmask 1042434
    %v4142 = vsel %vm4141, %v4137, %v4138
    %vm4143 = vcmask 1041408
    %v4144 = vsel %vm4143, %v4140, %v4142
    %v4146 = vmul.f32 %v77, %v4144
    %v4148 = vperm.slane %v4146, 0
    %v4149 = vperm.slane %v4146, 1
    %v4150 = vperm.slane %v4146, 2
    %v4151 = vperm.slane %v4146, 3
    %v4156 = vmul.f32 %v4048, %v4148
    %v4157 = vmul.f32 %v4049, %v4149
    %v4158 = vmul.f32 %v4050, %v4150
    %v4159 = vmul.f32 %v4051, %v4151
    %v4164 = vrot.slane %v4157, 7
    %v4165 = vrot.slane %v4158, 6
    %v4166 = vrot.slane %v4159, 5
    %v4167 = vsel %vm4139, %v4156, %v4164
    %v4168 = vsel %vm4141, %v4165, %v4166
    %v4169 = vsel %vm4143, %v4167, %v4168
    %v4171 = vsub.f32 %v78, %v4169
    %v4172 = vmul.f32 %v3390, %v4148
    %v4173 = vmul.f32 %v3598, %v4149
    %v4174 = vmul.f32 %v3806, %v4150
    %v4175 = vmul.f32 %v4014, %v4151
    %v4177 = vperm.slane %v4171, 0
    %v4178 = vperm.slane %v4171, 1
    %v4179 = vperm.slane %v4171, 2
    %v4180 = vperm.slane %v4171, 3
    %v4185 = vadd.f32 %v4172, %v4177
    %v4186 = vadd.f32 %v4173, %v4178
    %v4187 = vadd.f32 %v4174, %v4179
    %v4188 = vadd.f32 %v4175, %v4180
    %v4189 = vmax.f32 %v4185, 0.0
    %v4190 = vmax.f32 %v4186, 0.0
    %v4191 = vmax.f32 %v4187, 0.0
    %v4192 = vmax.f32 %v4188, 0.0
    %v4193 = vpack.c.bf16 %v4189, %v4189
    %v4194 = vpack.c.bf16 %v4190, %v4190
    %v4195 = vpack.c.bf16 %v4191, %v4191
    %v4196 = vpack.c.bf16 %v4192, %v4192
    %v4197 = vld [vmem:[#allocation7] sm:$0xf]
    %v4198 = vld [vmem:[#allocation7 + $0x4] sm:$0xf]
    %v4199 = vld [vmem:[#allocation7 + $0x8] sm:$0xf]
    %v4200 = vld [vmem:[#allocation7 + $0xc] sm:$0xf]
    %v4201 = vld [vmem:[#allocation7 + $0x10] sm:$0xf]
    %v4202 = vld [vmem:[#allocation7 + $0x14] sm:$0xf]
    %v4203 = vld [vmem:[#allocation7 + $0x18] sm:$0xf]
    %v4204 = vld [vmem:[#allocation7 + $0x1c] sm:$0xf]
    %v4205 = vld [vmem:[#allocation7 + $0x20] sm:$0xf]
    %v4206 = vld [vmem:[#allocation7 + $0x24] sm:$0xf]
    %v4207 = vld [vmem:[#allocation7 + $0x28] sm:$0xf]
    %v4208 = vld [vmem:[#allocation7 + $0x2c] sm:$0xf]
    %v4209 = vld [vmem:[#allocation7 + $0x30] sm:$0xf]
    %v4210 = vld [vmem:[#allocation7 + $0x34] sm:$0xf]
    %v4211 = vld [vmem:[#allocation7 + $0x38] sm:$0xf]
    %v4212 = vld [vmem:[#allocation7 + $0x3c] sm:$0xf]
    %v4213 = vld [vmem:[#allocation7 + $0x40] sm:$0xf]
    %v4214 = vld [vmem:[#allocation7 + $0x44] sm:$0xf]
    %v4215 = vld [vmem:[#allocation7 + $0x48] sm:$0xf]
    %v4216 = vld [vmem:[#allocation7 + $0x4c] sm:$0xf]
    %v4217 = vld [vmem:[#allocation7 + $0x50] sm:$0xf]
    %v4218 = vld [vmem:[#allocation7 + $0x54] sm:$0xf]
    %v4219 = vld [vmem:[#allocation7 + $0x58] sm:$0xf]
    %v4220 = vld [vmem:[#allocation7 + $0x5c] sm:$0xf]
    %v4221 = vld [vmem:[#allocation7 + $0x60] sm:$0xf]
    %v4222 = vld [vmem:[#allocation7 + $0x64] sm:$0xf]
    %v4223 = vld [vmem:[#allocation7 + $0x68] sm:$0xf]
    %v4224 = vld [vmem:[#allocation7 + $0x6c] sm:$0xf]
    %v4225 = vld [vmem:[#allocation7 + $0x70] sm:$0xf]
    %v4226 = vld [vmem:[#allocation7 + $0x74] sm:$0xf]
    %v4227 = vld [vmem:[#allocation7 + $0x78] sm:$0xf]
    %v4228 = vld [vmem:[#allocation7 + $0x7c] sm:$0xf]
    %v4229 = vld [vmem:[#allocation7 + $0x80] sm:$0xf]
    %v4230 = vld [vmem:[#allocation7 + $0x84] sm:$0xf]
    %v4231 = vld [vmem:[#allocation7 + $0x88] sm:$0xf]
    %v4232 = vld [vmem:[#allocation7 + $0x8c] sm:$0xf]
    %v4233 = vld [vmem:[#allocation7 + $0x90] sm:$0xf]
    %v4234 = vld [vmem:[#allocation7 + $0x94] sm:$0xf]
    %v4235 = vld [vmem:[#allocation7 + $0x98] sm:$0xf]
    %v4236 = vld [vmem:[#allocation7 + $0x9c] sm:$0xf]
    %v4237 = vld [vmem:[#allocation7 + $0xa0] sm:$0xf]
    %v4238 = vld [vmem:[#allocation7 + $0xa4] sm:$0xf]
    %v4239 = vld [vmem:[#allocation7 + $0xa8] sm:$0xf]
    %v4240 = vld [vmem:[#allocation7 + $0xac] sm:$0xf]
    %v4241 = vld [vmem:[#allocation7 + $0xb0] sm:$0xf]
    %v4242 = vld [vmem:[#allocation7 + $0xb4] sm:$0xf]
    %v4243 = vld [vmem:[#allocation7 + $0xb8] sm:$0xf]
    %v4244 = vld [vmem:[#allocation7 + $0xbc] sm:$0xf]
    %v4245 = vld [vmem:[#allocation7 + $0xc0] sm:$0xf]
    %v4246 = vld [vmem:[#allocation7 + $0xc4] sm:$0xf]
    %v4247 = vld [vmem:[#allocation7 + $0xc8] sm:$0xf]
    %v4248 = vld [vmem:[#allocation7 + $0xcc] sm:$0xf]
    %v4249 = vld [vmem:[#allocation7 + $0xd0] sm:$0xf]
    %v4250 = vld [vmem:[#allocation7 + $0xd4] sm:$0xf]
    %v4251 = vld [vmem:[#allocation7 + $0xd8] sm:$0xf]
    %v4252 = vld [vmem:[#allocation7 + $0xdc] sm:$0xf]
    %v4253 = vld [vmem:[#allocation7 + $0xe0] sm:$0xf]
    %v4254 = vld [vmem:[#allocation7 + $0xe4] sm:$0xf]
    %v4255 = vld [vmem:[#allocation7 + $0xe8] sm:$0xf]
    %v4256 = vld [vmem:[#allocation7 + $0xec] sm:$0xf]
    %v4257 = vld [vmem:[#allocation7 + $0xf0] sm:$0xf]
    %v4258 = vld [vmem:[#allocation7 + $0xf4] sm:$0xf]
    %v4259 = vld [vmem:[#allocation7 + $0xf8] sm:$0xf]
    %v4260 = vld [vmem:[#allocation7 + $0xfc] sm:$0xf]
    %v4325 = vunpack.c.l.b16 %v4197
    %v4326 = vunpack.c.l.b16 %v4198
    %v4327 = vunpack.c.l.b16 %v4199
    %v4328 = vunpack.c.l.b16 %v4200
    %v4329 = vunpack.c.l.b16 %v4201
    %v4330 = vunpack.c.l.b16 %v4202
    %v4331 = vunpack.c.l.b16 %v4203
    %v4332 = vunpack.c.l.b16 %v4204
    %v4333 = vunpack.c.l.b16 %v4205
    %v4334 = vunpack.c.l.b16 %v4206
    %v4335 = vunpack.c.l.b16 %v4207
    %v4336 = vunpack.c.l.b16 %v4208
    %v4337 = vunpack.c.l.b16 %v4209
    %v4338 = vunpack.c.l.b16 %v4210
    %v4339 = vunpack.c.l.b16 %v4211
    %v4340 = vunpack.c.l.b16 %v4212
    %v4341 = vunpack.c.l.b16 %v4213
    %v4342 = vunpack.c.l.b16 %v4214
    %v4343 = vunpack.c.l.b16 %v4215
    %v4344 = vunpack.c.l.b16 %v4216
    %v4345 = vunpack.c.l.b16 %v4217
    %v4346 = vunpack.c.l.b16 %v4218
    %v4347 = vunpack.c.l.b16 %v4219
    %v4348 = vunpack.c.l.b16 %v4220
    %v4349 = vunpack.c.l.b16 %v4221
    %v4350 = vunpack.c.l.b16 %v4222
    %v4351 = vunpack.c.l.b16 %v4223
    %v4352 = vunpack.c.l.b16 %v4224
    %v4353 = vunpack.c.l.b16 %v4225
    %v4354 = vunpack.c.l.b16 %v4226
    %v4355 = vunpack.c.l.b16 %v4227
    %v4356 = vunpack.c.l.b16 %v4228
    %v4357 = vunpack.c.l.b16 %v4229
    %v4358 = vunpack.c.l.b16 %v4230
    %v4359 = vunpack.c.l.b16 %v4231
    %v4360 = vunpack.c.l.b16 %v4232
    %v4361 = vunpack.c.l.b16 %v4233
    %v4362 = vunpack.c.l.b16 %v4234
    %v4363 = vunpack.c.l.b16 %v4235
    %v4364 = vunpack.c.l.b16 %v4236
    %v4365 = vunpack.c.l.b16 %v4237
    %v4366 = vunpack.c.l.b16 %v4238
    %v4367 = vunpack.c.l.b16 %v4239
    %v4368 = vunpack.c.l.b16 %v4240
    %v4369 = vunpack.c.l.b16 %v4241
    %v4370 = vunpack.c.l.b16 %v4242
    %v4371 = vunpack.c.l.b16 %v4243
    %v4372 = vunpack.c.l.b16 %v4244
    %v4373 = vunpack.c.l.b16 %v4245
    %v4374 = vunpack.c.l.b16 %v4246
    %v4375 = vunpack.c.l.b16 %v4247
    %v4376 = vunpack.c.l.b16 %v4248
    %v4377 = vunpack.c.l.b16 %v4249
    %v4378 = vunpack.c.l.b16 %v4250
    %v4379 = vunpack.c.l.b16 %v4251
    %v4380 = vunpack.c.l.b16 %v4252
    %v4381 = vunpack.c.l.b16 %v4253
    %v4382 = vunpack.c.l.b16 %v4254
    %v4383 = vunpack.c.l.b16 %v4255
    %v4384 = vunpack.c.l.b16 %v4256
    %v4385 = vunpack.c.l.b16 %v4257
    %v4386 = vunpack.c.l.b16 %v4258
    %v4387 = vunpack.c.l.b16 %v4259
    %v4388 = vunpack.c.l.b16 %v4260
    %v4389 = vpack.c.b16 %v4326, %v4325
    %v4390 = vpack.c.b16 %v4328, %v4327
    %v4391 = vpack.c.b16 %v4330, %v4329
    %v4392 = vpack.c.b16 %v4332, %v4331
    %v4393 = vpack.c.b16 %v4334, %v4333
    %v4394 = vpack.c.b16 %v4336, %v4335
    %v4395 = vpack.c.b16 %v4338, %v4337
    %v4396 = vpack.c.b16 %v4340, %v4339
    %v4397 = vpack.c.b16 %v4342, %v4341
    %v4398 = vpack.c.b16 %v4344, %v4343
    %v4399 = vpack.c.b16 %v4346, %v4345
    %v4400 = vpack.c.b16 %v4348, %v4347
    %v4401 = vpack.c.b16 %v4350, %v4349
    %v4402 = vpack.c.b16 %v4352, %v4351
    %v4403 = vpack.c.b16 %v4354, %v4353
    %v4404 = vpack.c.b16 %v4356, %v4355
    %v4405 = vpack.c.b16 %v4358, %v4357
    %v4406 = vpack.c.b16 %v4360, %v4359
    %v4407 = vpack.c.b16 %v4362, %v4361
    %v4408 = vpack.c.b16 %v4364, %v4363
    %v4409 = vpack.c.b16 %v4366, %v4365
    %v4410 = vpack.c.b16 %v4368, %v4367
    %v4411 = vpack.c.b16 %v4370, %v4369
    %v4412 = vpack.c.b16 %v4372, %v4371
    %v4413 = vpack.c.b16 %v4374, %v4373
    %v4414 = vpack.c.b16 %v4376, %v4375
    %v4415 = vpack.c.b16 %v4378, %v4377
    %v4416 = vpack.c.b16 %v4380, %v4379
    %v4417 = vpack.c.b16 %v4382, %v4381
    %v4418 = vpack.c.b16 %v4384, %v4383
    %v4419 = vpack.c.b16 %v4386, %v4385
    %v4420 = vpack.c.b16 %v4388, %v4387
    %4453 = vmatpush.bf16.msra.mxu0 %v4396
    %4454 = vmatpush.bf16.msra.mxu0 %v4395
    %4455 = vmatpush.bf16.msra.mxu0 %v4394
    %4456 = vmatpush.bf16.msra.mxu0 %v4393
    %4457 = vmatpush.bf16.msra.mxu0 %v4392
    %4458 = vmatpush.bf16.msra.mxu0 %v4391
    %4459 = vmatpush.bf16.msra.mxu0 %v4390
    %4460 = vmatpush.bf16.msra.mxu0 %v4389
    %4461 = vmatmul.bf16.gmra.mxu0 %v4193
    %v4462 = vpop.f32.mrf.mxu0
    %v4463 = vadd.f32 0.0, %v4462
    %v4464 = vpop.f32.mrf.mxu0
    %4465 = vdwg.mxu0
    %4466 = vmatpush.bf16.msra.mxu0 %v4404
    %4467 = vmatpush.bf16.msra.mxu0 %v4403
    %4468 = vmatpush.bf16.msra.mxu0 %v4402
    %4469 = vmatpush.bf16.msra.mxu0 %v4401
    %4470 = vmatpush.bf16.msra.mxu0 %v4400
    %4471 = vmatpush.bf16.msra.mxu0 %v4399
    %4472 = vmatpush.bf16.msra.mxu0 %v4398
    %4473 = vmatpush.bf16.msra.mxu0 %v4397
    %4474 = vmatmul.bf16.gmra.mxu0 %v4194
    %v4475 = vpop.f32.mrf.mxu0
    %v4476 = vadd.f32 %v4463, %v4475
    %v4477 = vpop.f32.mrf.mxu0
    %4478 = vdwg.mxu0
    %4479 = vmatpush.bf16.msra.mxu0 %v4412
    %4480 = vmatpush.bf16.msra.mxu0 %v4411
    %4481 = vmatpush.bf16.msra.mxu0 %v4410
    %4482 = vmatpush.bf16.msra.mxu0 %v4409
    %4483 = vmatpush.bf16.msra.mxu0 %v4408
    %4484 = vmatpush.bf16.msra.mxu0 %v4407
    %4485 = vmatpush.bf16.msra.mxu0 %v4406
    %4486 = vmatpush.bf16.msra.mxu0 %v4405
    %4487 = vmatmul.bf16.gmra.mxu0 %v4195
    %v4488 = vpop.f32.mrf.mxu0
    %v4489 = vadd.f32 %v4476, %v4488
    %v4490 = vpop.f32.mrf.mxu0
    %4491 = vdwg.mxu0
    %4492 = vmatpush.bf16.msra.mxu0 %v4420
    %4493 = vmatpush.bf16.msra.mxu0 %v4419
    %4494 = vmatpush.bf16.msra.mxu0 %v4418
    %4495 = vmatpush.bf16.msra.mxu0 %v4417
    %4496 = vmatpush.bf16.msra.mxu0 %v4416
    %4497 = vmatpush.bf16.msra.mxu0 %v4415
    %4498 = vmatpush.bf16.msra.mxu0 %v4414
    %4499 = vmatpush.bf16.msra.mxu0 %v4413
    %4500 = vmatmul.bf16.gmra.mxu0 %v4196
    %v4501 = vpop.f32.mrf.mxu0
    %v4502 = vadd.f32 %v4489, %v4501
    %v4503 = vpop.f32.mrf.mxu0
    %4504 = vdwg.mxu0
    %v4505 = vrot.slane %v4502, 4
    %v4506 = vadd.f32 %v4502, %v4505
    %v4507 = vrot.slane %v4506, 2
    %v4508 = vadd.f32 %v4506, %v4507
    %v4509 = vrot.slane %v4508, 1
    %v4510 = vadd.f32 %v4508, %v4509
    %v4511 = vmul.f32 %v4510, %v4047
    %v4512 = vsub.f32 %v4502, %v4511
    %v4513 = vmul.f32 %v4512, %v4512
    %v4514 = vrot.slane %v4513, 4
    %v4515 = vadd.f32 %v4513, %v4514
    %v4516 = vrot.slane %v4515, 2
    %v4517 = vadd.f32 %v4515, %v4516
    %v4518 = vrot.slane %v4517, 1
    %v4519 = vadd.f32 %v4517, %v4518
    %v4520 = vmul.f32 %v4519, %v4047
    %v4521 = vadd.f32 %v4520, 1e-05
    %v4522 = vrsqrt.pop %v4521
    %v4523 = vmul.f32 %v4522, %v4521
    %v4524 = vmul.f32 %v4523, %v4522
    %v4525 = vmul.f32 0.5, %v4524
    %v4526 = vsub.f32 1.5, %v4525
    %v4527 = vmul.f32 %v4522, %v4526
    %vm4528 = vweird.f32 %v4521
    %vm4529 = vweird.f32 %v4522
    %vm4530 = vmor %vm4528, %vm4529
    %v4531 = vsel %vm4530, %v4522, %v4527
    %v4532 = vmul.f32 %v79, %v4531
    %v4533 = vmul.f32 %v4511, %v4532
    %v4534 = vsub.f32 %v80, %v4533
    %v4536 = vperm.slane %v4532, 0
    %v4538 = vmul.f32 %v4502, %v4536
    %v4540 = vperm.slane %v4534, 0
    %v4542 = vadd.f32 %v4538, %v4540
    %v4543 = vmul.f32 %v4542, %v4542
    %4544 = vadd.xlane.f32.xlu0 %v4543
    %v4545 = vpop.xlane.xlu0 %4544
    %v4546 = vmax.f32 %v4545, 1e-24
    %v4547 = vrsqrt.pop %v4546
    %v4548 = vmul.f32 %v4547, %v4546
    %v4549 = vmul.f32 %v4548, %v4547
    %v4550 = vmul.f32 0.5, %v4549
    %v4551 = vsub.f32 1.5, %v4550
    %v4552 = vmul.f32 %v4547, %v4551
    %vm4553 = vweird.f32 %v4546
    %vm4554 = vweird.f32 %v4547
    %vm4555 = vmor %vm4553, %vm4554
    %v4556 = vsel %vm4555, %v4547, %v4552
    %v4557 = vmul.f32 %v4542, %v4556
    %4558 = vst [vmem:[#allocation10] sm:$0xff] %v4557
    // Predicated region
    $region34: #{mlp_forward.1} parent=1 // pred_check
      _
    $region35: #{mlp_forward.1} parent=1 // pred_check_branch
      %4560 = sbr.rel (0) target = $region37
    $region36: #{mlp_forward.1} parent=1 // pred_region
      %4562 = vsyncadd [#allocation4], 0
      %s4564 = sshll.u32 [#allocation10], 4
      %s4565 = int_to_ptr.vmem [resolvable:$true] %s4564
      %s4566 = sshll.u32 %s4, 4
      %s4567 = int_to_ptr.hbm [resolvable:$true] %s4566
      %4569 = dma.vmem_to_hbm [thread:$0]  %s4565, 128, %s4567, [#allocation4]
    $region37: #{mlp_forward.1} parent=1 // pred_fallthru
      _
    // Predicated region
    $region38: #{mlp_forward.1} parent=1 // pred_check
      _
    $region39: #{mlp_forward.1} parent=1 // pred_check_branch
      %4571 = sbr.rel (0) target = $region41
    $region40: #{mlp_forward.1} parent=1 // pred_region
      %4573 = dma.done [#allocation4], 128
    $region41: #{mlp_forward.1} parent=1 // pred_fallthru
      _
    %4574 = vsyncpa [#allocation3], 1
    %4575 = vsyncpa [#allocation6], 1
    %4576 = vsyncpa [#allocation9], 1
    %4577 = vsyncpa [#allocation4], 1

</llo_original>
